<compile_context>
chip_gen: v6e
topology: v6e:2x2x1
jax: 0.10.0
libtpu: 0.0.40
codegen_flags: <defaults>
</compile_context>

<pallas_src>
import functools

import jax
import jax.numpy as jnp
import numpy as np
from jax.experimental import pallas as pl
from jax.experimental.pallas import tpu as pltpu

BITS = 4
PACK = 32 // BITS          # 8 nibbles per int32
MAXQ = (1 << BITS) - 1     # 15


# ----------------------------------------------------------------------------
# Generation-aware VMEM sizing.
# ----------------------------------------------------------------------------
@functools.lru_cache(maxsize=None)
def _vmem_config():
    """Returns (tile_budget_bytes, vmem_limit_bytes)."""
    try:
        phys = int(pltpu.get_tpu_info().vmem_capacity_bytes)
    except Exception:  # pragma: no cover - conservative fallback
        phys = 64 * 1024 * 1024
    limit = max(32 * 1024 * 1024, min(phys - 16 * 1024 * 1024, 100 * 1024 * 1024))
    budget = min(limit * 2 // 3, 64 * 1024 * 1024)
    return budget, limit


# ----------------------------------------------------------------------------
# In-kernel 4-bit nibble unpack (shift / and only; zero handling is done either
# as an exact bf16 subtract (prefill) or a rank-1 accumulator correction
# (decode) by the caller).
# ----------------------------------------------------------------------------
def _nibbles(qw):
    # qw: (group_size//PACK, tn) int32 packed along K -> (group_size, tn) int32
    pk, tn = qw.shape
    shifts = jax.lax.broadcasted_iota(jnp.int32, (1, PACK, 1), 1) * BITS
    # Arithmetic >> then & MAXQ is sign-safe for 4-bit nibbles.
    w = (qw[:, None, :] >> shifts) & MAXQ          # (pk, PACK, tn)
    # PACK == 8 divides the sublane tiling, so this reshape is layout-free.
    return w.reshape(pk * PACK, tn)


def _group_contrib(xg, xs, qw_ref, sc_ref, zp_ref, g, gpk, zero_rank1):
    """Contribution of one K-group to the (tm, tn) f32 accumulator."""
    wg = _nibbles(qw_ref[g * gpk:(g + 1) * gpk, :])          # (gs, tn) int32
    if zero_rank1:
        # zp_ref holds zero*scale (f32):  dot(x, nib)*s - rowsum(x)*(z*s)
        acc = jnp.dot(xg, wg.astype(jnp.bfloat16),
                      preferred_element_type=jnp.float32) * sc_ref[g]
        return acc - xs * zp_ref[g]
    # zp_ref holds integer zero points (+1 folded); |nib - z| <= 16 is exact
    # in bf16.
    w = (wg - zp_ref[g]).astype(jnp.bfloat16)
    return jnp.dot(xg, w, preferred_element_type=jnp.float32) * sc_ref[g]


# ----------------------------------------------------------------------------
# Fused gate/up kernel:  c = silu(x @ Wg) * (x @ Wu)
# grid = (M//tm, N//tn, K//tk); each K step covers `groups_per_tile` groups,
# statically unrolled (capped at 8) with per-group scale hoisting.
# ----------------------------------------------------------------------------
def fused_gate_up_kernel(x_ref, gqw_ref, gsc_ref, gzp_ref,
                         uqw_ref, usc_ref, uzp_ref,
                         c_ref, accg_ref, accu_ref,
                         *, group_size, groups_per_tile, zero_rank1):
    k = pl.program_id(2)

    @pl.when(k == 0)
    def _():
        accg_ref[...] = jnp.zeros_like(accg_ref)
        accu_ref[...] = jnp.zeros_like(accu_ref)

    x = x_ref[...].astype(jnp.bfloat16)            # (tm, tk)
    gpk = group_size // PACK
    accg = accg_ref[...]
    accu = accu_ref[...]
    for g in range(groups_per_tile):               # static unroll (<= 8)
        xg = x[:, g * group_size:(g + 1) * group_size]                  # (tm, gs)
        xs = (jnp.sum(xg.astype(jnp.float32), axis=1, keepdims=True)
              if zero_rank1 else None)                                  # (tm, 1)
        accg = accg + _group_contrib(xg, xs, gqw_ref, gsc_ref, gzp_ref,
                                     g, gpk, zero_rank1)
        accu = accu + _group_contrib(xg, xs, uqw_ref, usc_ref, uzp_ref,
                                     g, gpk, zero_rank1)
    accg_ref[...] = accg
    accu_ref[...] = accu

    @pl.when(k == pl.num_programs(2) - 1)
    def _():
        gact = accg_ref[...]
        c_ref[...] = (gact * jax.nn.sigmoid(gact) * accu_ref[...]).astype(c_ref.dtype)


# ----------------------------------------------------------------------------
# Generic quantized matmul kernel (used for down_proj):  o = x @ W
# ----------------------------------------------------------------------------
def quant_matmul_kernel(x_ref, qw_ref, sc_ref, zp_ref, o_ref, acc_ref,
                        *, group_size, groups_per_tile, zero_rank1):
    k = pl.program_id(2)

    @pl.when(k == 0)
    def _():
        acc_ref[...] = jnp.zeros_like(acc_ref)

    x = x_ref[...].astype(jnp.bfloat16)
    gpk = group_size // PACK
    acc = acc_ref[...]
    for g in range(groups_per_tile):
        xg = x[:, g * group_size:(g + 1) * group_size]
        xs = (jnp.sum(xg.astype(jnp.float32), axis=1, keepdims=True)
              if zero_rank1 else None)
        acc = acc + _group_contrib(xg, xs, qw_ref, sc_ref, zp_ref,
                                   g, gpk, zero_rank1)
    acc_ref[...] = acc

    @pl.when(k == pl.num_programs(2) - 1)
    def _():
        o_ref[...] = acc_ref[...].astype(o_ref.dtype)


# ----------------------------------------------------------------------------
# Tile selection + BlockSpecs.
# ----------------------------------------------------------------------------
def _pick_tm(M, cap=512):
    if M >= cap:
        return cap
    return max(8, ((M + 7) // 8) * 8)


def _pick_k_tile(K, group_size, max_groups=8):
    # tk must cover whole groups, divide K, and satisfy the (8,128) rule for
    # the x tile (tk % 128 == 0 or tk == K).  Groups-per-tile capped so the
    # static in-kernel unroll stays bounded (live-range / vreg pressure).
    n_groups = K // group_size
    for gpt in range(min(n_groups, max_groups), 0, -1):
        tk = gpt * group_size
        if n_groups % gpt:
            continue
        if tk % 128 and tk != K:
            continue
        return tk, gpt
    return K, n_groups     # full-K fallback (rare: group_size not 128-friendly)


def _pick_tn(N, fits, prefer_split):
    # Largest multiple of 128 dividing N whose VMEM footprint fits; for decode
    # prefer >= 2 N-blocks so v7x's two TensorCores both get work.
    if N % 128:
        # TODO(synk): non-128-multiple N -> full-dim block -> masked stores.
        return N
    cands = [t for t in range(N, 0, -128) if N % t == 0]
    pools = ([t for t in cands if t <= N // 2], cands) if prefer_split else (cands,)
    for pool in pools:
        for t in pool:
            if fits(t):
                return t
    return cands[-1]


def _fused_vmem_bytes(tm, tn, tk, gpt, group_size):
    return (2 * tm * tk * 2                  # x tile, double-buffered bf16
            + 2 * 2 * (tk // PACK) * tn * 4  # gate+up qweight, double-buffered
            + 2 * 2 * 2 * gpt * tn * 4       # scales + zero terms, both streams
            + 2 * tm * tn * 2                # c output, double-buffered bf16
            + 2 * tm * tn * 4                # two f32 accumulators
            + 2 * group_size * tn * 6)       # dequant temporaries (int32 + bf16)


def _down_vmem_bytes(tm, tn, tk, gpt, group_size, out_bytes):
    return (2 * tm * tk * 2
            + 2 * (tk // PACK) * tn * 4
            + 2 * 2 * gpt * tn * 4
            + 2 * tm * tn * out_bytes
            + tm * tn * 4
            + group_size * tn * 6)


def _spec(block_shape, index_map, depth=None):
    if depth is not None:
        try:
            return pl.BlockSpec(block_shape, index_map,
                                pipeline_mode=pl.Buffered(depth))
        except Exception:          # pipeline_mode / Buffered unavailable
            pass
    return pl.BlockSpec(block_shape, index_map)


# ----------------------------------------------------------------------------
# pallas_call wrappers.
# ----------------------------------------------------------------------------
def quant_gate_up(x2d, gate, up, *, group_size, tm, zero_rank1,
                  vmem_budget, vmem_limit):
    M, K = x2d.shape
    N = gate["scales"].shape[-1]
    tk, gpt = _pick_k_tile(K, group_size)
    decode = tm <= 64
    tn = _pick_tn(
        N, lambda t: _fused_vmem_bytes(tm, t, tk, gpt, group_size) <= vmem_budget,
        prefer_split=decode)
    ksteps = K // tk
    depth = 3 if (decode and ksteps >= 3) else None   # hide qweight DMA latency

    x_spec = pl.BlockSpec((tm, tk), lambda i, j, k: (i, k))
    qw_spec = _spec((tk // PACK, tn), lambda i, j, k: (k, j), depth)
    grp_spec = _spec((gpt, 1, tn), lambda i, j, k: (k, 0, j), depth)
    zp_key = "zs" if zero_rank1 else "zeros"

    kernel = functools.partial(fused_gate_up_kernel, group_size=group_size,
                               groups_per_tile=gpt, zero_rank1=zero_rank1)
    return pl.pallas_call(
        kernel,
        out_shape=jax.ShapeDtypeStruct((M, N), jnp.bfloat16),
        grid_spec=pltpu.PrefetchScalarGridSpec(
            num_scalar_prefetch=0,
            grid=(M // tm, N // tn, ksteps),
            in_specs=[x_spec, qw_spec, grp_spec, grp_spec,
                      qw_spec, grp_spec, grp_spec],
            out_specs=pl.BlockSpec((tm, tn), lambda i, j, k: (i, j)),
            scratch_shapes=[pltpu.VMEM((tm, tn), jnp.float32),
                            pltpu.VMEM((tm, tn), jnp.float32)]),
        compiler_params=pltpu.CompilerParams(
            dimension_semantics=("parallel", "parallel", "arbitrary"),
            vmem_limit_bytes=vmem_limit),
    )(x2d, gate["qweight"], gate["scales"], gate[zp_key],
      up["qweight"], up["scales"], up[zp_key])


def quant_matmul(x2d, params, *, group_size, tm, zero_rank1,
                 vmem_budget, vmem_limit, out_dtype=jnp.bfloat16):
    M, K = x2d.shape
    N = params["scales"].shape[-1]
    tk, gpt = _pick_k_tile(K, group_size)
    decode = tm <= 64
    out_bytes = jnp.dtype(out_dtype).itemsize
    tn = _pick_tn(
        N,
        lambda t: _down_vmem_bytes(tm, t, tk, gpt, group_size, out_bytes) <= vmem_budget,
        prefer_split=decode)
    ksteps = K // tk
    depth = 3 if (decode and ksteps >= 3) else None

    x_spec = pl.BlockSpec((tm, tk), lambda i, j, k: (i, k))
    qw_spec = _spec((tk // PACK, tn), lambda i, j, k: (k, j), depth)
    grp_spec = _spec((gpt, 1, tn), lambda i, j, k: (k, 0, j), depth)
    zp_key = "zs" if zero_rank1 else "zeros"

    kernel = functools.partial(quant_matmul_kernel, group_size=group_size,
                               groups_per_tile=gpt, zero_rank1=zero_rank1)
    return pl.pallas_call(
        kernel,
        out_shape=jax.ShapeDtypeStruct((M, N), out_dtype),
        grid_spec=pltpu.PrefetchScalarGridSpec(
            num_scalar_prefetch=0,
            grid=(M // tm, N // tn, ksteps),
            in_specs=[x_spec, qw_spec, grp_spec, grp_spec],
            out_specs=pl.BlockSpec((tm, tn), lambda i, j, k: (i, j)),
            scratch_shapes=[pltpu.VMEM((tm, tn), jnp.float32)]),
        compiler_params=pltpu.CompilerParams(
            dimension_semantics=("parallel", "parallel", "arbitrary"),
            vmem_limit_bytes=vmem_limit),
    )(x2d, params["qweight"], params["scales"], params[zp_key])


# ----------------------------------------------------------------------------
# Host-side helpers (run once at module construction).
# ----------------------------------------------------------------------------
def _unpack_zeros_plus1(qzeros):
    # (G, N//PACK) int32 -> (G, 1, N) int32 true zero points (the GPTQ "+1"
    # folded here).
    g, npk = qzeros.shape
    shifts = (jnp.arange(PACK, dtype=jnp.int32) * BITS)[None, None, :]
    z = (qzeros[:, :, None] >> shifts) & MAXQ                # (G, N//PACK, PACK)
    return z.reshape(g, 1, npk * PACK).astype(jnp.int32) + 1


# ----------------------------------------------------------------------------
# Module wrapper mirroring QuantLlamaMLP.forward.
# ----------------------------------------------------------------------------
class QuantLlamaMLPPallas:
    def __init__(self, gate, down, up, *, group_size):
        self.group_size = group_size
        self.infeatures = gate["g_idx"].shape[0]
        self.intermediate_size = gate["scales"].shape[-1]
        self.outfeatures = down["scales"].shape[-1]
        self.bits = BITS
        self.maxq = MAXQ

        for name, p, K in (("gate_proj", gate, self.infeatures),
                           ("up_proj", up, self.infeatures),
                           ("down_proj", down, self.intermediate_size)):
            g_idx = np.asarray(p["g_idx"])
            if not np.array_equal(g_idx, np.arange(K) // group_size):
                # TODO(synk): act-order g_idx needs a scalar-prefetch gather.
                raise NotImplementedError(f"{name}: non-sequential g_idx unsupported")

        self._gate = self._prep(gate)
        self._up = self._prep(up)
        self._down = self._prep(down)

    @staticmethod
    def _prep(p):
        G, N = p["scales"].shape
        scales = p["scales"].astype(jnp.float32).reshape(G, 1, N)
        zeros = _unpack_zeros_plus1(p["qzeros"])               # (G, 1, N) int32
        return {
            "qweight": p["qweight"],
            "scales": scales,
            "zeros": zeros,                                    # prefill path
            "zs": zeros.astype(jnp.float32) * scales,          # decode rank-1 path
        }

    def __call__(self, x):
        lead = x.shape[:-1]
        x2 = x.reshape(-1, x.shape[-1]).astype(jnp.bfloat16)
        M = x2.shape[0]
        tm = _pick_tm(M)
        Mp = ((M + tm - 1) // tm) * tm
        if Mp != M:
            x2 = jnp.pad(x2, ((0, Mp - M), (0, 0)))

        budget, limit = _vmem_config()
        # Rank-1 zero correction pays off when tm < group_size (decode);
        # otherwise the exact (nibble - zero) bf16 subtract is cheaper.
        rank1 = tm < self.group_size

        c = quant_gate_up(x2, self._gate, self._up, group_size=self.group_size,
                          tm=tm, zero_rank1=rank1,
                          vmem_budget=budget, vmem_limit=limit)     # (Mp, inter) bf16
        out = quant_matmul(c, self._down, group_size=self.group_size,
                           tm=tm, zero_rank1=rank1,
                           vmem_budget=budget, vmem_limit=limit,
                           out_dtype=jnp.bfloat16)                   # (Mp, out) bf16
        if Mp != M:
            out = out[:M]
        return out.reshape(lead + (self.outfeatures,))


# ----------------------------------------------------------------------------
# Synthetic deterministic GPTQ-style parameters + pure-JAX reference.
# ----------------------------------------------------------------------------
def _pack_rows(w):   # (K, N) nibbles -> (K//PACK, N) int32
    K, N = w.shape
    w = w.reshape(K // PACK, PACK, N)
    packed = w[:, 0, :]
    for j in range(1, PACK):
        packed = packed | (w[:, j, :] << (BITS * j))
    return packed.astype(jnp.int32)


def _pack_cols(z):   # (G, N) nibbles -> (G, N//PACK) int32
    G, N = z.shape
    z = z.reshape(G, N // PACK, PACK)
    packed = z[:, :, 0]
    for r in range(1, PACK):
        packed = packed | (z[:, :, r] << (BITS * r))
    return packed.astype(jnp.int32)


def make_quant_linear_params(key, infeatures, outfeatures, group_size):
    k1, k2, k3 = jax.random.split(key, 3)
    groups = infeatures // group_size
    intw = jax.random.randint(k1, (infeatures, outfeatures), 0, MAXQ + 1, jnp.int32)
    scales = jax.random.uniform(k2, (groups, outfeatures), jnp.float32,
                                minval=0.005, maxval=0.02)
    zeros_m1 = jax.random.randint(k3, (groups, outfeatures), 0, MAXQ + 1, jnp.int32)
    return {
        "qweight": _pack_rows(intw),
        "scales": scales,
        "qzeros": _pack_cols(zeros_m1),
        "g_idx": (jnp.arange(infeatures, dtype=jnp.int32) // group_size),
    }


def _dequant_full_ref(p):
    shifts = jnp.arange(PACK, dtype=jnp.int32) * BITS
    qw, sc, qz, g_idx = p["qweight"], p["scales"], p["qzeros"], p["g_idx"]
    K = g_idx.shape[0]
    w = ((qw[:, None, :] >> shifts[None, :, None]) & MAXQ).reshape(K, -1)
    z = ((qz[:, :, None] >> shifts[None, None, :]) & MAXQ).reshape(sc.shape[0], -1) + 1
    return (w - z[g_idx]).astype(jnp.float32) * sc[g_idx]


def ref_forward(x, gate, up, down):
    x2 = x.reshape(-1, x.shape[-1]).astype(jnp.float32)
    Wg, Wu, Wd = _dequant_full_ref(gate), _dequant_full_ref(up), _dequant_full_ref(down)
    g = x2 @ Wg
    u = x2 @ Wu
    c = (g * jax.nn.sigmoid(g)) * u
    return (c @ Wd).reshape(x.shape[:-1] + (Wd.shape[-1],))


if __name__ == "__main__":
    # Small Llama-like MLP: hidden=1536 (12 groups of 128), intermediate=512,
    # out=256, group=128.  Three cases cover the decode (rank-1 zero) path,
    # the M-padding path, and the prefill (zero-subtract) path, including a
    # multi-step K reduction in the fused gate/up kernel.
    hidden, inter, out_f, group_size = 1536, 512, 256, 128

    key = jax.random.PRNGKey(0)
    kg, ku, kd, kx1, kx2, kx3 = jax.random.split(key, 6)

    gate = make_quant_linear_params(kg, hidden, inter, group_size)
    up = make_quant_linear_params(ku, hidden, inter, group_size)
    down = make_quant_linear_params(kd, inter, out_f, group_size)

    mlp = QuantLlamaMLPPallas(gate, down, up, group_size=group_size)

    cases = {
        "decode":  jax.random.normal(kx1, (2, 8, hidden), jnp.float32),   # M=16
        "ragged":  jax.random.normal(kx2, (3, 7, hidden), jnp.float32),   # M=21 -> pad 24
        "prefill": jax.random.normal(kx3, (2, 64, hidden), jnp.float32),  # M=128
    }
    for name, x in cases.items():
        out = jax.block_until_ready(mlp(x))
        ref = jax.block_until_ready(ref_forward(x, gate, up, down))
        assert out.shape == x.shape[:-1] + (out_f,), (name, out.shape)
        assert bool(jnp.all(jnp.isfinite(out))), name
        err = float(jnp.max(jnp.abs(out.astype(jnp.float32) - ref)))
        tol = 2e-2 * float(jnp.max(jnp.abs(ref))) + 5e-2   # bf16-path tolerance
        assert err <= tol, (name, err, tol)

    print("KERNEL_OK")
</pallas_src>

<mosaic_0001>
module attributes {stable_mosaic.version = 11 : i64} {
  func.func @fused_gate_up_kernel(%arg0: i32, %arg1: i32, %arg2: i32, %arg3: memref<16x768xbf16, #tpu.memory_space<vmem>>, %arg4: memref<96x256xi32, #tpu.memory_space<vmem>>, %arg5: memref<6x1x256xf32, #tpu.memory_space<vmem>>, %arg6: memref<6x1x256xf32, #tpu.memory_space<vmem>>, %arg7: memref<96x256xi32, #tpu.memory_space<vmem>>, %arg8: memref<6x1x256xf32, #tpu.memory_space<vmem>>, %arg9: memref<6x1x256xf32, #tpu.memory_space<vmem>>, %arg10: memref<16x256xbf16, #tpu.memory_space<vmem>>, %arg11: memref<16x256xf32, #tpu.memory_space<vmem>>, %arg12: memref<16x256xf32, #tpu.memory_space<vmem>>) attributes {dimension_semantics = [#tpu.dimension_semantics<parallel>, #tpu.dimension_semantics<parallel>, #tpu.dimension_semantics<arbitrary>], iteration_bounds = array<i64: 1, 2, 2>, scalar_prefetch = 0 : i64, scratch_operands = 2 : i64, tpu.core_type = #tpu.core_type<tc>, window_params = [{transform_indices = @transform_0, window_bounds = array<i64: 16, 768>}, {transform_indices = @transform_1, window_bounds = array<i64: 96, 256>}, {transform_indices = @transform_2, window_bounds = array<i64: 6, 1, 256>}, {transform_indices = @transform_3, window_bounds = array<i64: 6, 1, 256>}, {transform_indices = @transform_4, window_bounds = array<i64: 96, 256>}, {transform_indices = @transform_5, window_bounds = array<i64: 6, 1, 256>}, {transform_indices = @transform_6, window_bounds = array<i64: 6, 1, 256>}, {transform_indices = @transform_7, window_bounds = array<i64: 16, 256>}]} {
    %c0_i32 = arith.constant 0 : i32
    %0 = arith.cmpi eq, %arg2, %c0_i32 : i32
    %1 = arith.extui %0 : i1 to i32
    %c0_i32_0 = arith.constant 0 : i32
    %2 = arith.cmpi ne, %1, %c0_i32_0 : i32
    scf.if %2 {
      %cst_136 = arith.constant 0.000000e+00 : f32
      %323 = vector.broadcast %cst_136 : f32 to vector<16x256xf32>
      %c0_137 = arith.constant 0 : index
      %c0_138 = arith.constant 0 : index
      %324 = vector.load %arg11[%c0_137, %c0_138] : memref<16x256xf32, #tpu.memory_space<vmem>>, vector<16x256xf32>
      tpu.vector_store %arg11[%c0_137, %c0_138], %323 {strides = array<i32>} : memref<16x256xf32, #tpu.memory_space<vmem>>, vector<16x256xf32>,
      %cst_139 = arith.constant 0.000000e+00 : f32
      %325 = vector.broadcast %cst_139 : f32 to vector<16x256xf32>
      %c0_140 = arith.constant 0 : index
      %c0_141 = arith.constant 0 : index
      %326 = vector.load %arg12[%c0_140, %c0_141] : memref<16x256xf32, #tpu.memory_space<vmem>>, vector<16x256xf32>
      tpu.vector_store %arg12[%c0_140, %c0_141], %325 {strides = array<i32>} : memref<16x256xf32, #tpu.memory_space<vmem>>, vector<16x256xf32>,
    } else {
    }
    %c0 = arith.constant 0 : index
    %c0_1 = arith.constant 0 : index
    %3 = vector.load %arg3[%c0, %c0_1] : memref<16x768xbf16, #tpu.memory_space<vmem>>, vector<16x768xbf16>
    %c0_2 = arith.constant 0 : index
    %c0_3 = arith.constant 0 : index
    %4 = vector.load %arg11[%c0_2, %c0_3] : memref<16x256xf32, #tpu.memory_space<vmem>>, vector<16x256xf32>
    %c0_4 = arith.constant 0 : index
    %c0_5 = arith.constant 0 : index
    %5 = vector.load %arg12[%c0_4, %c0_5] : memref<16x256xf32, #tpu.memory_space<vmem>>, vector<16x256xf32>
    %6 = vector.extract_strided_slice %3 {offsets = [0, 0], sizes = [16, 128], strides = [1, 1]} : vector<16x768xbf16> to vector<16x128xbf16>
    %7 = arith.extf %6 : vector<16x128xbf16> to vector<16x128xf32>
    %cst = arith.constant dense<0.000000e+00> : vector<16xf32>
    %8 = vector.multi_reduction <add>, %7, %cst [1] : vector<16x128xf32> to vector<16xf32>
    %9 = vector.shape_cast %8 : vector<16xf32> to vector<16x1xf32>
    %c0_6 = arith.constant 0 : index
    %c0_7 = arith.constant 0 : index
    %10 = vector.load %arg4[%c0_6, %c0_7] : memref<96x256xi32, #tpu.memory_space<vmem>>, vector<16x256xi32>
    %11 = tpu.iota {dimensions = array<i32: 1>} : vector<1x8x1xi32>
    %c4_i32 = arith.constant 4 : i32
    %12 = vector.broadcast %c4_i32 : i32 to vector<1x8x1xi32>
    %13 = arith.muli %11, %12 : vector<1x8x1xi32>
    %14 = vector.shape_cast %10 : vector<16x256xi32> to vector<16x1x256xi32>
    %15 = vector.broadcast %14 : vector<16x1x256xi32> to vector<16x8x256xi32>
    %16 = vector.broadcast %13 : vector<1x8x1xi32> to vector<16x8x256xi32>
    %17 = arith.shrsi %15, %16 : vector<16x8x256xi32>
    %c15_i32 = arith.constant 15 : i32
    %18 = vector.broadcast %c15_i32 : i32 to vector<16x8x256xi32>
    %19 = arith.andi %17, %18 : vector<16x8x256xi32>
    %20 = vector.shape_cast %19 : vector<16x8x256xi32> to vector<128x256xi32>
    %21 = arith.sitofp %20 : vector<128x256xi32> to vector<128x256xbf16>
    %cst_8 = arith.constant dense<0.000000e+00> : vector<16x256xf32>
    %22 = tpu.matmul %6, %21, %cst_8 {dimension_numbers = #tpu.dot_dimension_numbers<[1], [0], [0], [1], [0, 0, 1, 1], [], []>} : vector<16x128xbf16>, vector<128x256xbf16>, vector<16x256xf32> -> vector<16x256xf32>
    %c0_9 = arith.constant 0 : index
    %c0_10 = arith.constant 0 : index
    %c0_11 = arith.constant 0 : index
    %23 = vector.load %arg5[%c0_9, %c0_10, %c0_11] : memref<6x1x256xf32, #tpu.memory_space<vmem>>, vector<1x1x256xf32>
    %24 = vector.shape_cast %23 : vector<1x1x256xf32> to vector<1x256xf32>
    %25 = vector.broadcast %24 : vector<1x256xf32> to vector<16x256xf32>
    %26 = arith.mulf %22, %25 : vector<16x256xf32>
    %c0_12 = arith.constant 0 : index
    %c0_13 = arith.constant 0 : index
    %c0_14 = arith.constant 0 : index
    %27 = vector.load %arg6[%c0_12, %c0_13, %c0_14] : memref<6x1x256xf32, #tpu.memory_space<vmem>>, vector<1x1x256xf32>
    %28 = vector.shape_cast %27 : vector<1x1x256xf32> to vector<1x256xf32>
    %29 = vector.broadcast %9 : vector<16x1xf32> to vector<16x256xf32>
    %30 = vector.broadcast %28 : vector<1x256xf32> to vector<16x256xf32>
    %31 = arith.mulf %29, %30 : vector<16x256xf32>
    %32 = arith.subf %26, %31 : vector<16x256xf32>
    %33 = arith.addf %4, %32 : vector<16x256xf32>
    %c0_15 = arith.constant 0 : index
    %c0_16 = arith.constant 0 : index
    %34 = vector.load %arg7[%c0_15, %c0_16] : memref<96x256xi32, #tpu.memory_space<vmem>>, vector<16x256xi32>
    %35 = tpu.iota {dimensions = array<i32: 1>} : vector<1x8x1xi32>
    %c4_i32_17 = arith.constant 4 : i32
    %36 = vector.broadcast %c4_i32_17 : i32 to vector<1x8x1xi32>
    %37 = arith.muli %35, %36 : vector<1x8x1xi32>
    %38 = vector.shape_cast %34 : vector<16x256xi32> to vector<16x1x256xi32>
    %39 = vector.broadcast %38 : vector<16x1x256xi32> to vector<16x8x256xi32>
    %40 = vector.broadcast %37 : vector<1x8x1xi32> to vector<16x8x256xi32>
    %41 = arith.shrsi %39, %40 : vector<16x8x256xi32>
    %c15_i32_18 = arith.constant 15 : i32
    %42 = vector.broadcast %c15_i32_18 : i32 to vector<16x8x256xi32>
    %43 = arith.andi %41, %42 : vector<16x8x256xi32>
    %44 = vector.shape_cast %43 : vector<16x8x256xi32> to vector<128x256xi32>
    %45 = arith.sitofp %44 : vector<128x256xi32> to vector<128x256xbf16>
    %cst_19 = arith.constant dense<0.000000e+00> : vector<16x256xf32>
    %46 = tpu.matmul %6, %45, %cst_19 {dimension_numbers = #tpu.dot_dimension_numbers<[1], [0], [0], [1], [0, 0, 1, 1], [], []>} : vector<16x128xbf16>, vector<128x256xbf16>, vector<16x256xf32> -> vector<16x256xf32>
    %c0_20 = arith.constant 0 : index
    %c0_21 = arith.constant 0 : index
    %c0_22 = arith.constant 0 : index
    %47 = vector.load %arg8[%c0_20, %c0_21, %c0_22] : memref<6x1x256xf32, #tpu.memory_space<vmem>>, vector<1x1x256xf32>
    %48 = vector.shape_cast %47 : vector<1x1x256xf32> to vector<1x256xf32>
    %49 = vector.broadcast %48 : vector<1x256xf32> to vector<16x256xf32>
    %50 = arith.mulf %46, %49 : vector<16x256xf32>
    %c0_23 = arith.constant 0 : index
    %c0_24 = arith.constant 0 : index
    %c0_25 = arith.constant 0 : index
    %51 = vector.load %arg9[%c0_23, %c0_24, %c0_25] : memref<6x1x256xf32, #tpu.memory_space<vmem>>, vector<1x1x256xf32>
    %52 = vector.shape_cast %51 : vector<1x1x256xf32> to vector<1x256xf32>
    %53 = vector.broadcast %9 : vector<16x1xf32> to vector<16x256xf32>
    %54 = vector.broadcast %52 : vector<1x256xf32> to vector<16x256xf32>
    %55 = arith.mulf %53, %54 : vector<16x256xf32>
    %56 = arith.subf %50, %55 : vector<16x256xf32>
    %57 = arith.addf %5, %56 : vector<16x256xf32>
    %58 = vector.extract_strided_slice %3 {offsets = [0, 128], sizes = [16, 128], strides = [1, 1]} : vector<16x768xbf16> to vector<16x128xbf16>
    %59 = arith.extf %58 : vector<16x128xbf16> to vector<16x128xf32>
    %cst_26 = arith.constant dense<0.000000e+00> : vector<16xf32>
    %60 = vector.multi_reduction <add>, %59, %cst_26 [1] : vector<16x128xf32> to vector<16xf32>
    %61 = vector.shape_cast %60 : vector<16xf32> to vector<16x1xf32>
    %c16 = arith.constant 16 : index
    %c0_27 = arith.constant 0 : index
    %62 = vector.load %arg4[%c16, %c0_27] : memref<96x256xi32, #tpu.memory_space<vmem>>, vector<16x256xi32>
    %63 = tpu.iota {dimensions = array<i32: 1>} : vector<1x8x1xi32>
    %c4_i32_28 = arith.constant 4 : i32
    %64 = vector.broadcast %c4_i32_28 : i32 to vector<1x8x1xi32>
    %65 = arith.muli %63, %64 : vector<1x8x1xi32>
    %66 = vector.shape_cast %62 : vector<16x256xi32> to vector<16x1x256xi32>
    %67 = vector.broadcast %66 : vector<16x1x256xi32> to vector<16x8x256xi32>
    %68 = vector.broadcast %65 : vector<1x8x1xi32> to vector<16x8x256xi32>
    %69 = arith.shrsi %67, %68 : vector<16x8x256xi32>
    %c15_i32_29 = arith.constant 15 : i32
    %70 = vector.broadcast %c15_i32_29 : i32 to vector<16x8x256xi32>
    %71 = arith.andi %69, %70 : vector<16x8x256xi32>
    %72 = vector.shape_cast %71 : vector<16x8x256xi32> to vector<128x256xi32>
    %73 = arith.sitofp %72 : vector<128x256xi32> to vector<128x256xbf16>
    %cst_30 = arith.constant dense<0.000000e+00> : vector<16x256xf32>
    %74 = tpu.matmul %58, %73, %cst_30 {dimension_numbers = #tpu.dot_dimension_numbers<[1], [0], [0], [1], [0, 0, 1, 1], [], []>} : vector<16x128xbf16>, vector<128x256xbf16>, vector<16x256xf32> -> vector<16x256xf32>
    %c1 = arith.constant 1 : index
    %c0_31 = arith.constant 0 : index
    %c0_32 = arith.constant 0 : index
    %75 = vector.load %arg5[%c1, %c0_31, %c0_32] : memref<6x1x256xf32, #tpu.memory_space<vmem>>, vector<1x1x256xf32>
    %76 = vector.shape_cast %75 : vector<1x1x256xf32> to vector<1x256xf32>
    %77 = vector.broadcast %76 : vector<1x256xf32> to vector<16x256xf32>
    %78 = arith.mulf %74, %77 : vector<16x256xf32>
    %c1_33 = arith.constant 1 : index
    %c0_34 = arith.constant 0 : index
    %c0_35 = arith.constant 0 : index
    %79 = vector.load %arg6[%c1_33, %c0_34, %c0_35] : memref<6x1x256xf32, #tpu.memory_space<vmem>>, vector<1x1x256xf32>
    %80 = vector.shape_cast %79 : vector<1x1x256xf32> to vector<1x256xf32>
    %81 = vector.broadcast %61 : vector<16x1xf32> to vector<16x256xf32>
    %82 = vector.broadcast %80 : vector<1x256xf32> to vector<16x256xf32>
    %83 = arith.mulf %81, %82 : vector<16x256xf32>
    %84 = arith.subf %78, %83 : vector<16x256xf32>
    %85 = arith.addf %33, %84 : vector<16x256xf32>
    %c16_36 = arith.constant 16 : index
    %c0_37 = arith.constant 0 : index
    %86 = vector.load %arg7[%c16_36, %c0_37] : memref<96x256xi32, #tpu.memory_space<vmem>>, vector<16x256xi32>
    %87 = tpu.iota {dimensions = array<i32: 1>} : vector<1x8x1xi32>
    %c4_i32_38 = arith.constant 4 : i32
    %88 = vector.broadcast %c4_i32_38 : i32 to vector<1x8x1xi32>
    %89 = arith.muli %87, %88 : vector<1x8x1xi32>
    %90 = vector.shape_cast %86 : vector<16x256xi32> to vector<16x1x256xi32>
    %91 = vector.broadcast %90 : vector<16x1x256xi32> to vector<16x8x256xi32>
    %92 = vector.broadcast %89 : vector<1x8x1xi32> to vector<16x8x256xi32>
    %93 = arith.shrsi %91, %92 : vector<16x8x256xi32>
    %c15_i32_39 = arith.constant 15 : i32
    %94 = vector.broadcast %c15_i32_39 : i32 to vector<16x8x256xi32>
    %95 = arith.andi %93, %94 : vector<16x8x256xi32>
    %96 = vector.shape_cast %95 : vector<16x8x256xi32> to vector<128x256xi32>
    %97 = arith.sitofp %96 : vector<128x256xi32> to vector<128x256xbf16>
    %cst_40 = arith.constant dense<0.000000e+00> : vector<16x256xf32>
    %98 = tpu.matmul %58, %97, %cst_40 {dimension_numbers = #tpu.dot_dimension_numbers<[1], [0], [0], [1], [0, 0, 1, 1], [], []>} : vector<16x128xbf16>, vector<128x256xbf16>, vector<16x256xf32> -> vector<16x256xf32>
    %c1_41 = arith.constant 1 : index
    %c0_42 = arith.constant 0 : index
    %c0_43 = arith.constant 0 : index
    %99 = vector.load %arg8[%c1_41, %c0_42, %c0_43] : memref<6x1x256xf32, #tpu.memory_space<vmem>>, vector<1x1x256xf32>
    %100 = vector.shape_cast %99 : vector<1x1x256xf32> to vector<1x256xf32>
    %101 = vector.broadcast %100 : vector<1x256xf32> to vector<16x256xf32>
    %102 = arith.mulf %98, %101 : vector<16x256xf32>
    %c1_44 = arith.constant 1 : index
    %c0_45 = arith.constant 0 : index
    %c0_46 = arith.constant 0 : index
    %103 = vector.load %arg9[%c1_44, %c0_45, %c0_46] : memref<6x1x256xf32, #tpu.memory_space<vmem>>, vector<1x1x256xf32>
    %104 = vector.shape_cast %103 : vector<1x1x256xf32> to vector<1x256xf32>
    %105 = vector.broadcast %61 : vector<16x1xf32> to vector<16x256xf32>
    %106 = vector.broadcast %104 : vector<1x256xf32> to vector<16x256xf32>
    %107 = arith.mulf %105, %106 : vector<16x256xf32>
    %108 = arith.subf %102, %107 : vector<16x256xf32>
    %109 = arith.addf %57, %108 : vector<16x256xf32>
    %110 = vector.extract_strided_slice %3 {offsets = [0, 256], sizes = [16, 128], strides = [1, 1]} : vector<16x768xbf16> to vector<16x128xbf16>
    %111 = arith.extf %110 : vector<16x128xbf16> to vector<16x128xf32>
    %cst_47 = arith.constant dense<0.000000e+00> : vector<16xf32>
    %112 = vector.multi_reduction <add>, %111, %cst_47 [1] : vector<16x128xf32> to vector<16xf32>
    %113 = vector.shape_cast %112 : vector<16xf32> to vector<16x1xf32>
    %c32 = arith.constant 32 : index
    %c0_48 = arith.constant 0 : index
    %114 = vector.load %arg4[%c32, %c0_48] : memref<96x256xi32, #tpu.memory_space<vmem>>, vector<16x256xi32>
    %115 = tpu.iota {dimensions = array<i32: 1>} : vector<1x8x1xi32>
    %c4_i32_49 = arith.constant 4 : i32
    %116 = vector.broadcast %c4_i32_49 : i32 to vector<1x8x1xi32>
    %117 = arith.muli %115, %116 : vector<1x8x1xi32>
    %118 = vector.shape_cast %114 : vector<16x256xi32> to vector<16x1x256xi32>
    %119 = vector.broadcast %118 : vector<16x1x256xi32> to vector<16x8x256xi32>
    %120 = vector.broadcast %117 : vector<1x8x1xi32> to vector<16x8x256xi32>
    %121 = arith.shrsi %119, %120 : vector<16x8x256xi32>
    %c15_i32_50 = arith.constant 15 : i32
    %122 = vector.broadcast %c15_i32_50 : i32 to vector<16x8x256xi32>
    %123 = arith.andi %121, %122 : vector<16x8x256xi32>
    %124 = vector.shape_cast %123 : vector<16x8x256xi32> to vector<128x256xi32>
    %125 = arith.sitofp %124 : vector<128x256xi32> to vector<128x256xbf16>
    %cst_51 = arith.constant dense<0.000000e+00> : vector<16x256xf32>
    %126 = tpu.matmul %110, %125, %cst_51 {dimension_numbers = #tpu.dot_dimension_numbers<[1], [0], [0], [1], [0, 0, 1, 1], [], []>} : vector<16x128xbf16>, vector<128x256xbf16>, vector<16x256xf32> -> vector<16x256xf32>
    %c2 = arith.constant 2 : index
    %c0_52 = arith.constant 0 : index
    %c0_53 = arith.constant 0 : index
    %127 = vector.load %arg5[%c2, %c0_52, %c0_53] : memref<6x1x256xf32, #tpu.memory_space<vmem>>, vector<1x1x256xf32>
    %128 = vector.shape_cast %127 : vector<1x1x256xf32> to vector<1x256xf32>
    %129 = vector.broadcast %128 : vector<1x256xf32> to vector<16x256xf32>
    %130 = arith.mulf %126, %129 : vector<16x256xf32>
    %c2_54 = arith.constant 2 : index
    %c0_55 = arith.constant 0 : index
    %c0_56 = arith.constant 0 : index
    %131 = vector.load %arg6[%c2_54, %c0_55, %c0_56] : memref<6x1x256xf32, #tpu.memory_space<vmem>>, vector<1x1x256xf32>
    %132 = vector.shape_cast %131 : vector<1x1x256xf32> to vector<1x256xf32>
    %133 = vector.broadcast %113 : vector<16x1xf32> to vector<16x256xf32>
    %134 = vector.broadcast %132 : vector<1x256xf32> to vector<16x256xf32>
    %135 = arith.mulf %133, %134 : vector<16x256xf32>
    %136 = arith.subf %130, %135 : vector<16x256xf32>
    %137 = arith.addf %85, %136 : vector<16x256xf32>
    %c32_57 = arith.constant 32 : index
    %c0_58 = arith.constant 0 : index
    %138 = vector.load %arg7[%c32_57, %c0_58] : memref<96x256xi32, #tpu.memory_space<vmem>>, vector<16x256xi32>
    %139 = tpu.iota {dimensions = array<i32: 1>} : vector<1x8x1xi32>
    %c4_i32_59 = arith.constant 4 : i32
    %140 = vector.broadcast %c4_i32_59 : i32 to vector<1x8x1xi32>
    %141 = arith.muli %139, %140 : vector<1x8x1xi32>
    %142 = vector.shape_cast %138 : vector<16x256xi32> to vector<16x1x256xi32>
    %143 = vector.broadcast %142 : vector<16x1x256xi32> to vector<16x8x256xi32>
    %144 = vector.broadcast %141 : vector<1x8x1xi32> to vector<16x8x256xi32>
    %145 = arith.shrsi %143, %144 : vector<16x8x256xi32>
    %c15_i32_60 = arith.constant 15 : i32
    %146 = vector.broadcast %c15_i32_60 : i32 to vector<16x8x256xi32>
    %147 = arith.andi %145, %146 : vector<16x8x256xi32>
    %148 = vector.shape_cast %147 : vector<16x8x256xi32> to vector<128x256xi32>
    %149 = arith.sitofp %148 : vector<128x256xi32> to vector<128x256xbf16>
    %cst_61 = arith.constant dense<0.000000e+00> : vector<16x256xf32>
    %150 = tpu.matmul %110, %149, %cst_61 {dimension_numbers = #tpu.dot_dimension_numbers<[1], [0], [0], [1], [0, 0, 1, 1], [], []>} : vector<16x128xbf16>, vector<128x256xbf16>, vector<16x256xf32> -> vector<16x256xf32>
    %c2_62 = arith.constant 2 : index
    %c0_63 = arith.constant 0 : index
    %c0_64 = arith.constant 0 : index
    %151 = vector.load %arg8[%c2_62, %c0_63, %c0_64] : memref<6x1x256xf32, #tpu.memory_space<vmem>>, vector<1x1x256xf32>
    %152 = vector.shape_cast %151 : vector<1x1x256xf32> to vector<1x256xf32>
    %153 = vector.broadcast %152 : vector<1x256xf32> to vector<16x256xf32>
    %154 = arith.mulf %150, %153 : vector<16x256xf32>
    %c2_65 = arith.constant 2 : index
    %c0_66 = arith.constant 0 : index
    %c0_67 = arith.constant 0 : index
    %155 = vector.load %arg9[%c2_65, %c0_66, %c0_67] : memref<6x1x256xf32, #tpu.memory_space<vmem>>, vector<1x1x256xf32>
    %156 = vector.shape_cast %155 : vector<1x1x256xf32> to vector<1x256xf32>
    %157 = vector.broadcast %113 : vector<16x1xf32> to vector<16x256xf32>
    %158 = vector.broadcast %156 : vector<1x256xf32> to vector<16x256xf32>
    %159 = arith.mulf %157, %158 : vector<16x256xf32>
    %160 = arith.subf %154, %159 : vector<16x256xf32>
    %161 = arith.addf %109, %160 : vector<16x256xf32>
    %162 = vector.extract_strided_slice %3 {offsets = [0, 384], sizes = [16, 128], strides = [1, 1]} : vector<16x768xbf16> to vector<16x128xbf16>
    %163 = arith.extf %162 : vector<16x128xbf16> to vector<16x128xf32>
    %cst_68 = arith.constant dense<0.000000e+00> : vector<16xf32>
    %164 = vector.multi_reduction <add>, %163, %cst_68 [1] : vector<16x128xf32> to vector<16xf32>
    %165 = vector.shape_cast %164 : vector<16xf32> to vector<16x1xf32>
    %c48 = arith.constant 48 : index
    %c0_69 = arith.constant 0 : index
    %166 = vector.load %arg4[%c48, %c0_69] : memref<96x256xi32, #tpu.memory_space<vmem>>, vector<16x256xi32>
    %167 = tpu.iota {dimensions = array<i32: 1>} : vector<1x8x1xi32>
    %c4_i32_70 = arith.constant 4 : i32
    %168 = vector.broadcast %c4_i32_70 : i32 to vector<1x8x1xi32>
    %169 = arith.muli %167, %168 : vector<1x8x1xi32>
    %170 = vector.shape_cast %166 : vector<16x256xi32> to vector<16x1x256xi32>
    %171 = vector.broadcast %170 : vector<16x1x256xi32> to vector<16x8x256xi32>
    %172 = vector.broadcast %169 : vector<1x8x1xi32> to vector<16x8x256xi32>
    %173 = arith.shrsi %171, %172 : vector<16x8x256xi32>
    %c15_i32_71 = arith.constant 15 : i32
    %174 = vector.broadcast %c15_i32_71 : i32 to vector<16x8x256xi32>
    %175 = arith.andi %173, %174 : vector<16x8x256xi32>
    %176 = vector.shape_cast %175 : vector<16x8x256xi32> to vector<128x256xi32>
    %177 = arith.sitofp %176 : vector<128x256xi32> to vector<128x256xbf16>
    %cst_72 = arith.constant dense<0.000000e+00> : vector<16x256xf32>
    %178 = tpu.matmul %162, %177, %cst_72 {dimension_numbers = #tpu.dot_dimension_numbers<[1], [0], [0], [1], [0, 0, 1, 1], [], []>} : vector<16x128xbf16>, vector<128x256xbf16>, vector<16x256xf32> -> vector<16x256xf32>
    %c3 = arith.constant 3 : index
    %c0_73 = arith.constant 0 : index
    %c0_74 = arith.constant 0 : index
    %179 = vector.load %arg5[%c3, %c0_73, %c0_74] : memref<6x1x256xf32, #tpu.memory_space<vmem>>, vector<1x1x256xf32>
    %180 = vector.shape_cast %179 : vector<1x1x256xf32> to vector<1x256xf32>
    %181 = vector.broadcast %180 : vector<1x256xf32> to vector<16x256xf32>
    %182 = arith.mulf %178, %181 : vector<16x256xf32>
    %c3_75 = arith.constant 3 : index
    %c0_76 = arith.constant 0 : index
    %c0_77 = arith.constant 0 : index
    %183 = vector.load %arg6[%c3_75, %c0_76, %c0_77] : memref<6x1x256xf32, #tpu.memory_space<vmem>>, vector<1x1x256xf32>
    %184 = vector.shape_cast %183 : vector<1x1x256xf32> to vector<1x256xf32>
    %185 = vector.broadcast %165 : vector<16x1xf32> to vector<16x256xf32>
    %186 = vector.broadcast %184 : vector<1x256xf32> to vector<16x256xf32>
    %187 = arith.mulf %185, %186 : vector<16x256xf32>
    %188 = arith.subf %182, %187 : vector<16x256xf32>
    %189 = arith.addf %137, %188 : vector<16x256xf32>
    %c48_78 = arith.constant 48 : index
    %c0_79 = arith.constant 0 : index
    %190 = vector.load %arg7[%c48_78, %c0_79] : memref<96x256xi32, #tpu.memory_space<vmem>>, vector<16x256xi32>
    %191 = tpu.iota {dimensions = array<i32: 1>} : vector<1x8x1xi32>
    %c4_i32_80 = arith.constant 4 : i32
    %192 = vector.broadcast %c4_i32_80 : i32 to vector<1x8x1xi32>
    %193 = arith.muli %191, %192 : vector<1x8x1xi32>
    %194 = vector.shape_cast %190 : vector<16x256xi32> to vector<16x1x256xi32>
    %195 = vector.broadcast %194 : vector<16x1x256xi32> to vector<16x8x256xi32>
    %196 = vector.broadcast %193 : vector<1x8x1xi32> to vector<16x8x256xi32>
    %197 = arith.shrsi %195, %196 : vector<16x8x256xi32>
    %c15_i32_81 = arith.constant 15 : i32
    %198 = vector.broadcast %c15_i32_81 : i32 to vector<16x8x256xi32>
    %199 = arith.andi %197, %198 : vector<16x8x256xi32>
    %200 = vector.shape_cast %199 : vector<16x8x256xi32> to vector<128x256xi32>
    %201 = arith.sitofp %200 : vector<128x256xi32> to vector<128x256xbf16>
    %cst_82 = arith.constant dense<0.000000e+00> : vector<16x256xf32>
    %202 = tpu.matmul %162, %201, %cst_82 {dimension_numbers = #tpu.dot_dimension_numbers<[1], [0], [0], [1], [0, 0, 1, 1], [], []>} : vector<16x128xbf16>, vector<128x256xbf16>, vector<16x256xf32> -> vector<16x256xf32>
    %c3_83 = arith.constant 3 : index
    %c0_84 = arith.constant 0 : index
    %c0_85 = arith.constant 0 : index
    %203 = vector.load %arg8[%c3_83, %c0_84, %c0_85] : memref<6x1x256xf32, #tpu.memory_space<vmem>>, vector<1x1x256xf32>
    %204 = vector.shape_cast %203 : vector<1x1x256xf32> to vector<1x256xf32>
    %205 = vector.broadcast %204 : vector<1x256xf32> to vector<16x256xf32>
    %206 = arith.mulf %202, %205 : vector<16x256xf32>
    %c3_86 = arith.constant 3 : index
    %c0_87 = arith.constant 0 : index
    %c0_88 = arith.constant 0 : index
    %207 = vector.load %arg9[%c3_86, %c0_87, %c0_88] : memref<6x1x256xf32, #tpu.memory_space<vmem>>, vector<1x1x256xf32>
    %208 = vector.shape_cast %207 : vector<1x1x256xf32> to vector<1x256xf32>
    %209 = vector.broadcast %165 : vector<16x1xf32> to vector<16x256xf32>
    %210 = vector.broadcast %208 : vector<1x256xf32> to vector<16x256xf32>
    %211 = arith.mulf %209, %210 : vector<16x256xf32>
    %212 = arith.subf %206, %211 : vector<16x256xf32>
    %213 = arith.addf %161, %212 : vector<16x256xf32>
    %214 = vector.extract_strided_slice %3 {offsets = [0, 512], sizes = [16, 128], strides = [1, 1]} : vector<16x768xbf16> to vector<16x128xbf16>
    %215 = arith.extf %214 : vector<16x128xbf16> to vector<16x128xf32>
    %cst_89 = arith.constant dense<0.000000e+00> : vector<16xf32>
    %216 = vector.multi_reduction <add>, %215, %cst_89 [1] : vector<16x128xf32> to vector<16xf32>
    %217 = vector.shape_cast %216 : vector<16xf32> to vector<16x1xf32>
    %c64 = arith.constant 64 : index
    %c0_90 = arith.constant 0 : index
    %218 = vector.load %arg4[%c64, %c0_90] : memref<96x256xi32, #tpu.memory_space<vmem>>, vector<16x256xi32>
    %219 = tpu.iota {dimensions = array<i32: 1>} : vector<1x8x1xi32>
    %c4_i32_91 = arith.constant 4 : i32
    %220 = vector.broadcast %c4_i32_91 : i32 to vector<1x8x1xi32>
    %221 = arith.muli %219, %220 : vector<1x8x1xi32>
    %222 = vector.shape_cast %218 : vector<16x256xi32> to vector<16x1x256xi32>
    %223 = vector.broadcast %222 : vector<16x1x256xi32> to vector<16x8x256xi32>
    %224 = vector.broadcast %221 : vector<1x8x1xi32> to vector<16x8x256xi32>
    %225 = arith.shrsi %223, %224 : vector<16x8x256xi32>
    %c15_i32_92 = arith.constant 15 : i32
    %226 = vector.broadcast %c15_i32_92 : i32 to vector<16x8x256xi32>
    %227 = arith.andi %225, %226 : vector<16x8x256xi32>
    %228 = vector.shape_cast %227 : vector<16x8x256xi32> to vector<128x256xi32>
    %229 = arith.sitofp %228 : vector<128x256xi32> to vector<128x256xbf16>
    %cst_93 = arith.constant dense<0.000000e+00> : vector<16x256xf32>
    %230 = tpu.matmul %214, %229, %cst_93 {dimension_numbers = #tpu.dot_dimension_numbers<[1], [0], [0], [1], [0, 0, 1, 1], [], []>} : vector<16x128xbf16>, vector<128x256xbf16>, vector<16x256xf32> -> vector<16x256xf32>
    %c4 = arith.constant 4 : index
    %c0_94 = arith.constant 0 : index
    %c0_95 = arith.constant 0 : index
    %231 = vector.load %arg5[%c4, %c0_94, %c0_95] : memref<6x1x256xf32, #tpu.memory_space<vmem>>, vector<1x1x256xf32>
    %232 = vector.shape_cast %231 : vector<1x1x256xf32> to vector<1x256xf32>
    %233 = vector.broadcast %232 : vector<1x256xf32> to vector<16x256xf32>
    %234 = arith.mulf %230, %233 : vector<16x256xf32>
    %c4_96 = arith.constant 4 : index
    %c0_97 = arith.constant 0 : index
    %c0_98 = arith.constant 0 : index
    %235 = vector.load %arg6[%c4_96, %c0_97, %c0_98] : memref<6x1x256xf32, #tpu.memory_space<vmem>>, vector<1x1x256xf32>
    %236 = vector.shape_cast %235 : vector<1x1x256xf32> to vector<1x256xf32>
    %237 = vector.broadcast %217 : vector<16x1xf32> to vector<16x256xf32>
    %238 = vector.broadcast %236 : vector<1x256xf32> to vector<16x256xf32>
    %239 = arith.mulf %237, %238 : vector<16x256xf32>
    %240 = arith.subf %234, %239 : vector<16x256xf32>
    %241 = arith.addf %189, %240 : vector<16x256xf32>
    %c64_99 = arith.constant 64 : index
    %c0_100 = arith.constant 0 : index
    %242 = vector.load %arg7[%c64_99, %c0_100] : memref<96x256xi32, #tpu.memory_space<vmem>>, vector<16x256xi32>
    %243 = tpu.iota {dimensions = array<i32: 1>} : vector<1x8x1xi32>
    %c4_i32_101 = arith.constant 4 : i32
    %244 = vector.broadcast %c4_i32_101 : i32 to vector<1x8x1xi32>
    %245 = arith.muli %243, %244 : vector<1x8x1xi32>
    %246 = vector.shape_cast %242 : vector<16x256xi32> to vector<16x1x256xi32>
    %247 = vector.broadcast %246 : vector<16x1x256xi32> to vector<16x8x256xi32>
    %248 = vector.broadcast %245 : vector<1x8x1xi32> to vector<16x8x256xi32>
    %249 = arith.shrsi %247, %248 : vector<16x8x256xi32>
    %c15_i32_102 = arith.constant 15 : i32
    %250 = vector.broadcast %c15_i32_102 : i32 to vector<16x8x256xi32>
    %251 = arith.andi %249, %250 : vector<16x8x256xi32>
    %252 = vector.shape_cast %251 : vector<16x8x256xi32> to vector<128x256xi32>
    %253 = arith.sitofp %252 : vector<128x256xi32> to vector<128x256xbf16>
    %cst_103 = arith.constant dense<0.000000e+00> : vector<16x256xf32>
    %254 = tpu.matmul %214, %253, %cst_103 {dimension_numbers = #tpu.dot_dimension_numbers<[1], [0], [0], [1], [0, 0, 1, 1], [], []>} : vector<16x128xbf16>, vector<128x256xbf16>, vector<16x256xf32> -> vector<16x256xf32>
    %c4_104 = arith.constant 4 : index
    %c0_105 = arith.constant 0 : index
    %c0_106 = arith.constant 0 : index
    %255 = vector.load %arg8[%c4_104, %c0_105, %c0_106] : memref<6x1x256xf32, #tpu.memory_space<vmem>>, vector<1x1x256xf32>
    %256 = vector.shape_cast %255 : vector<1x1x256xf32> to vector<1x256xf32>
    %257 = vector.broadcast %256 : vector<1x256xf32> to vector<16x256xf32>
    %258 = arith.mulf %254, %257 : vector<16x256xf32>
    %c4_107 = arith.constant 4 : index
    %c0_108 = arith.constant 0 : index
    %c0_109 = arith.constant 0 : index
    %259 = vector.load %arg9[%c4_107, %c0_108, %c0_109] : memref<6x1x256xf32, #tpu.memory_space<vmem>>, vector<1x1x256xf32>
    %260 = vector.shape_cast %259 : vector<1x1x256xf32> to vector<1x256xf32>
    %261 = vector.broadcast %217 : vector<16x1xf32> to vector<16x256xf32>
    %262 = vector.broadcast %260 : vector<1x256xf32> to vector<16x256xf32>
    %263 = arith.mulf %261, %262 : vector<16x256xf32>
    %264 = arith.subf %258, %263 : vector<16x256xf32>
    %265 = arith.addf %213, %264 : vector<16x256xf32>
    %266 = vector.extract_strided_slice %3 {offsets = [0, 640], sizes = [16, 128], strides = [1, 1]} : vector<16x768xbf16> to vector<16x128xbf16>
    %267 = arith.extf %266 : vector<16x128xbf16> to vector<16x128xf32>
    %cst_110 = arith.constant dense<0.000000e+00> : vector<16xf32>
    %268 = vector.multi_reduction <add>, %267, %cst_110 [1] : vector<16x128xf32> to vector<16xf32>
    %269 = vector.shape_cast %268 : vector<16xf32> to vector<16x1xf32>
    %c80 = arith.constant 80 : index
    %c0_111 = arith.constant 0 : index
    %270 = vector.load %arg4[%c80, %c0_111] : memref<96x256xi32, #tpu.memory_space<vmem>>, vector<16x256xi32>
    %271 = tpu.iota {dimensions = array<i32: 1>} : vector<1x8x1xi32>
    %c4_i32_112 = arith.constant 4 : i32
    %272 = vector.broadcast %c4_i32_112 : i32 to vector<1x8x1xi32>
    %273 = arith.muli %271, %272 : vector<1x8x1xi32>
    %274 = vector.shape_cast %270 : vector<16x256xi32> to vector<16x1x256xi32>
    %275 = vector.broadcast %274 : vector<16x1x256xi32> to vector<16x8x256xi32>
    %276 = vector.broadcast %273 : vector<1x8x1xi32> to vector<16x8x256xi32>
    %277 = arith.shrsi %275, %276 : vector<16x8x256xi32>
    %c15_i32_113 = arith.constant 15 : i32
    %278 = vector.broadcast %c15_i32_113 : i32 to vector<16x8x256xi32>
    %279 = arith.andi %277, %278 : vector<16x8x256xi32>
    %280 = vector.shape_cast %279 : vector<16x8x256xi32> to vector<128x256xi32>
    %281 = arith.sitofp %280 : vector<128x256xi32> to vector<128x256xbf16>
    %cst_114 = arith.constant dense<0.000000e+00> : vector<16x256xf32>
    %282 = tpu.matmul %266, %281, %cst_114 {dimension_numbers = #tpu.dot_dimension_numbers<[1], [0], [0], [1], [0, 0, 1, 1], [], []>} : vector<16x128xbf16>, vector<128x256xbf16>, vector<16x256xf32> -> vector<16x256xf32>
    %c5 = arith.constant 5 : index
    %c0_115 = arith.constant 0 : index
    %c0_116 = arith.constant 0 : index
    %283 = vector.load %arg5[%c5, %c0_115, %c0_116] : memref<6x1x256xf32, #tpu.memory_space<vmem>>, vector<1x1x256xf32>
    %284 = vector.shape_cast %283 : vector<1x1x256xf32> to vector<1x256xf32>
    %285 = vector.broadcast %284 : vector<1x256xf32> to vector<16x256xf32>
    %286 = arith.mulf %282, %285 : vector<16x256xf32>
    %c5_117 = arith.constant 5 : index
    %c0_118 = arith.constant 0 : index
    %c0_119 = arith.constant 0 : index
    %287 = vector.load %arg6[%c5_117, %c0_118, %c0_119] : memref<6x1x256xf32, #tpu.memory_space<vmem>>, vector<1x1x256xf32>
    %288 = vector.shape_cast %287 : vector<1x1x256xf32> to vector<1x256xf32>
    %289 = vector.broadcast %269 : vector<16x1xf32> to vector<16x256xf32>
    %290 = vector.broadcast %288 : vector<1x256xf32> to vector<16x256xf32>
    %291 = arith.mulf %289, %290 : vector<16x256xf32>
    %292 = arith.subf %286, %291 : vector<16x256xf32>
    %293 = arith.addf %241, %292 : vector<16x256xf32>
    %c80_120 = arith.constant 80 : index
    %c0_121 = arith.constant 0 : index
    %294 = vector.load %arg7[%c80_120, %c0_121] : memref<96x256xi32, #tpu.memory_space<vmem>>, vector<16x256xi32>
    %295 = tpu.iota {dimensions = array<i32: 1>} : vector<1x8x1xi32>
    %c4_i32_122 = arith.constant 4 : i32
    %296 = vector.broadcast %c4_i32_122 : i32 to vector<1x8x1xi32>
    %297 = arith.muli %295, %296 : vector<1x8x1xi32>
    %298 = vector.shape_cast %294 : vector<16x256xi32> to vector<16x1x256xi32>
    %299 = vector.broadcast %298 : vector<16x1x256xi32> to vector<16x8x256xi32>
    %300 = vector.broadcast %297 : vector<1x8x1xi32> to vector<16x8x256xi32>
    %301 = arith.shrsi %299, %300 : vector<16x8x256xi32>
    %c15_i32_123 = arith.constant 15 : i32
    %302 = vector.broadcast %c15_i32_123 : i32 to vector<16x8x256xi32>
    %303 = arith.andi %301, %302 : vector<16x8x256xi32>
    %304 = vector.shape_cast %303 : vector<16x8x256xi32> to vector<128x256xi32>
    %305 = arith.sitofp %304 : vector<128x256xi32> to vector<128x256xbf16>
    %cst_124 = arith.constant dense<0.000000e+00> : vector<16x256xf32>
    %306 = tpu.matmul %266, %305, %cst_124 {dimension_numbers = #tpu.dot_dimension_numbers<[1], [0], [0], [1], [0, 0, 1, 1], [], []>} : vector<16x128xbf16>, vector<128x256xbf16>, vector<16x256xf32> -> vector<16x256xf32>
    %c5_125 = arith.constant 5 : index
    %c0_126 = arith.constant 0 : index
    %c0_127 = arith.constant 0 : index
    %307 = vector.load %arg8[%c5_125, %c0_126, %c0_127] : memref<6x1x256xf32, #tpu.memory_space<vmem>>, vector<1x1x256xf32>
    %308 = vector.shape_cast %307 : vector<1x1x256xf32> to vector<1x256xf32>
    %309 = vector.broadcast %308 : vector<1x256xf32> to vector<16x256xf32>
    %310 = arith.mulf %306, %309 : vector<16x256xf32>
    %c5_128 = arith.constant 5 : index
    %c0_129 = arith.constant 0 : index
    %c0_130 = arith.constant 0 : index
    %311 = vector.load %arg9[%c5_128, %c0_129, %c0_130] : memref<6x1x256xf32, #tpu.memory_space<vmem>>, vector<1x1x256xf32>
    %312 = vector.shape_cast %311 : vector<1x1x256xf32> to vector<1x256xf32>
    %313 = vector.broadcast %269 : vector<16x1xf32> to vector<16x256xf32>
    %314 = vector.broadcast %312 : vector<1x256xf32> to vector<16x256xf32>
    %315 = arith.mulf %313, %314 : vector<16x256xf32>
    %316 = arith.subf %310, %315 : vector<16x256xf32>
    %317 = arith.addf %265, %316 : vector<16x256xf32>
    %c0_131 = arith.constant 0 : index
    %c0_132 = arith.constant 0 : index
    %318 = vector.load %arg11[%c0_131, %c0_132] : memref<16x256xf32, #tpu.memory_space<vmem>>, vector<16x256xf32>
    tpu.vector_store %arg11[%c0_131, %c0_132], %293 {strides = array<i32>} : memref<16x256xf32, #tpu.memory_space<vmem>>, vector<16x256xf32>,
    %c0_133 = arith.constant 0 : index
    %c0_134 = arith.constant 0 : index
    %319 = vector.load %arg12[%c0_133, %c0_134] : memref<16x256xf32, #tpu.memory_space<vmem>>, vector<16x256xf32>
    tpu.vector_store %arg12[%c0_133, %c0_134], %317 {strides = array<i32>} : memref<16x256xf32, #tpu.memory_space<vmem>>, vector<16x256xf32>,
    %c1_i32 = arith.constant 1 : i32
    %320 = arith.cmpi eq, %arg2, %c1_i32 : i32
    %321 = arith.extui %320 : i1 to i32
    %c0_i32_135 = arith.constant 0 : i32
    %322 = arith.cmpi ne, %321, %c0_i32_135 : i32
    scf.if %322 {
      %c0_136 = arith.constant 0 : index
      %c0_137 = arith.constant 0 : index
      %323 = vector.load %arg11[%c0_136, %c0_137] : memref<16x256xf32, #tpu.memory_space<vmem>>, vector<16x256xf32>
      %324 = arith.negf %323 : vector<16x256xf32>
      %325 = math.exp %324 : vector<16x256xf32>
      %cst_138 = arith.constant 1.000000e+00 : f32
      %326 = vector.broadcast %cst_138 : f32 to vector<16x256xf32>
      %327 = arith.addf %326, %325 : vector<16x256xf32>
      %328 = arith.divf %326, %327 : vector<16x256xf32>
      %329 = arith.mulf %323, %328 : vector<16x256xf32>
      %c0_139 = arith.constant 0 : index
      %c0_140 = arith.constant 0 : index
      %330 = vector.load %arg12[%c0_139, %c0_140] : memref<16x256xf32, #tpu.memory_space<vmem>>, vector<16x256xf32>
      %331 = arith.mulf %329, %330 : vector<16x256xf32>
      %332 = arith.truncf %331 : vector<16x256xf32> to vector<16x256xbf16>
      %c0_141 = arith.constant 0 : index
      %c0_142 = arith.constant 0 : index
      %333 = vector.load %arg10[%c0_141, %c0_142] : memref<16x256xbf16, #tpu.memory_space<vmem>>, vector<16x256xbf16>
      tpu.vector_store %arg10[%c0_141, %c0_142], %332 {strides = array<i32>} : memref<16x256xbf16, #tpu.memory_space<vmem>>, vector<16x256xbf16>,
    } else {
    }
    return
  }
  func.func @transform_0(%arg0: i32, %arg1: i32, %arg2: i32) -> (i32, i32) {
    %c0_i32 = arith.constant 0 : i32
    return %arg0, %arg2 : i32, i32
  }
  func.func @transform_1(%arg0: i32, %arg1: i32, %arg2: i32) -> (i32, i32) {
    %c0_i32 = arith.constant 0 : i32
    return %arg2, %arg1 : i32, i32
  }
  func.func @transform_2(%arg0: i32, %arg1: i32, %arg2: i32) -> (i32, i32, i32) {
    %c0_i32 = arith.constant 0 : i32
    %c0_i32_0 = arith.constant 0 : i32
    return %arg2, %c0_i32, %arg1 : i32, i32, i32
  }
  func.func @transform_3(%arg0: i32, %arg1: i32, %arg2: i32) -> (i32, i32, i32) {
    %c0_i32 = arith.constant 0 : i32
    %c0_i32_0 = arith.constant 0 : i32
    return %arg2, %c0_i32, %arg1 : i32, i32, i32
  }
  func.func @transform_4(%arg0: i32, %arg1: i32, %arg2: i32) -> (i32, i32) {
    %c0_i32 = arith.constant 0 : i32
    return %arg2, %arg1 : i32, i32
  }
  func.func @transform_5(%arg0: i32, %arg1: i32, %arg2: i32) -> (i32, i32, i32) {
    %c0_i32 = arith.constant 0 : i32
    %c0_i32_0 = arith.constant 0 : i32
    return %arg2, %c0_i32, %arg1 : i32, i32, i32
  }
  func.func @transform_6(%arg0: i32, %arg1: i32, %arg2: i32) -> (i32, i32, i32) {
    %c0_i32 = arith.constant 0 : i32
    %c0_i32_0 = arith.constant 0 : i32
    return %arg2, %c0_i32, %arg1 : i32, i32, i32
  }
  func.func @transform_7(%arg0: i32, %arg1: i32, %arg2: i32) -> (i32, i32) {
    %c0_i32 = arith.constant 0 : i32
    return %arg0, %arg1 : i32, i32
  }
}

</mosaic_0001>

<llo_original>
// kernel: tpu_custom_call.1
$region0: #{tpu_custom_call.1}
  #allocation0 [shape = 'u32[]', space=smem, size = 0x4, offset = 0x4, fixed_abs, tag = 'smem constant byte address 0x4 - core index']
  #allocation1 [shape = 'u32[144,128]{1,0:T(1,128)}', space=vmem, size = 0x12000, scoped, tag = 'internal scratch']
  #allocation2 [shape = 'f32[16,256]{1,0:T(8,128)}', space=vmem, size = 0x4000, scoped, tag = 'scratch operand']
  #allocation3 [shape = 'f32[16,256]{1,0:T(8,128)}', space=vmem, size = 0x4000, scoped, tag = 'scratch operand']
  %s0 = inlined_call_operand.hbm [shape: bf16[16,1536], index: 0, kind: input, shape index: {}]
  %s1 = inlined_call_operand.hbm [shape: s32[192,512], index: 1, kind: input, shape index: {}]
  %s2 = inlined_call_operand.hbm [shape: f32[12,1,512], index: 2, kind: input, shape index: {}]
  %s3 = inlined_call_operand.hbm [shape: f32[12,1,512], index: 3, kind: input, shape index: {}]
  %s4 = inlined_call_operand.hbm [shape: s32[192,512], index: 4, kind: input, shape index: {}]
  %s5 = inlined_call_operand.hbm [shape: f32[12,1,512], index: 5, kind: input, shape index: {}]
  %s6 = inlined_call_operand.hbm [shape: f32[12,1,512], index: 6, kind: input, shape index: {}]
  %s7 = inlined_call_operand.hbm [shape: bf16[16,512], index: 7, kind: output, shape index: {}]
  %s8 = sld [smem:[#allocation0]]
  $region97: #{tpu_custom_call.1} parent=0
    _
  %s10 = ssub.s32 1, %s8
  %s11 = scalar_select 0, %s10, %s8
  $region1: #{tpu_custom_call.1} parent=0
    #allocation4 [shape = 'u8[49152]{0}', space=vmem, size = 0xc000, scoped, tag = 'input window, operand 0']
    #allocation5 [shape = 's32[2]{0}', space=sflag, size = 0x8, scoped, tag = 'scoped memory for tpu_custom_call.1']
    #allocation6 [shape = 's32[2]{0}', space=sflag, size = 0x8, scoped, tag = 'scoped memory for tpu_custom_call.1']
    #allocation7 [shape = 'u8[196608]{0}', space=vmem, size = 0x30000, scoped, tag = 'input window, operand 1']
    #allocation8 [shape = 's32[2]{0}', space=sflag, size = 0x8, scoped, tag = 'scoped memory for tpu_custom_call.1']
    #allocation9 [shape = 'u8[12288]{0}', space=vmem, size = 0x3000, scoped, tag = 'input window, operand 2']
    #allocation10 [shape = 'u8[12288]{0}', space=vmem, size = 0x3000, scoped, tag = 'input window, operand 3']
    #allocation11 [shape = 's32[2]{0}', space=sflag, size = 0x8, scoped, tag = 'scoped memory for tpu_custom_call.1']
    #allocation12 [shape = 'u8[196608]{0}', space=vmem, size = 0x30000, scoped, tag = 'input window, operand 4']
    #allocation13 [shape = 'u8[12288]{0}', space=vmem, size = 0x3000, scoped, tag = 'input window, operand 5']
    #allocation14 [shape = 's32[2]{0}', space=sflag, size = 0x8, scoped, tag = 'scoped memory for tpu_custom_call.1']
    #allocation15 [shape = 'u8[12288]{0}', space=vmem, size = 0x3000, scoped, tag = 'input window, operand 6']
    #allocation16 [shape = 'u8[16384]{0}', space=vmem, size = 0x4000, scoped, tag = 'output window, operand 0']
    %12 = vsyncpa [#allocation5], 0
    %s13 = scalar_lea.sflag [#allocation5], 1
    %14 = vsyncpa %s13, 0
    %15 = vsyncpa [#allocation8], 0
    %s16 = scalar_lea.sflag [#allocation8], 1
    %17 = vsyncpa %s16, 0
    %18 = vsyncpa [#allocation11], 0
    %s19 = scalar_lea.sflag [#allocation11], 1
    %20 = vsyncpa %s19, 0
    %21 = vsyncpa [#allocation14], 0
    %s22 = scalar_lea.sflag [#allocation14], 1
    %23 = vsyncpa %s22, 0
    %24 = vsyncpa [#allocation6], 0
    %s25 = scalar_lea.sflag [#allocation6], 1
    %26 = vsyncpa %s25, 0
    loop: start=0, step=1, limit=6
    $region2: #{tpu_custom_call.1} parent=1 // loop_pre_header
      _
    $region3: #{tpu_custom_call.1} parent=1 // loop_header
      %s28 = sphi 0, %s32
      %p29 = scmp.ge.s32.totalorder %s28, 6
      %s35 = sphi 0, %s54
      %s36 = sphi 0, %s50
      %s37 = sphi 0, %s46
      %s38 = sphi 0, %s35
      %s39 = sphi 0, %s36
      %s40 = sphi 0, %s37
      %s41 = sphi 0, %s38
      %s42 = sphi 0, %s39
      %s43 = sphi 0, %s40
      %s59 = sphi 0, %s61
      %s62 = sphi 0, %s59
      %s63 = sphi 0, %s62
      %s79 = sphi 0, %s63
      %s87 = sphi 0, %s89
      %s90 = sphi 0, %s87
      %s91 = sphi 0, %s90
      %s107 = sphi 0, %s91
      %s115 = sphi 0, %s117
      %s118 = sphi 0, %s115
      %s119 = sphi 0, %s118
      %s135 = sphi 0, %s119
      %s143 = sphi 0, %s145
      %s146 = sphi 0, %s143
      %s147 = sphi 0, %s146
      %s163 = sphi 0, %s147
      %s171 = sphi 0, %s173
      %s174 = sphi 0, %s171
      %s175 = sphi 0, %s174
      %s191 = sphi 0, %s175
      %s199 = sphi 0, %s201
      %s202 = sphi 0, %s199
      %s203 = sphi 0, %s202
      %s219 = sphi 0, %s203
      %s227 = sphi 0, %s229
      %s230 = sphi 0, %s227
      %s231 = sphi 0, %s230
      %s247 = sphi 0, %s231
      %s255 = sphi 0, %s257
      %s258 = sphi 0, %s255
      %s259 = sphi 0, %s258
      %s275 = sphi 0, %s259
    $region4: #{tpu_custom_call.1} parent=1 // loop_header_branch
      %31 = sbr.rel (%p29) target = $region8
    $region5: #{tpu_custom_call.1} parent=1 // loop_body
      %s33 = ssub.s32 %s28, 1
      %s34 = ssub.s32 %s28, 2
      %s44 = sadd.s32 1, %s37
      %p45 = scmp.ge.s32.totalorder %s44, 2
      %s46 = scalar_select %p45, 0, %s44
      %s47 = sadd.s32 1, %s36
      %s48 = scalar_select %p45, %s47, %s36
      %p49 = scmp.ge.s32.totalorder %s48, 2
      %s50 = scalar_select %p49, 0, %s48
      %s51 = sadd.s32 1, %s35
      %s52 = scalar_select %p49, %s51, %s35
      %p53 = scmp.ge.s32.totalorder %s52, 1
      %s54 = scalar_select %p53, 0, %s52
      %s55 = ssub.s32 %s35, %s54
      %s56 = ssub.s32 %s37, %s46
      %s57 = sor.u32 %s55, %s56
      %p58 = scmp.eq.s32.totalorder %s57, 0
      %s60 = sadd.s32 %s59, 1
      %s61 = scalar_select %p58, %s59, %s60
      %p64 = pneg %p58
      %p65 = scmp.eq.s32.totalorder %s28, 3
      %p66 = por %p64, %p65
      %p67 = scmp.ne.s32.totalorder %s59, %s62
      %p68 = scmp.eq.s32.totalorder %s28, 0
      %p69 = por %p67, %p68
      %p70 = scmp.ne.s32.totalorder %s59, %s62
      %p71 = scmp.eq.s32.totalorder %s33, 3
      %p72 = por %p70, %p71
      %p73 = scmp.ne.s32.totalorder %s62, %s63
      %p74 = scmp.eq.s32.totalorder %s33, 0
      %p75 = por %p73, %p74
      %p76 = scmp.ne.s32.totalorder %s62, %s63
      %p77 = scmp.eq.s32.totalorder %s34, 3
      %p78 = por %p76, %p77
      %p80 = scmp.ne.s32.totalorder %s63, %s79
      %p81 = scmp.eq.s32.totalorder %s34, 0
      %p82 = por %p80, %p81
      %s83 = ssub.s32 %s37, %s46
      %s84 = ssub.s32 %s36, %s50
      %s85 = sor.u32 %s83, %s84
      %p86 = scmp.eq.s32.totalorder %s85, 0
      %s88 = sadd.s32 %s87, 1
      %s89 = scalar_select %p86, %s87, %s88
      %p92 = pneg %p86
      %p93 = scmp.eq.s32.totalorder %s28, 3
      %p94 = por %p92, %p93
      %p95 = scmp.ne.s32.totalorder %s87, %s90
      %p96 = scmp.eq.s32.totalorder %s28, 0
      %p97 = por %p95, %p96
      %p98 = scmp.ne.s32.totalorder %s87, %s90
      %p99 = scmp.eq.s32.totalorder %s33, 3
      %p100 = por %p98, %p99
      %p101 = scmp.ne.s32.totalorder %s90, %s91
      %p102 = scmp.eq.s32.totalorder %s33, 0
      %p103 = por %p101, %p102
      %p104 = scmp.ne.s32.totalorder %s90, %s91
      %p105 = scmp.eq.s32.totalorder %s34, 3
      %p106 = por %p104, %p105
      %p108 = scmp.ne.s32.totalorder %s91, %s107
      %p109 = scmp.eq.s32.totalorder %s34, 0
      %p110 = por %p108, %p109
      %s111 = ssub.s32 %s37, %s46
      %s112 = ssub.s32 %s36, %s50
      %s113 = sor.u32 %s111, %s112
      %p114 = scmp.eq.s32.totalorder %s113, 0
      %s116 = sadd.s32 %s115, 1
      %s117 = scalar_select %p114, %s115, %s116
      %p120 = pneg %p114
      %p121 = scmp.eq.s32.totalorder %s28, 3
      %p122 = por %p120, %p121
      %p123 = scmp.ne.s32.totalorder %s115, %s118
      %p124 = scmp.eq.s32.totalorder %s28, 0
      %p125 = por %p123, %p124
      %p126 = scmp.ne.s32.totalorder %s115, %s118
      %p127 = scmp.eq.s32.totalorder %s33, 3
      %p128 = por %p126, %p127
      %p129 = scmp.ne.s32.totalorder %s118, %s119
      %p130 = scmp.eq.s32.totalorder %s33, 0
      %p131 = por %p129, %p130
      %p132 = scmp.ne.s32.totalorder %s118, %s119
      %p133 = scmp.eq.s32.totalorder %s34, 3
      %p134 = por %p132, %p133
      %p136 = scmp.ne.s32.totalorder %s119, %s135
      %p137 = scmp.eq.s32.totalorder %s34, 0
      %p138 = por %p136, %p137
      %s139 = ssub.s32 %s37, %s46
      %s140 = ssub.s32 %s36, %s50
      %s141 = sor.u32 %s139, %s140
      %p142 = scmp.eq.s32.totalorder %s141, 0
      %s144 = sadd.s32 %s143, 1
      %s145 = scalar_select %p142, %s143, %s144
      %p148 = pneg %p142
      %p149 = scmp.eq.s32.totalorder %s28, 3
      %p150 = por %p148, %p149
      %p151 = scmp.ne.s32.totalorder %s143, %s146
      %p152 = scmp.eq.s32.totalorder %s28, 0
      %p153 = por %p151, %p152
      %p154 = scmp.ne.s32.totalorder %s143, %s146
      %p155 = scmp.eq.s32.totalorder %s33, 3
      %p156 = por %p154, %p155
      %p157 = scmp.ne.s32.totalorder %s146, %s147
      %p158 = scmp.eq.s32.totalorder %s33, 0
      %p159 = por %p157, %p158
      %p160 = scmp.ne.s32.totalorder %s146, %s147
      %p161 = scmp.eq.s32.totalorder %s34, 3
      %p162 = por %p160, %p161
      %p164 = scmp.ne.s32.totalorder %s147, %s163
      %p165 = scmp.eq.s32.totalorder %s34, 0
      %p166 = por %p164, %p165
      %s167 = ssub.s32 %s37, %s46
      %s168 = ssub.s32 %s36, %s50
      %s169 = sor.u32 %s167, %s168
      %p170 = scmp.eq.s32.totalorder %s169, 0
      %s172 = sadd.s32 %s171, 1
      %s173 = scalar_select %p170, %s171, %s172
      %p176 = pneg %p170
      %p177 = scmp.eq.s32.totalorder %s28, 3
      %p178 = por %p176, %p177
      %p179 = scmp.ne.s32.totalorder %s171, %s174
      %p180 = scmp.eq.s32.totalorder %s28, 0
      %p181 = por %p179, %p180
      %p182 = scmp.ne.s32.totalorder %s171, %s174
      %p183 = scmp.eq.s32.totalorder %s33, 3
      %p184 = por %p182, %p183
      %p185 = scmp.ne.s32.totalorder %s174, %s175
      %p186 = scmp.eq.s32.totalorder %s33, 0
      %p187 = por %p185, %p186
      %p188 = scmp.ne.s32.totalorder %s174, %s175
      %p189 = scmp.eq.s32.totalorder %s34, 3
      %p190 = por %p188, %p189
      %p192 = scmp.ne.s32.totalorder %s175, %s191
      %p193 = scmp.eq.s32.totalorder %s34, 0
      %p194 = por %p192, %p193
      %s195 = ssub.s32 %s37, %s46
      %s196 = ssub.s32 %s36, %s50
      %s197 = sor.u32 %s195, %s196
      %p198 = scmp.eq.s32.totalorder %s197, 0
      %s200 = sadd.s32 %s199, 1
      %s201 = scalar_select %p198, %s199, %s200
      %p204 = pneg %p198
      %p205 = scmp.eq.s32.totalorder %s28, 3
      %p206 = por %p204, %p205
      %p207 = scmp.ne.s32.totalorder %s199, %s202
      %p208 = scmp.eq.s32.totalorder %s28, 0
      %p209 = por %p207, %p208
      %p210 = scmp.ne.s32.totalorder %s199, %s202
      %p211 = scmp.eq.s32.totalorder %s33, 3
      %p212 = por %p210, %p211
      %p213 = scmp.ne.s32.totalorder %s202, %s203
      %p214 = scmp.eq.s32.totalorder %s33, 0
      %p215 = por %p213, %p214
      %p216 = scmp.ne.s32.totalorder %s202, %s203
      %p217 = scmp.eq.s32.totalorder %s34, 3
      %p218 = por %p216, %p217
      %p220 = scmp.ne.s32.totalorder %s203, %s219
      %p221 = scmp.eq.s32.totalorder %s34, 0
      %p222 = por %p220, %p221
      %s223 = ssub.s32 %s37, %s46
      %s224 = ssub.s32 %s36, %s50
      %s225 = sor.u32 %s223, %s224
      %p226 = scmp.eq.s32.totalorder %s225, 0
      %s228 = sadd.s32 %s227, 1
      %s229 = scalar_select %p226, %s227, %s228
      %p232 = pneg %p226
      %p233 = scmp.eq.s32.totalorder %s28, 3
      %p234 = por %p232, %p233
      %p235 = scmp.ne.s32.totalorder %s227, %s230
      %p236 = scmp.eq.s32.totalorder %s28, 0
      %p237 = por %p235, %p236
      %p238 = scmp.ne.s32.totalorder %s227, %s230
      %p239 = scmp.eq.s32.totalorder %s33, 3
      %p240 = por %p238, %p239
      %p241 = scmp.ne.s32.totalorder %s230, %s231
      %p242 = scmp.eq.s32.totalorder %s33, 0
      %p243 = por %p241, %p242
      %p244 = scmp.ne.s32.totalorder %s230, %s231
      %p245 = scmp.eq.s32.totalorder %s34, 3
      %p246 = por %p244, %p245
      %p248 = scmp.ne.s32.totalorder %s231, %s247
      %p249 = scmp.eq.s32.totalorder %s34, 0
      %p250 = por %p248, %p249
      %s251 = ssub.s32 %s35, %s54
      %s252 = ssub.s32 %s36, %s50
      %s253 = sor.u32 %s251, %s252
      %p254 = scmp.eq.s32.totalorder %s253, 0
      %s256 = sadd.s32 %s255, 1
      %s257 = scalar_select %p254, %s255, %s256
      %p260 = pneg %p254
      %p261 = scmp.eq.s32.totalorder %s28, 3
      %p262 = por %p260, %p261
      %p263 = scmp.ne.s32.totalorder %s255, %s258
      %p264 = scmp.eq.s32.totalorder %s28, 0
      %p265 = por %p263, %p264
      %p266 = scmp.ne.s32.totalorder %s255, %s258
      %p267 = scmp.eq.s32.totalorder %s33, 3
      %p268 = por %p266, %p267
      %p269 = scmp.ne.s32.totalorder %s258, %s259
      %p270 = scmp.eq.s32.totalorder %s33, 0
      %p271 = por %p269, %p270
      %p272 = scmp.ne.s32.totalorder %s258, %s259
      %p273 = scmp.eq.s32.totalorder %s34, 3
      %p274 = por %p272, %p273
      %p276 = scmp.ne.s32.totalorder %s259, %s275
      %p277 = scmp.eq.s32.totalorder %s34, 0
      %p278 = por %p276, %p277
      %p279 = scmp.le.s32.totalorder 1, %s28
      %p280 = scmp.lt.s32.totalorder %s28, 5
      %p281 = pnand %p279, %p280
      %p282 = pneg %p281
      // Predicated region
      $region9: #{tpu_custom_call.1} parent=5 // pred_check
        _
      $region10: #{tpu_custom_call.1} parent=5 // pred_check_branch
        %284 = sbr.rel (%p281) target = $region12
      $region11: #{tpu_custom_call.1} parent=5 // pred_region
        %s285 = ssub.s32 %s28, 1
      $region12: #{tpu_custom_call.1} parent=5 // pred_fallthru
        _
      %p286 = scmp.lt.s32.totalorder %s28, 4
      // Predicated region
      $region13: #{tpu_custom_call.1} parent=5 // pred_check
        %p287 = pneg %p286
      $region14: #{tpu_custom_call.1} parent=5 // pred_check_branch
        %289 = sbr.rel (%p287) target = $region16
      $region15: #{tpu_custom_call.1} parent=5 // pred_region
        // Predicated region
        $region17: #{tpu_custom_call.1} parent=15 // pred_check
          %p290 = pneg %p69
        $region18: #{tpu_custom_call.1} parent=15 // pred_check_branch
          %292 = sbr.rel (%p290) target = $region20
        $region19: #{tpu_custom_call.1} parent=15 // pred_region
          %s293 = sand.u32 %s59, 1
          %s294 = scalar_lea.sflag [#allocation5], %s293
          %s295 = sand.u32 %s59, 1
          %s296 = smul.addr %s295, 48
          %s297 = scalar_lea.vmem [#allocation4], %s296
          %s298 = smul.u32 2, %s35
          %s299 = smul.u32 6, %s37
          %s301 = ssub.s32 768, 768
          %302 = vsyncadd %s294, %s301
          %s303 = smul.addr %s298, 12
          %s304 = sadd.s32 %s299, %s303
          %s305 = smul.addr %s304, 64
          %s306 = scalar_lea.hbm %s0, %s305
          %s307 = sshll.u32 %s297, 4
          %s308 = int_to_ptr.vmem [resolvable:$true] %s307
          %313 = dma.hbm_to_vmem [thread:$0]  %s306, 768, %s308, %s294, 768, 384, 24
        $region20: #{tpu_custom_call.1} parent=15 // pred_fallthru
          _
        // Predicated region
        $region21: #{tpu_custom_call.1} parent=15 // pred_check
          %p314 = pneg %p97
        $region22: #{tpu_custom_call.1} parent=15 // pred_check_branch
          %316 = sbr.rel (%p314) target = $region24
        $region23: #{tpu_custom_call.1} parent=15 // pred_region
          %s317 = sand.u32 %s28, 1
          %s318 = scalar_lea.sflag [#allocation8], %s317
          %s319 = sand.u32 %s87, 1
          %s320 = smul.addr %s319, 192
          %s321 = scalar_lea.vmem [#allocation7], %s320
          %s322 = smul.u32 12, %s37
          %s323 = smul.u32 2, %s36
          %s325 = ssub.s32 3072, 3072
          %326 = vsyncadd %s318, %s325
          %s327 = smul.addr %s322, 4
          %s328 = sadd.s32 %s323, %s327
          %s329 = smul.addr %s328, 128
          %s330 = scalar_lea.hbm %s1, %s329
          %s331 = sshll.u32 %s321, 4
          %s332 = int_to_ptr.vmem [resolvable:$true] %s331
          %337 = dma.hbm_to_vmem [thread:$0]  %s330, 3072, %s332, %s318, 512, 256, 16
        $region24: #{tpu_custom_call.1} parent=15 // pred_fallthru
          _
        // Predicated region
        $region25: #{tpu_custom_call.1} parent=15 // pred_check
          %p338 = pneg %p125
        $region26: #{tpu_custom_call.1} parent=15 // pred_check_branch
          %340 = sbr.rel (%p338) target = $region28
        $region27: #{tpu_custom_call.1} parent=15 // pred_region
          %s341 = sand.u32 %s28, 1
          %s342 = scalar_lea.sflag [#allocation8], %s341
          %s343 = sand.u32 %s115, 1
          %s344 = smul.addr %s343, 12
          %s345 = scalar_lea.vmem [#allocation9], %s344
          %s346 = smul.u32 6, %s37
          %s347 = smul.u32 2, %s36
          %s349 = ssub.s32 192, 192
          %350 = vsyncadd %s342, %s349
          %s351 = smul.addr %s346, 4
          %s352 = sadd.s32 %s347, %s351
          %s353 = smul.addr %s352, 16
          %s354 = scalar_lea.hbm %s2, %s353
          %s355 = sshll.u32 %s345, 4
          %s356 = int_to_ptr.vmem [resolvable:$true] %s355
          %361 = dma.hbm_to_vmem [thread:$0]  %s354, 192, %s356, %s342, 64, 32, 2
        $region28: #{tpu_custom_call.1} parent=15 // pred_fallthru
          _
        // Predicated region
        $region29: #{tpu_custom_call.1} parent=15 // pred_check
          %p362 = pneg %p153
        $region30: #{tpu_custom_call.1} parent=15 // pred_check_branch
          %364 = sbr.rel (%p362) target = $region32
        $region31: #{tpu_custom_call.1} parent=15 // pred_region
          %s365 = sand.u32 %s28, 1
          %s366 = scalar_lea.sflag [#allocation11], %s365
          %s367 = sand.u32 %s143, 1
          %s368 = smul.addr %s367, 12
          %s369 = scalar_lea.vmem [#allocation10], %s368
          %s370 = smul.u32 6, %s37
          %s371 = smul.u32 2, %s36
          %s373 = ssub.s32 192, 192
          %374 = vsyncadd %s366, %s373
          %s375 = smul.addr %s370, 4
          %s376 = sadd.s32 %s371, %s375
          %s377 = smul.addr %s376, 16
          %s378 = scalar_lea.hbm %s3, %s377
          %s379 = sshll.u32 %s369, 4
          %s380 = int_to_ptr.vmem [resolvable:$true] %s379
          %385 = dma.hbm_to_vmem [thread:$0]  %s378, 192, %s380, %s366, 64, 32, 2
        $region32: #{tpu_custom_call.1} parent=15 // pred_fallthru
          _
        // Predicated region
        $region33: #{tpu_custom_call.1} parent=15 // pred_check
          %p386 = pneg %p181
        $region34: #{tpu_custom_call.1} parent=15 // pred_check_branch
          %388 = sbr.rel (%p386) target = $region36
        $region35: #{tpu_custom_call.1} parent=15 // pred_region
          %s389 = sand.u32 %s28, 1
          %s390 = scalar_lea.sflag [#allocation11], %s389
          %s391 = sand.u32 %s171, 1
          %s392 = smul.addr %s391, 192
          %s393 = scalar_lea.vmem [#allocation12], %s392
          %s394 = smul.u32 12, %s37
          %s395 = smul.u32 2, %s36
          %s397 = ssub.s32 3072, 3072
          %398 = vsyncadd %s390, %s397
          %s399 = smul.addr %s394, 4
          %s400 = sadd.s32 %s395, %s399
          %s401 = smul.addr %s400, 128
          %s402 = scalar_lea.hbm %s4, %s401
          %s403 = sshll.u32 %s393, 4
          %s404 = int_to_ptr.vmem [resolvable:$true] %s403
          %409 = dma.hbm_to_vmem [thread:$0]  %s402, 3072, %s404, %s390, 512, 256, 16
        $region36: #{tpu_custom_call.1} parent=15 // pred_fallthru
          _
        // Predicated region
        $region37: #{tpu_custom_call.1} parent=15 // pred_check
          %p410 = pneg %p209
        $region38: #{tpu_custom_call.1} parent=15 // pred_check_branch
          %412 = sbr.rel (%p410) target = $region40
        $region39: #{tpu_custom_call.1} parent=15 // pred_region
          %s413 = sand.u32 %s28, 1
          %s414 = scalar_lea.sflag [#allocation14], %s413
          %s415 = sand.u32 %s199, 1
          %s416 = smul.addr %s415, 12
          %s417 = scalar_lea.vmem [#allocation13], %s416
          %s418 = smul.u32 6, %s37
          %s419 = smul.u32 2, %s36
          %s421 = ssub.s32 192, 192
          %422 = vsyncadd %s414, %s421
          %s423 = smul.addr %s418, 4
          %s424 = sadd.s32 %s419, %s423
          %s425 = smul.addr %s424, 16
          %s426 = scalar_lea.hbm %s5, %s425
          %s427 = sshll.u32 %s417, 4
          %s428 = int_to_ptr.vmem [resolvable:$true] %s427
          %433 = dma.hbm_to_vmem [thread:$0]  %s426, 192, %s428, %s414, 64, 32, 2
        $region40: #{tpu_custom_call.1} parent=15 // pred_fallthru
          _
        // Predicated region
        $region41: #{tpu_custom_call.1} parent=15 // pred_check
          %p434 = pneg %p237
        $region42: #{tpu_custom_call.1} parent=15 // pred_check_branch
          %436 = sbr.rel (%p434) target = $region44
        $region43: #{tpu_custom_call.1} parent=15 // pred_region
          %s437 = sand.u32 %s28, 1
          %s438 = scalar_lea.sflag [#allocation14], %s437
          %s439 = sand.u32 %s227, 1
          %s440 = smul.addr %s439, 12
          %s441 = scalar_lea.vmem [#allocation15], %s440
          %s442 = smul.u32 6, %s37
          %s443 = smul.u32 2, %s36
          %s445 = ssub.s32 192, 192
          %446 = vsyncadd %s438, %s445
          %s447 = smul.addr %s442, 4
          %s448 = sadd.s32 %s443, %s447
          %s449 = smul.addr %s448, 16
          %s450 = scalar_lea.hbm %s6, %s449
          %s451 = sshll.u32 %s441, 4
          %s452 = int_to_ptr.vmem [resolvable:$true] %s451
          %457 = dma.hbm_to_vmem [thread:$0]  %s450, 192, %s452, %s438, 64, 32, 2
        $region44: #{tpu_custom_call.1} parent=15 // pred_fallthru
          _
      $region16: #{tpu_custom_call.1} parent=5 // pred_fallthru
        _
      %p458 = scmp.le.s32.totalorder 1, %s28
      %p459 = scmp.lt.s32.totalorder %s28, 5
      %p460 = pnand %p458, %p459
      %p461 = pneg %p460
      // Predicated region
      $region45: #{tpu_custom_call.1} parent=5 // pred_check
        _
      $region46: #{tpu_custom_call.1} parent=5 // pred_check_branch
        %463 = sbr.rel (%p460) target = $region48
      $region47: #{tpu_custom_call.1} parent=5 // pred_region
        %s464 = ssub.s32 %s28, 1
        %s465 = sand.u32 %s62, 1
        %s466 = scalar_lea.sflag [#allocation5], %s465
        %s467 = sand.u32 %s62, 1
        %s468 = smul.addr %s467, 48
        %s469 = scalar_lea.vmem [#allocation4], %s468
        // Predicated region
        $region49: #{tpu_custom_call.1} parent=47 // pred_check
          %p470 = pneg %p75
        $region50: #{tpu_custom_call.1} parent=47 // pred_check_branch
          %472 = sbr.rel (%p470) target = $region52
        $region51: #{tpu_custom_call.1} parent=47 // pred_region
          %473 = dma.done %s466, 768
        $region52: #{tpu_custom_call.1} parent=47 // pred_fallthru
          _
        %s474 = sand.u32 %s33, 1
        %s475 = scalar_lea.sflag [#allocation8], %s474
        %s476 = sand.u32 %s90, 1
        %s477 = smul.addr %s476, 192
        %s478 = scalar_lea.vmem [#allocation7], %s477
        // Predicated region
        $region53: #{tpu_custom_call.1} parent=47 // pred_check
          %p479 = pneg %p103
        $region54: #{tpu_custom_call.1} parent=47 // pred_check_branch
          %481 = sbr.rel (%p479) target = $region56
        $region55: #{tpu_custom_call.1} parent=47 // pred_region
          %482 = dma.done %s475, 3072
        $region56: #{tpu_custom_call.1} parent=47 // pred_fallthru
          _
        %s483 = sand.u32 %s33, 1
        %s484 = scalar_lea.sflag [#allocation8], %s483
        %s485 = sand.u32 %s118, 1
        %s486 = smul.addr %s485, 12
        %s487 = scalar_lea.vmem [#allocation9], %s486
        // Predicated region
        $region57: #{tpu_custom_call.1} parent=47 // pred_check
          %p488 = pneg %p131
        $region58: #{tpu_custom_call.1} parent=47 // pred_check_branch
          %490 = sbr.rel (%p488) target = $region60
        $region59: #{tpu_custom_call.1} parent=47 // pred_region
          %491 = dma.done %s484, 192
        $region60: #{tpu_custom_call.1} parent=47 // pred_fallthru
          _
        %s492 = sand.u32 %s33, 1
        %s493 = scalar_lea.sflag [#allocation11], %s492
        %s494 = sand.u32 %s146, 1
        %s495 = smul.addr %s494, 12
        %s496 = scalar_lea.vmem [#allocation10], %s495
        // Predicated region
        $region61: #{tpu_custom_call.1} parent=47 // pred_check
          %p497 = pneg %p159
        $region62: #{tpu_custom_call.1} parent=47 // pred_check_branch
          %499 = sbr.rel (%p497) target = $region64
        $region63: #{tpu_custom_call.1} parent=47 // pred_region
          %500 = dma.done %s493, 192
        $region64: #{tpu_custom_call.1} parent=47 // pred_fallthru
          _
        %s501 = sand.u32 %s33, 1
        %s502 = scalar_lea.sflag [#allocation11], %s501
        %s503 = sand.u32 %s174, 1
        %s504 = smul.addr %s503, 192
        %s505 = scalar_lea.vmem [#allocation12], %s504
        // Predicated region
        $region65: #{tpu_custom_call.1} parent=47 // pred_check
          %p506 = pneg %p187
        $region66: #{tpu_custom_call.1} parent=47 // pred_check_branch
          %508 = sbr.rel (%p506) target = $region68
        $region67: #{tpu_custom_call.1} parent=47 // pred_region
          %509 = dma.done %s502, 3072
        $region68: #{tpu_custom_call.1} parent=47 // pred_fallthru
          _
        %s510 = sand.u32 %s33, 1
        %s511 = scalar_lea.sflag [#allocation14], %s510
        %s512 = sand.u32 %s202, 1
        %s513 = smul.addr %s512, 12
        %s514 = scalar_lea.vmem [#allocation13], %s513
        // Predicated region
        $region69: #{tpu_custom_call.1} parent=47 // pred_check
          %p515 = pneg %p215
        $region70: #{tpu_custom_call.1} parent=47 // pred_check_branch
          %517 = sbr.rel (%p515) target = $region72
        $region71: #{tpu_custom_call.1} parent=47 // pred_region
          %518 = dma.done %s511, 192
        $region72: #{tpu_custom_call.1} parent=47 // pred_fallthru
          _
        %s519 = sand.u32 %s33, 1
        %s520 = scalar_lea.sflag [#allocation14], %s519
        %s521 = sand.u32 %s230, 1
        %s522 = smul.addr %s521, 12
        %s523 = scalar_lea.vmem [#allocation15], %s522
        // Predicated region
        $region73: #{tpu_custom_call.1} parent=47 // pred_check
          %p524 = pneg %p243
        $region74: #{tpu_custom_call.1} parent=47 // pred_check_branch
          %526 = sbr.rel (%p524) target = $region76
        $region75: #{tpu_custom_call.1} parent=47 // pred_region
          %527 = dma.done %s520, 192
        $region76: #{tpu_custom_call.1} parent=47 // pred_fallthru
          _
        %s528 = sand.u32 %s62, 1
        %s529 = scalar_lea.sflag [#allocation5], %s528
        %s530 = sand.u32 %s62, 1
        %s531 = smul.addr %s530, 48
        %s532 = scalar_lea.vmem [#allocation4], %s531
        %p533 = pneg %p75
        %p534 = pneg %p72
        %s535 = sand.u32 %s33, 1
        %s536 = scalar_lea.sflag [#allocation8], %s535
        %s537 = sand.u32 %s90, 1
        %s538 = smul.addr %s537, 192
        %s539 = scalar_lea.vmem [#allocation7], %s538
        %p540 = pneg %p103
        %p541 = pneg %p100
        %s542 = sand.u32 %s33, 1
        %s543 = scalar_lea.sflag [#allocation8], %s542
        %s544 = sand.u32 %s118, 1
        %s545 = smul.addr %s544, 12
        %s546 = scalar_lea.vmem [#allocation9], %s545
        %p547 = pneg %p131
        %p548 = pneg %p128
        %s549 = sand.u32 %s33, 1
        %s550 = scalar_lea.sflag [#allocation11], %s549
        %s551 = sand.u32 %s146, 1
        %s552 = smul.addr %s551, 12
        %s553 = scalar_lea.vmem [#allocation10], %s552
        %p554 = pneg %p159
        %p555 = pneg %p156
        %s556 = sand.u32 %s33, 1
        %s557 = scalar_lea.sflag [#allocation11], %s556
        %s558 = sand.u32 %s174, 1
        %s559 = smul.addr %s558, 192
        %s560 = scalar_lea.vmem [#allocation12], %s559
        %p561 = pneg %p187
        %p562 = pneg %p184
        %s563 = sand.u32 %s33, 1
        %s564 = scalar_lea.sflag [#allocation14], %s563
        %s565 = sand.u32 %s202, 1
        %s566 = smul.addr %s565, 12
        %s567 = scalar_lea.vmem [#allocation13], %s566
        %p568 = pneg %p215
        %p569 = pneg %p212
        %s570 = sand.u32 %s33, 1
        %s571 = scalar_lea.sflag [#allocation14], %s570
        %s572 = sand.u32 %s230, 1
        %s573 = smul.addr %s572, 12
        %s574 = scalar_lea.vmem [#allocation15], %s573
        %p575 = pneg %p243
        %p576 = pneg %p240
        %p577 = pneg %p271
        %p578 = pneg %p268
        %s579 = sand.u32 %s258, 1
        %s580 = scalar_lea.sflag [#allocation6], %s579
        %s581 = sand.u32 %s258, 1
        %s582 = smul.addr %s581, 16
        %s583 = scalar_lea.vmem [#allocation16], %s582
        %s584 = smul.u32 2, %s38
        %s585 = smul.u32 6, %s40
        %s586 = smul.u32 12, %s40
        %s587 = smul.u32 2, %s39
        %s588 = smul.u32 6, %s40
        %s589 = smul.u32 2, %s39
        %s590 = smul.u32 6, %s40
        %s591 = smul.u32 2, %s39
        %s592 = smul.u32 12, %s40
        %s593 = smul.u32 2, %s39
        %s594 = smul.u32 6, %s40
        %s595 = smul.u32 2, %s39
        %s596 = smul.u32 6, %s40
        %s597 = smul.u32 2, %s39
        %s598 = smul.u32 2, %s38
        %s599 = smul.u32 2, %s39
        %p601 = scmp.eq.s32.totalorder %s40, 0
        // Predicated region
        $region77: #{tpu_custom_call.1} parent=47 // pred_check
          %p602 = pneg %p601
        $region78: #{tpu_custom_call.1} parent=47 // pred_check_branch
          %604 = sbr.rel (%p602) target = $region80
        $region79: #{tpu_custom_call.1} parent=47 // pred_region
          %605 = vst [vmem:[#allocation2] sm:$0xff] 0.0
          %606 = vst [vmem:[#allocation2 + $0x8] sm:$0xff] 0.0
          %607 = vst [vmem:[#allocation2 + $0x10] sm:$0xff] 0.0
          %608 = vst [vmem:[#allocation2 + $0x18] sm:$0xff] 0.0
          %609 = vst [vmem:[#allocation3] sm:$0xff] 0.0
          %610 = vst [vmem:[#allocation3 + $0x8] sm:$0xff] 0.0
          %611 = vst [vmem:[#allocation3 + $0x10] sm:$0xff] 0.0
          %612 = vst [vmem:[#allocation3 + $0x18] sm:$0xff] 0.0
        $region80: #{tpu_custom_call.1} parent=47 // pred_fallthru
          _
        %v613 = vld [vmem:[%s469] sm:$0xff]
        %v614 = vld [vmem:[%s469 + $0x8] sm:$0xff]
        %v615 = vld [vmem:[%s469 + $0x10] sm:$0xff]
        %v616 = vld [vmem:[%s469 + $0x18] sm:$0xff]
        %v617 = vld [vmem:[%s469 + $0x20] sm:$0xff]
        %v618 = vld [vmem:[%s469 + $0x28] sm:$0xff]
        %v619 = vld [vmem:[#allocation2] sm:$0xff]
        %v620 = vld [vmem:[#allocation2 + $0x8] sm:$0xff]
        %v621 = vld [vmem:[#allocation2 + $0x10] sm:$0xff]
        %v622 = vld [vmem:[#allocation2 + $0x18] sm:$0xff]
        %v623 = vld [vmem:[#allocation3] sm:$0xff]
        %v624 = vld [vmem:[#allocation3 + $0x8] sm:$0xff]
        %v625 = vld [vmem:[#allocation3 + $0x10] sm:$0xff]
        %v626 = vld [vmem:[#allocation3 + $0x18] sm:$0xff]
        %v627 = vunpack.c.l.bf16 %v613
        %v628 = vunpack.c.l.bf16 %v616
        %629 = vadd.xlane.f32.xlu0 %v627
        %v630 = vpop.xlane.xlu0 %629
        %631 = vadd.xlane.f32.xlu0 %v628
        %v632 = vpop.xlane.xlu0 %631
        %v633 = vld [vmem:[%s478] sm:$0xff]
        %v634 = vld [vmem:[%s478 + $0x8] sm:$0xff]
        %v635 = vld [vmem:[%s478 + $0x10] sm:$0xff]
        %v636 = vld [vmem:[%s478 + $0x18] sm:$0xff]
        %v637 = vlaneseq
        %v638 = vshrl.u32 %v637, 7
        %v639 = vmul.u32 %v638, 4
        %v640 = vcombine.low %v633, %v634
        %v641 = vcombine.high %v633, %v634
        %v643 = vunpack.c.l.s4 1966171168
        %v644 = vunpack.c.0.s8 %v643
        %v645 = vlaneseq
        %v646 = vshrl.u32 %v645, 7
        %v647 = vsub.s32 %v644, %v646
        %v648 = vrot.slane %v640, %v647
        %v650 = vunpack.c.l.s4 1966171168
        %v651 = vunpack.c.0.s8 %v650
        %v652 = vlaneseq
        %v653 = vshrl.u32 %v652, 7
        %v654 = vsub.s32 %v651, %v653
        %v655 = vrot.slane %v641, %v654
        %v656 = vcombine.high %v648, %v648
        %v657 = vcombine.high %v655, %v655
        %v659 = vunpack.c.l.s4 1966171168
        %v660 = vunpack.c.0.s8 %v659
        %v661 = vlaneseq
        %v662 = vshrl.u32 %v661, 7
        %v663 = vsub.s32 %v660, %v662
        %v664 = vrot.slane %v648, %v663
        %v666 = vunpack.c.l.s4 1966171168
        %v667 = vunpack.c.0.s8 %v666
        %v668 = vlaneseq
        %v669 = vshrl.u32 %v668, 7
        %v670 = vsub.s32 %v667, %v669
        %v671 = vrot.slane %v655, %v670
        %v673 = vunpack.c.l.s4 1966171168
        %v674 = vunpack.c.0.s8 %v673
        %v675 = vlaneseq
        %v676 = vshrl.u32 %v675, 7
        %v677 = vsub.s32 %v674, %v676
        %v678 = vrot.slane %v656, %v677
        %v680 = vunpack.c.l.s4 1966171168
        %v681 = vunpack.c.0.s8 %v680
        %v682 = vlaneseq
        %v683 = vshrl.u32 %v682, 7
        %v684 = vsub.s32 %v681, %v683
        %v685 = vrot.slane %v657, %v684
        %v686 = vcombine.high %v664, %v664
        %v687 = vcombine.high %v671, %v671
        %v688 = vcombine.high %v678, %v678
        %v689 = vcombine.high %v685, %v685
        %v690 = vcombine.low %v635, %v636
        %v691 = vcombine.high %v635, %v636
        %v693 = vunpack.c.l.s4 1966171168
        %v694 = vunpack.c.0.s8 %v693
        %v695 = vlaneseq
        %v696 = vshrl.u32 %v695, 7
        %v697 = vsub.s32 %v694, %v696
        %v698 = vrot.slane %v690, %v697
        %v700 = vunpack.c.l.s4 1966171168
        %v701 = vunpack.c.0.s8 %v700
        %v702 = vlaneseq
        %v703 = vshrl.u32 %v702, 7
        %v704 = vsub.s32 %v701, %v703
        %v705 = vrot.slane %v691, %v704
        %v706 = vcombine.high %v698, %v698
        %v707 = vcombine.high %v705, %v705
        %v709 = vunpack.c.l.s4 1966171168
        %v710 = vunpack.c.0.s8 %v709
        %v711 = vlaneseq
        %v712 = vshrl.u32 %v711, 7
        %v713 = vsub.s32 %v710, %v712
        %v714 = vrot.slane %v698, %v713
        %v716 = vunpack.c.l.s4 1966171168
        %v717 = vunpack.c.0.s8 %v716
        %v718 = vlaneseq
        %v719 = vshrl.u32 %v718, 7
        %v720 = vsub.s32 %v717, %v719
        %v721 = vrot.slane %v705, %v720
        %v723 = vunpack.c.l.s4 1966171168
        %v724 = vunpack.c.0.s8 %v723
        %v725 = vlaneseq
        %v726 = vshrl.u32 %v725, 7
        %v727 = vsub.s32 %v724, %v726
        %v728 = vrot.slane %v706, %v727
        %v730 = vunpack.c.l.s4 1966171168
        %v731 = vunpack.c.0.s8 %v730
        %v732 = vlaneseq
        %v733 = vshrl.u32 %v732, 7
        %v734 = vsub.s32 %v731, %v733
        %v735 = vrot.slane %v707, %v734
        %v736 = vcombine.high %v714, %v714
        %v737 = vcombine.high %v721, %v721
        %v738 = vcombine.high %v728, %v728
        %v739 = vcombine.high %v735, %v735
        %v740 = vlaneseq
        %v741 = vshrl.u32 %v740, 7
        %v742 = vsub.s32 0, %v741
        %v743 = vrot.slane %v664, %v742
        %v744 = vlaneseq
        %v745 = vshrl.u32 %v744, 7
        %v746 = vsub.s32 1, %v745
        %v747 = vrot.slane %v664, %v746
        %v748 = vlaneseq
        %v749 = vshrl.u32 %v748, 7
        %v750 = vsub.s32 0, %v749
        %v751 = vrot.slane %v678, %v750
        %v752 = vlaneseq
        %v753 = vshrl.u32 %v752, 7
        %v754 = vsub.s32 1, %v753
        %v755 = vrot.slane %v678, %v754
        %v756 = vlaneseq
        %v757 = vshrl.u32 %v756, 7
        %v758 = vsub.s32 0, %v757
        %v759 = vrot.slane %v686, %v758
        %v760 = vlaneseq
        %v761 = vshrl.u32 %v760, 7
        %v762 = vsub.s32 1, %v761
        %v763 = vrot.slane %v686, %v762
        %v764 = vlaneseq
        %v765 = vshrl.u32 %v764, 7
        %v766 = vsub.s32 0, %v765
        %v767 = vrot.slane %v688, %v766
        %v768 = vlaneseq
        %v769 = vshrl.u32 %v768, 7
        %v770 = vsub.s32 1, %v769
        %v771 = vrot.slane %v688, %v770
        %v772 = vlaneseq
        %v773 = vshrl.u32 %v772, 7
        %v774 = vsub.s32 0, %v773
        %v775 = vrot.slane %v671, %v774
        %v776 = vlaneseq
        %v777 = vshrl.u32 %v776, 7
        %v778 = vsub.s32 1, %v777
        %v779 = vrot.slane %v671, %v778
        %v780 = vlaneseq
        %v781 = vshrl.u32 %v780, 7
        %v782 = vsub.s32 0, %v781
        %v783 = vrot.slane %v685, %v782
        %v784 = vlaneseq
        %v785 = vshrl.u32 %v784, 7
        %v786 = vsub.s32 1, %v785
        %v787 = vrot.slane %v685, %v786
        %v788 = vlaneseq
        %v789 = vshrl.u32 %v788, 7
        %v790 = vsub.s32 0, %v789
        %v791 = vrot.slane %v687, %v790
        %v792 = vlaneseq
        %v793 = vshrl.u32 %v792, 7
        %v794 = vsub.s32 1, %v793
        %v795 = vrot.slane %v687, %v794
        %v796 = vlaneseq
        %v797 = vshrl.u32 %v796, 7
        %v798 = vsub.s32 0, %v797
        %v799 = vrot.slane %v689, %v798
        %v800 = vlaneseq
        %v801 = vshrl.u32 %v800, 7
        %v802 = vsub.s32 1, %v801
        %v803 = vrot.slane %v689, %v802
        %v804 = vlaneseq
        %v805 = vshrl.u32 %v804, 7
        %v806 = vsub.s32 0, %v805
        %v807 = vrot.slane %v714, %v806
        %v808 = vlaneseq
        %v809 = vshrl.u32 %v808, 7
        %v810 = vsub.s32 1, %v809
        %v811 = vrot.slane %v714, %v810
        %v812 = vlaneseq
        %v813 = vshrl.u32 %v812, 7
        %v814 = vsub.s32 0, %v813
        %v815 = vrot.slane %v728, %v814
        %v816 = vlaneseq
        %v817 = vshrl.u32 %v816, 7
        %v818 = vsub.s32 1, %v817
        %v819 = vrot.slane %v728, %v818
        %v820 = vlaneseq
        %v821 = vshrl.u32 %v820, 7
        %v822 = vsub.s32 0, %v821
        %v823 = vrot.slane %v736, %v822
        %v824 = vlaneseq
        %v825 = vshrl.u32 %v824, 7
        %v826 = vsub.s32 1, %v825
        %v827 = vrot.slane %v736, %v826
        %v828 = vlaneseq
        %v829 = vshrl.u32 %v828, 7
        %v830 = vsub.s32 0, %v829
        %v831 = vrot.slane %v738, %v830
        %v832 = vlaneseq
        %v833 = vshrl.u32 %v832, 7
        %v834 = vsub.s32 1, %v833
        %v835 = vrot.slane %v738, %v834
        %v836 = vlaneseq
        %v837 = vshrl.u32 %v836, 7
        %v838 = vsub.s32 0, %v837
        %v839 = vrot.slane %v721, %v838
        %v840 = vlaneseq
        %v841 = vshrl.u32 %v840, 7
        %v842 = vsub.s32 1, %v841
        %v843 = vrot.slane %v721, %v842
        %v844 = vlaneseq
        %v845 = vshrl.u32 %v844, 7
        %v846 = vsub.s32 0, %v845
        %v847 = vrot.slane %v735, %v846
        %v848 = vlaneseq
        %v849 = vshrl.u32 %v848, 7
        %v850 = vsub.s32 1, %v849
        %v851 = vrot.slane %v735, %v850
        %v852 = vlaneseq
        %v853 = vshrl.u32 %v852, 7
        %v854 = vsub.s32 0, %v853
        %v855 = vrot.slane %v737, %v854
        %v856 = vlaneseq
        %v857 = vshrl.u32 %v856, 7
        %v858 = vsub.s32 1, %v857
        %v859 = vrot.slane %v737, %v858
        %v860 = vlaneseq
        %v861 = vshrl.u32 %v860, 7
        %v862 = vsub.s32 0, %v861
        %v863 = vrot.slane %v739, %v862
        %v864 = vlaneseq
        %v865 = vshrl.u32 %v864, 7
        %v866 = vsub.s32 1, %v865
        %v867 = vrot.slane %v739, %v866
        %v868 = vshra.s32 %v743, %v639
        %v869 = vshra.s32 %v747, %v639
        %v870 = vshra.s32 %v751, %v639
        %v871 = vshra.s32 %v755, %v639
        %v872 = vshra.s32 %v759, %v639
        %v873 = vshra.s32 %v763, %v639
        %v874 = vshra.s32 %v767, %v639
        %v875 = vshra.s32 %v771, %v639
        %v876 = vshra.s32 %v775, %v639
        %v877 = vshra.s32 %v779, %v639
        %v878 = vshra.s32 %v783, %v639
        %v879 = vshra.s32 %v787, %v639
        %v880 = vshra.s32 %v791, %v639
        %v881 = vshra.s32 %v795, %v639
        %v882 = vshra.s32 %v799, %v639
        %v883 = vshra.s32 %v803, %v639
        %v884 = vshra.s32 %v807, %v639
        %v885 = vshra.s32 %v811, %v639
        %v886 = vshra.s32 %v815, %v639
        %v887 = vshra.s32 %v819, %v639
        %v888 = vshra.s32 %v823, %v639
        %v889 = vshra.s32 %v827, %v639
        %v890 = vshra.s32 %v831, %v639
        %v891 = vshra.s32 %v835, %v639
        %v892 = vshra.s32 %v839, %v639
        %v893 = vshra.s32 %v843, %v639
        %v894 = vshra.s32 %v847, %v639
        %v895 = vshra.s32 %v851, %v639
        %v896 = vshra.s32 %v855, %v639
        %v897 = vshra.s32 %v859, %v639
        %v898 = vshra.s32 %v863, %v639
        %v899 = vshra.s32 %v867, %v639
        %v900 = vand.u32 %v868, 15
        %v901 = vand.u32 %v869, 15
        %v902 = vand.u32 %v870, 15
        %v903 = vand.u32 %v871, 15
        %v904 = vand.u32 %v872, 15
        %v905 = vand.u32 %v873, 15
        %v906 = vand.u32 %v874, 15
        %v907 = vand.u32 %v875, 15
        %v908 = vand.u32 %v876, 15
        %v909 = vand.u32 %v877, 15
        %v910 = vand.u32 %v878, 15
        %v911 = vand.u32 %v879, 15
        %v912 = vand.u32 %v880, 15
        %v913 = vand.u32 %v881, 15
        %v914 = vand.u32 %v882, 15
        %v915 = vand.u32 %v883, 15
        %v916 = vand.u32 %v884, 15
        %v917 = vand.u32 %v885, 15
        %v918 = vand.u32 %v886, 15
        %v919 = vand.u32 %v887, 15
        %v920 = vand.u32 %v888, 15
        %v921 = vand.u32 %v889, 15
        %v922 = vand.u32 %v890, 15
        %v923 = vand.u32 %v891, 15
        %v924 = vand.u32 %v892, 15
        %v925 = vand.u32 %v893, 15
        %v926 = vand.u32 %v894, 15
        %v927 = vand.u32 %v895, 15
        %v928 = vand.u32 %v896, 15
        %v929 = vand.u32 %v897, 15
        %v930 = vand.u32 %v898, 15
        %v931 = vand.u32 %v899, 15
        %v932 = vcvt.s32.f32 %v900
        %v933 = vcvt.s32.f32 %v901
        %v934 = vcvt.s32.f32 %v902
        %v935 = vcvt.s32.f32 %v903
        %v936 = vcvt.s32.f32 %v904
        %v937 = vcvt.s32.f32 %v905
        %v938 = vcvt.s32.f32 %v906
        %v939 = vcvt.s32.f32 %v907
        %v940 = vcvt.s32.f32 %v908
        %v941 = vcvt.s32.f32 %v909
        %v942 = vcvt.s32.f32 %v910
        %v943 = vcvt.s32.f32 %v911
        %v944 = vcvt.s32.f32 %v912
        %v945 = vcvt.s32.f32 %v913
        %v946 = vcvt.s32.f32 %v914
        %v947 = vcvt.s32.f32 %v915
        %v948 = vcvt.s32.f32 %v916
        %v949 = vcvt.s32.f32 %v917
        %v950 = vcvt.s32.f32 %v918
        %v951 = vcvt.s32.f32 %v919
        %v952 = vcvt.s32.f32 %v920
        %v953 = vcvt.s32.f32 %v921
        %v954 = vcvt.s32.f32 %v922
        %v955 = vcvt.s32.f32 %v923
        %v956 = vcvt.s32.f32 %v924
        %v957 = vcvt.s32.f32 %v925
        %v958 = vcvt.s32.f32 %v926
        %v959 = vcvt.s32.f32 %v927
        %v960 = vcvt.s32.f32 %v928
        %v961 = vcvt.s32.f32 %v929
        %v962 = vcvt.s32.f32 %v930
        %v963 = vcvt.s32.f32 %v931
        %v964 = vpack.c.bf16 %v934, %v932
        %v965 = vpack.c.bf16 %v935, %v933
        %v966 = vpack.c.bf16 %v938, %v936
        %v967 = vpack.c.bf16 %v939, %v937
        %v968 = vpack.c.bf16 %v942, %v940
        %v969 = vpack.c.bf16 %v943, %v941
        %v970 = vpack.c.bf16 %v946, %v944
        %v971 = vpack.c.bf16 %v947, %v945
        %v972 = vpack.c.bf16 %v950, %v948
        %v973 = vpack.c.bf16 %v951, %v949
        %v974 = vpack.c.bf16 %v954, %v952
        %v975 = vpack.c.bf16 %v955, %v953
        %v976 = vpack.c.bf16 %v958, %v956
        %v977 = vpack.c.bf16 %v959, %v957
        %v978 = vpack.c.bf16 %v962, %v960
        %v979 = vpack.c.bf16 %v963, %v961
        %v982 = vunpack.c.l.b16 %v613
        %v983 = vunpack.c.l.b16 %v616
        %v984 = vpack.c.b16 %v983, %v982
        %986 = vmatprep.subr.bf16.mxu0 %v979
        %987 = vmatpush1.bf16.msra.mxu0 %v978
        %988 = vmatprep.subr.bf16.mxu0 %v977
        %989 = vmatpush1.bf16.msra.mxu0 %v976
        %990 = vmatprep.subr.bf16.mxu0 %v975
        %991 = vmatpush1.bf16.msra.mxu0 %v974
        %992 = vmatprep.subr.bf16.mxu0 %v973
        %993 = vmatpush1.bf16.msra.mxu0 %v972
        %994 = vmatprep.subr.bf16.mxu0 %v971
        %995 = vmatpush1.bf16.msra.mxu0 %v970
        %996 = vmatprep.subr.bf16.mxu0 %v969
        %997 = vmatpush1.bf16.msra.mxu0 %v968
        %998 = vmatprep.subr.bf16.mxu0 %v967
        %999 = vmatpush1.bf16.msra.mxu0 %v966
        %1000 = vmatprep.subr.bf16.mxu0 %v965
        %1001 = vmatpush1.bf16.msra.mxu0 %v964
        %1002 = vmatprep.subr.bf16.mxu0 0
        %1003 = vmatpush2.bf16.msra.mxu0 0
        %1004 = vmatprep.subr.bf16.mxu0 0
        %1005 = vmatpush2.bf16.msra.mxu0 0
        %1006 = vmatprep.subr.bf16.mxu0 0
        %1007 = vmatpush2.bf16.msra.mxu0 0
        %1008 = vmatprep.subr.bf16.mxu0 0
        %1009 = vmatpush2.bf16.msra.mxu0 0
        %1010 = vmatprep.subr.bf16.mxu0 0
        %1011 = vmatpush2.bf16.msra.mxu0 0
        %1012 = vmatprep.subr.bf16.mxu0 0
        %1013 = vmatpush2.bf16.msra.mxu0 0
        %1014 = vmatprep.subr.bf16.mxu0 0
        %1015 = vmatpush2.bf16.msra.mxu0 0
        %1016 = vmatprep.subr.bf16.mxu0 0
        %1017 = vmatpush2.bf16.msra.mxu0 0
        %1018 = vmatprep.mubr.bf16.mxu0 0
        %1019 = vmatmul.mubr.bf16.gmra.mxu0 %v984
        %v1020 = vpop.f32.mrf.mxu0
        %v1021 = vadd.f32 0.0, %v1020
        %v1022 = vpop.f32.mrf.mxu0
        %v1023 = vadd.f32 0.0, %v1022
        %v1024 = vpop.f32.mrf.mxu0
        %v1025 = vadd.f32 0.0, %v1024
        %v1026 = vpop.f32.mrf.mxu0
        %v1027 = vadd.f32 0.0, %v1026
        %1028 = vdwg.mxu0
        %v1029 = vld [vmem:[%s487] sm:$0x3]
        %v1031 = vlaneseq
        %v1032 = vshrl.u32 %v1031, 7
        %v1033 = vsub.s32 0, %v1032
        %v1034 = vrot.slane %v1029, %v1033
        %v1035 = vlaneseq
        %v1036 = vshrl.u32 %v1035, 7
        %v1037 = vsub.s32 1, %v1036
        %v1038 = vrot.slane %v1029, %v1037
        %v1041 = vmul.f32 %v1021, %v1034
        %v1042 = vmul.f32 %v1023, %v1038
        %v1043 = vmul.f32 %v1025, %v1034
        %v1044 = vmul.f32 %v1027, %v1038
        %v1045 = vld [vmem:[%s496] sm:$0x3]
        %v1047 = vlaneseq
        %v1048 = vshrl.u32 %v1047, 7
        %v1049 = vsub.s32 0, %v1048
        %v1050 = vrot.slane %v1045, %v1049
        %v1051 = vlaneseq
        %v1052 = vshrl.u32 %v1051, 7
        %v1053 = vsub.s32 1, %v1052
        %v1054 = vrot.slane %v1045, %v1053
        %v1057 = vmul.f32 %v630, %v1050
        %v1058 = vmul.f32 %v630, %v1054
        %v1059 = vmul.f32 %v632, %v1050
        %v1060 = vmul.f32 %v632, %v1054
        %v1061 = vsub.f32 %v1041, %v1057
        %v1062 = vsub.f32 %v1042, %v1058
        %v1063 = vsub.f32 %v1043, %v1059
        %v1064 = vsub.f32 %v1044, %v1060
        %v1065 = vadd.f32 %v619, %v1061
        %v1066 = vadd.f32 %v620, %v1062
        %v1067 = vadd.f32 %v621, %v1063
        %v1068 = vadd.f32 %v622, %v1064
        %v1069 = vld [vmem:[%s505] sm:$0xff]
        %v1070 = vld [vmem:[%s505 + $0x8] sm:$0xff]
        %v1071 = vld [vmem:[%s505 + $0x10] sm:$0xff]
        %v1072 = vld [vmem:[%s505 + $0x18] sm:$0xff]
        %v1073 = vcombine.low %v1069, %v1070
        %v1074 = vcombine.high %v1069, %v1070
        %v1076 = vunpack.c.l.s4 1966171168
        %v1077 = vunpack.c.0.s8 %v1076
        %v1078 = vlaneseq
        %v1079 = vshrl.u32 %v1078, 7
        %v1080 = vsub.s32 %v1077, %v1079
        %v1081 = vrot.slane %v1073, %v1080
        %v1083 = vunpack.c.l.s4 1966171168
        %v1084 = vunpack.c.0.s8 %v1083
        %v1085 = vlaneseq
        %v1086 = vshrl.u32 %v1085, 7
        %v1087 = vsub.s32 %v1084, %v1086
        %v1088 = vrot.slane %v1074, %v1087
        %v1089 = vcombine.high %v1081, %v1081
        %v1090 = vcombine.high %v1088, %v1088
        %v1092 = vunpack.c.l.s4 1966171168
        %v1093 = vunpack.c.0.s8 %v1092
        %v1094 = vlaneseq
        %v1095 = vshrl.u32 %v1094, 7
        %v1096 = vsub.s32 %v1093, %v1095
        %v1097 = vrot.slane %v1081, %v1096
        %v1099 = vunpack.c.l.s4 1966171168
        %v1100 = vunpack.c.0.s8 %v1099
        %v1101 = vlaneseq
        %v1102 = vshrl.u32 %v1101, 7
        %v1103 = vsub.s32 %v1100, %v1102
        %v1104 = vrot.slane %v1088, %v1103
        %v1106 = vunpack.c.l.s4 1966171168
        %v1107 = vunpack.c.0.s8 %v1106
        %v1108 = vlaneseq
        %v1109 = vshrl.u32 %v1108, 7
        %v1110 = vsub.s32 %v1107, %v1109
        %v1111 = vrot.slane %v1089, %v1110
        %v1113 = vunpack.c.l.s4 1966171168
        %v1114 = vunpack.c.0.s8 %v1113
        %v1115 = vlaneseq
        %v1116 = vshrl.u32 %v1115, 7
        %v1117 = vsub.s32 %v1114, %v1116
        %v1118 = vrot.slane %v1090, %v1117
        %v1119 = vcombine.high %v1097, %v1097
        %v1120 = vcombine.high %v1104, %v1104
        %v1121 = vcombine.high %v1111, %v1111
        %v1122 = vcombine.high %v1118, %v1118
        %v1123 = vcombine.low %v1071, %v1072
        %v1124 = vcombine.high %v1071, %v1072
        %v1126 = vunpack.c.l.s4 1966171168
        %v1127 = vunpack.c.0.s8 %v1126
        %v1128 = vlaneseq
        %v1129 = vshrl.u32 %v1128, 7
        %v1130 = vsub.s32 %v1127, %v1129
        %v1131 = vrot.slane %v1123, %v1130
        %v1133 = vunpack.c.l.s4 1966171168
        %v1134 = vunpack.c.0.s8 %v1133
        %v1135 = vlaneseq
        %v1136 = vshrl.u32 %v1135, 7
        %v1137 = vsub.s32 %v1134, %v1136
        %v1138 = vrot.slane %v1124, %v1137
        %v1139 = vcombine.high %v1131, %v1131
        %v1140 = vcombine.high %v1138, %v1138
        %v1142 = vunpack.c.l.s4 1966171168
        %v1143 = vunpack.c.0.s8 %v1142
        %v1144 = vlaneseq
        %v1145 = vshrl.u32 %v1144, 7
        %v1146 = vsub.s32 %v1143, %v1145
        %v1147 = vrot.slane %v1131, %v1146
        %v1149 = vunpack.c.l.s4 1966171168
        %v1150 = vunpack.c.0.s8 %v1149
        %v1151 = vlaneseq
        %v1152 = vshrl.u32 %v1151, 7
        %v1153 = vsub.s32 %v1150, %v1152
        %v1154 = vrot.slane %v1138, %v1153
        %v1156 = vunpack.c.l.s4 1966171168
        %v1157 = vunpack.c.0.s8 %v1156
        %v1158 = vlaneseq
        %v1159 = vshrl.u32 %v1158, 7
        %v1160 = vsub.s32 %v1157, %v1159
        %v1161 = vrot.slane %v1139, %v1160
        %v1163 = vunpack.c.l.s4 1966171168
        %v1164 = vunpack.c.0.s8 %v1163
        %v1165 = vlaneseq
        %v1166 = vshrl.u32 %v1165, 7
        %v1167 = vsub.s32 %v1164, %v1166
        %v1168 = vrot.slane %v1140, %v1167
        %v1169 = vcombine.high %v1147, %v1147
        %v1170 = vcombine.high %v1154, %v1154
        %v1171 = vcombine.high %v1161, %v1161
        %v1172 = vcombine.high %v1168, %v1168
        %v1173 = vlaneseq
        %v1174 = vshrl.u32 %v1173, 7
        %v1175 = vsub.s32 0, %v1174
        %v1176 = vrot.slane %v1097, %v1175
        %v1177 = vlaneseq
        %v1178 = vshrl.u32 %v1177, 7
        %v1179 = vsub.s32 1, %v1178
        %v1180 = vrot.slane %v1097, %v1179
        %v1181 = vlaneseq
        %v1182 = vshrl.u32 %v1181, 7
        %v1183 = vsub.s32 0, %v1182
        %v1184 = vrot.slane %v1111, %v1183
        %v1185 = vlaneseq
        %v1186 = vshrl.u32 %v1185, 7
        %v1187 = vsub.s32 1, %v1186
        %v1188 = vrot.slane %v1111, %v1187
        %v1189 = vlaneseq
        %v1190 = vshrl.u32 %v1189, 7
        %v1191 = vsub.s32 0, %v1190
        %v1192 = vrot.slane %v1119, %v1191
        %v1193 = vlaneseq
        %v1194 = vshrl.u32 %v1193, 7
        %v1195 = vsub.s32 1, %v1194
        %v1196 = vrot.slane %v1119, %v1195
        %v1197 = vlaneseq
        %v1198 = vshrl.u32 %v1197, 7
        %v1199 = vsub.s32 0, %v1198
        %v1200 = vrot.slane %v1121, %v1199
        %v1201 = vlaneseq
        %v1202 = vshrl.u32 %v1201, 7
        %v1203 = vsub.s32 1, %v1202
        %v1204 = vrot.slane %v1121, %v1203
        %v1205 = vlaneseq
        %v1206 = vshrl.u32 %v1205, 7
        %v1207 = vsub.s32 0, %v1206
        %v1208 = vrot.slane %v1104, %v1207
        %v1209 = vlaneseq
        %v1210 = vshrl.u32 %v1209, 7
        %v1211 = vsub.s32 1, %v1210
        %v1212 = vrot.slane %v1104, %v1211
        %v1213 = vlaneseq
        %v1214 = vshrl.u32 %v1213, 7
        %v1215 = vsub.s32 0, %v1214
        %v1216 = vrot.slane %v1118, %v1215
        %v1217 = vlaneseq
        %v1218 = vshrl.u32 %v1217, 7
        %v1219 = vsub.s32 1, %v1218
        %v1220 = vrot.slane %v1118, %v1219
        %v1221 = vlaneseq
        %v1222 = vshrl.u32 %v1221, 7
        %v1223 = vsub.s32 0, %v1222
        %v1224 = vrot.slane %v1120, %v1223
        %v1225 = vlaneseq
        %v1226 = vshrl.u32 %v1225, 7
        %v1227 = vsub.s32 1, %v1226
        %v1228 = vrot.slane %v1120, %v1227
        %v1229 = vlaneseq
        %v1230 = vshrl.u32 %v1229, 7
        %v1231 = vsub.s32 0, %v1230
        %v1232 = vrot.slane %v1122, %v1231
        %v1233 = vlaneseq
        %v1234 = vshrl.u32 %v1233, 7
        %v1235 = vsub.s32 1, %v1234
        %v1236 = vrot.slane %v1122, %v1235
        %v1237 = vlaneseq
        %v1238 = vshrl.u32 %v1237, 7
        %v1239 = vsub.s32 0, %v1238
        %v1240 = vrot.slane %v1147, %v1239
        %v1241 = vlaneseq
        %v1242 = vshrl.u32 %v1241, 7
        %v1243 = vsub.s32 1, %v1242
        %v1244 = vrot.slane %v1147, %v1243
        %v1245 = vlaneseq
        %v1246 = vshrl.u32 %v1245, 7
        %v1247 = vsub.s32 0, %v1246
        %v1248 = vrot.slane %v1161, %v1247
        %v1249 = vlaneseq
        %v1250 = vshrl.u32 %v1249, 7
        %v1251 = vsub.s32 1, %v1250
        %v1252 = vrot.slane %v1161, %v1251
        %v1253 = vlaneseq
        %v1254 = vshrl.u32 %v1253, 7
        %v1255 = vsub.s32 0, %v1254
        %v1256 = vrot.slane %v1169, %v1255
        %v1257 = vlaneseq
        %v1258 = vshrl.u32 %v1257, 7
        %v1259 = vsub.s32 1, %v1258
        %v1260 = vrot.slane %v1169, %v1259
        %v1261 = vlaneseq
        %v1262 = vshrl.u32 %v1261, 7
        %v1263 = vsub.s32 0, %v1262
        %v1264 = vrot.slane %v1171, %v1263
        %v1265 = vlaneseq
        %v1266 = vshrl.u32 %v1265, 7
        %v1267 = vsub.s32 1, %v1266
        %v1268 = vrot.slane %v1171, %v1267
        %v1269 = vlaneseq
        %v1270 = vshrl.u32 %v1269, 7
        %v1271 = vsub.s32 0, %v1270
        %v1272 = vrot.slane %v1154, %v1271
        %v1273 = vlaneseq
        %v1274 = vshrl.u32 %v1273, 7
        %v1275 = vsub.s32 1, %v1274
        %v1276 = vrot.slane %v1154, %v1275
        %v1277 = vlaneseq
        %v1278 = vshrl.u32 %v1277, 7
        %v1279 = vsub.s32 0, %v1278
        %v1280 = vrot.slane %v1168, %v1279
        %v1281 = vlaneseq
        %v1282 = vshrl.u32 %v1281, 7
        %v1283 = vsub.s32 1, %v1282
        %v1284 = vrot.slane %v1168, %v1283
        %v1285 = vlaneseq
        %v1286 = vshrl.u32 %v1285, 7
        %v1287 = vsub.s32 0, %v1286
        %v1288 = vrot.slane %v1170, %v1287
        %v1289 = vlaneseq
        %v1290 = vshrl.u32 %v1289, 7
        %v1291 = vsub.s32 1, %v1290
        %v1292 = vrot.slane %v1170, %v1291
        %v1293 = vlaneseq
        %v1294 = vshrl.u32 %v1293, 7
        %v1295 = vsub.s32 0, %v1294
        %v1296 = vrot.slane %v1172, %v1295
        %v1297 = vlaneseq
        %v1298 = vshrl.u32 %v1297, 7
        %v1299 = vsub.s32 1, %v1298
        %v1300 = vrot.slane %v1172, %v1299
        %v1301 = vshra.s32 %v1176, %v639
        %v1302 = vshra.s32 %v1180, %v639
        %v1303 = vshra.s32 %v1184, %v639
        %v1304 = vshra.s32 %v1188, %v639
        %v1305 = vshra.s32 %v1192, %v639
        %v1306 = vshra.s32 %v1196, %v639
        %v1307 = vshra.s32 %v1200, %v639
        %v1308 = vshra.s32 %v1204, %v639
        %v1309 = vshra.s32 %v1208, %v639
        %v1310 = vshra.s32 %v1212, %v639
        %v1311 = vshra.s32 %v1216, %v639
        %v1312 = vshra.s32 %v1220, %v639
        %v1313 = vshra.s32 %v1224, %v639
        %v1314 = vshra.s32 %v1228, %v639
        %v1315 = vshra.s32 %v1232, %v639
        %v1316 = vshra.s32 %v1236, %v639
        %v1317 = vshra.s32 %v1240, %v639
        %v1318 = vshra.s32 %v1244, %v639
        %v1319 = vshra.s32 %v1248, %v639
        %v1320 = vshra.s32 %v1252, %v639
        %v1321 = vshra.s32 %v1256, %v639
        %v1322 = vshra.s32 %v1260, %v639
        %v1323 = vshra.s32 %v1264, %v639
        %v1324 = vshra.s32 %v1268, %v639
        %v1325 = vshra.s32 %v1272, %v639
        %v1326 = vshra.s32 %v1276, %v639
        %v1327 = vshra.s32 %v1280, %v639
        %v1328 = vshra.s32 %v1284, %v639
        %v1329 = vshra.s32 %v1288, %v639
        %v1330 = vshra.s32 %v1292, %v639
        %v1331 = vshra.s32 %v1296, %v639
        %v1332 = vshra.s32 %v1300, %v639
        %v1333 = vand.u32 %v1301, 15
        %v1334 = vand.u32 %v1302, 15
        %v1335 = vand.u32 %v1303, 15
        %v1336 = vand.u32 %v1304, 15
        %v1337 = vand.u32 %v1305, 15
        %v1338 = vand.u32 %v1306, 15
        %v1339 = vand.u32 %v1307, 15
        %v1340 = vand.u32 %v1308, 15
        %v1341 = vand.u32 %v1309, 15
        %v1342 = vand.u32 %v1310, 15
        %v1343 = vand.u32 %v1311, 15
        %v1344 = vand.u32 %v1312, 15
        %v1345 = vand.u32 %v1313, 15
        %v1346 = vand.u32 %v1314, 15
        %v1347 = vand.u32 %v1315, 15
        %v1348 = vand.u32 %v1316, 15
        %v1349 = vand.u32 %v1317, 15
        %v1350 = vand.u32 %v1318, 15
        %v1351 = vand.u32 %v1319, 15
        %v1352 = vand.u32 %v1320, 15
        %v1353 = vand.u32 %v1321, 15
        %v1354 = vand.u32 %v1322, 15
        %v1355 = vand.u32 %v1323, 15
        %v1356 = vand.u32 %v1324, 15
        %v1357 = vand.u32 %v1325, 15
        %v1358 = vand.u32 %v1326, 15
        %v1359 = vand.u32 %v1327, 15
        %v1360 = vand.u32 %v1328, 15
        %v1361 = vand.u32 %v1329, 15
        %v1362 = vand.u32 %v1330, 15
        %v1363 = vand.u32 %v1331, 15
        %v1364 = vand.u32 %v1332, 15
        %v1365 = vcvt.s32.f32 %v1333
        %v1366 = vcvt.s32.f32 %v1334
        %v1367 = vcvt.s32.f32 %v1335
        %v1368 = vcvt.s32.f32 %v1336
        %v1369 = vcvt.s32.f32 %v1337
        %v1370 = vcvt.s32.f32 %v1338
        %v1371 = vcvt.s32.f32 %v1339
        %v1372 = vcvt.s32.f32 %v1340
        %v1373 = vcvt.s32.f32 %v1341
        %v1374 = vcvt.s32.f32 %v1342
        %v1375 = vcvt.s32.f32 %v1343
        %v1376 = vcvt.s32.f32 %v1344
        %v1377 = vcvt.s32.f32 %v1345
        %v1378 = vcvt.s32.f32 %v1346
        %v1379 = vcvt.s32.f32 %v1347
        %v1380 = vcvt.s32.f32 %v1348
        %v1381 = vcvt.s32.f32 %v1349
        %v1382 = vcvt.s32.f32 %v1350
        %v1383 = vcvt.s32.f32 %v1351
        %v1384 = vcvt.s32.f32 %v1352
        %v1385 = vcvt.s32.f32 %v1353
        %v1386 = vcvt.s32.f32 %v1354
        %v1387 = vcvt.s32.f32 %v1355
        %v1388 = vcvt.s32.f32 %v1356
        %v1389 = vcvt.s32.f32 %v1357
        %v1390 = vcvt.s32.f32 %v1358
        %v1391 = vcvt.s32.f32 %v1359
        %v1392 = vcvt.s32.f32 %v1360
        %v1393 = vcvt.s32.f32 %v1361
        %v1394 = vcvt.s32.f32 %v1362
        %v1395 = vcvt.s32.f32 %v1363
        %v1396 = vcvt.s32.f32 %v1364
        %v1397 = vpack.c.bf16 %v1367, %v1365
        %v1398 = vpack.c.bf16 %v1368, %v1366
        %v1399 = vpack.c.bf16 %v1371, %v1369
        %v1400 = vpack.c.bf16 %v1372, %v1370
        %v1401 = vpack.c.bf16 %v1375, %v1373
        %v1402 = vpack.c.bf16 %v1376, %v1374
        %v1403 = vpack.c.bf16 %v1379, %v1377
        %v1404 = vpack.c.bf16 %v1380, %v1378
        %v1405 = vpack.c.bf16 %v1383, %v1381
        %v1406 = vpack.c.bf16 %v1384, %v1382
        %v1407 = vpack.c.bf16 %v1387, %v1385
        %v1408 = vpack.c.bf16 %v1388, %v1386
        %v1409 = vpack.c.bf16 %v1391, %v1389
        %v1410 = vpack.c.bf16 %v1392, %v1390
        %v1411 = vpack.c.bf16 %v1395, %v1393
        %v1412 = vpack.c.bf16 %v1396, %v1394
        %1413 = vmatprep.subr.bf16.mxu0 %v1412
        %1414 = vmatpush1.bf16.msra.mxu0 %v1411
        %1415 = vmatprep.subr.bf16.mxu0 %v1410
        %1416 = vmatpush1.bf16.msra.mxu0 %v1409
        %1417 = vmatprep.subr.bf16.mxu0 %v1408
        %1418 = vmatpush1.bf16.msra.mxu0 %v1407
        %1419 = vmatprep.subr.bf16.mxu0 %v1406
        %1420 = vmatpush1.bf16.msra.mxu0 %v1405
        %1421 = vmatprep.subr.bf16.mxu0 %v1404
        %1422 = vmatpush1.bf16.msra.mxu0 %v1403
        %1423 = vmatprep.subr.bf16.mxu0 %v1402
        %1424 = vmatpush1.bf16.msra.mxu0 %v1401
        %1425 = vmatprep.subr.bf16.mxu0 %v1400
        %1426 = vmatpush1.bf16.msra.mxu0 %v1399
        %1427 = vmatprep.subr.bf16.mxu0 %v1398
        %1428 = vmatpush1.bf16.msra.mxu0 %v1397
        %1429 = vmatprep.subr.bf16.mxu0 0
        %1430 = vmatpush2.bf16.msra.mxu0 0
        %1431 = vmatprep.subr.bf16.mxu0 0
        %1432 = vmatpush2.bf16.msra.mxu0 0
        %1433 = vmatprep.subr.bf16.mxu0 0
        %1434 = vmatpush2.bf16.msra.mxu0 0
        %1435 = vmatprep.subr.bf16.mxu0 0
        %1436 = vmatpush2.bf16.msra.mxu0 0
        %1437 = vmatprep.subr.bf16.mxu0 0
        %1438 = vmatpush2.bf16.msra.mxu0 0
        %1439 = vmatprep.subr.bf16.mxu0 0
        %1440 = vmatpush2.bf16.msra.mxu0 0
        %1441 = vmatprep.subr.bf16.mxu0 0
        %1442 = vmatpush2.bf16.msra.mxu0 0
        %1443 = vmatprep.subr.bf16.mxu0 0
        %1444 = vmatpush2.bf16.msra.mxu0 0
        %1445 = vmatprep.mubr.bf16.mxu0 0
        %1446 = vmatmul.mubr.bf16.gmra.mxu0 %v984
        %v1447 = vpop.f32.mrf.mxu0
        %v1448 = vadd.f32 0.0, %v1447
        %v1449 = vpop.f32.mrf.mxu0
        %v1450 = vadd.f32 0.0, %v1449
        %v1451 = vpop.f32.mrf.mxu0
        %v1452 = vadd.f32 0.0, %v1451
        %v1453 = vpop.f32.mrf.mxu0
        %v1454 = vadd.f32 0.0, %v1453
        %1455 = vdwg.mxu0
        %v1456 = vld [vmem:[%s514] sm:$0x3]
        %v1458 = vlaneseq
        %v1459 = vshrl.u32 %v1458, 7
        %v1460 = vsub.s32 0, %v1459
        %v1461 = vrot.slane %v1456, %v1460
        %v1462 = vlaneseq
        %v1463 = vshrl.u32 %v1462, 7
        %v1464 = vsub.s32 1, %v1463
        %v1465 = vrot.slane %v1456, %v1464
        %v1468 = vmul.f32 %v1448, %v1461
        %v1469 = vmul.f32 %v1450, %v1465
        %v1470 = vmul.f32 %v1452, %v1461
        %v1471 = vmul.f32 %v1454, %v1465
        %v1472 = vld [vmem:[%s523] sm:$0x3]
        %v1474 = vlaneseq
        %v1475 = vshrl.u32 %v1474, 7
        %v1476 = vsub.s32 0, %v1475
        %v1477 = vrot.slane %v1472, %v1476
        %v1478 = vlaneseq
        %v1479 = vshrl.u32 %v1478, 7
        %v1480 = vsub.s32 1, %v1479
        %v1481 = vrot.slane %v1472, %v1480
        %v1484 = vmul.f32 %v630, %v1477
        %v1485 = vmul.f32 %v630, %v1481
        %v1486 = vmul.f32 %v632, %v1477
        %v1487 = vmul.f32 %v632, %v1481
        %v1488 = vsub.f32 %v1468, %v1484
        %v1489 = vsub.f32 %v1469, %v1485
        %v1490 = vsub.f32 %v1470, %v1486
        %v1491 = vsub.f32 %v1471, %v1487
        %v1492 = vadd.f32 %v623, %v1488
        %v1493 = vadd.f32 %v624, %v1489
        %v1494 = vadd.f32 %v625, %v1490
        %v1495 = vadd.f32 %v626, %v1491
        %v1496 = vrot.slane %v613, 4
        %v1497 = vrot.slane %v616, 4
        %v1500 = vunpack.c.l.bf16 %v1496
        %v1501 = vunpack.c.l.bf16 %v1497
        %1502 = vadd.xlane.f32.xlu0 %v1500
        %v1503 = vpop.xlane.xlu0 %1502
        %1504 = vadd.xlane.f32.xlu0 %v1501
        %v1505 = vpop.xlane.xlu0 %1504
        %v1506 = vld [vmem:[%s478 + $0x20] sm:$0xff]
        %v1507 = vld [vmem:[%s478 + $0x28] sm:$0xff]
        %v1508 = vld [vmem:[%s478 + $0x30] sm:$0xff]
        %v1509 = vld [vmem:[%s478 + $0x38] sm:$0xff]
        %v1510 = vcombine.low %v1506, %v1507
        %v1511 = vcombine.high %v1506, %v1507
        %v1513 = vunpack.c.l.s4 1966171168
        %v1514 = vunpack.c.0.s8 %v1513
        %v1515 = vlaneseq
        %v1516 = vshrl.u32 %v1515, 7
        %v1517 = vsub.s32 %v1514, %v1516
        %v1518 = vrot.slane %v1510, %v1517
        %v1520 = vunpack.c.l.s4 1966171168
        %v1521 = vunpack.c.0.s8 %v1520
        %v1522 = vlaneseq
        %v1523 = vshrl.u32 %v1522, 7
        %v1524 = vsub.s32 %v1521, %v1523
        %v1525 = vrot.slane %v1511, %v1524
        %v1526 = vcombine.high %v1518, %v1518
        %v1527 = vcombine.high %v1525, %v1525
        %v1529 = vunpack.c.l.s4 1966171168
        %v1530 = vunpack.c.0.s8 %v1529
        %v1531 = vlaneseq
        %v1532 = vshrl.u32 %v1531, 7
        %v1533 = vsub.s32 %v1530, %v1532
        %v1534 = vrot.slane %v1518, %v1533
        %v1536 = vunpack.c.l.s4 1966171168
        %v1537 = vunpack.c.0.s8 %v1536
        %v1538 = vlaneseq
        %v1539 = vshrl.u32 %v1538, 7
        %v1540 = vsub.s32 %v1537, %v1539
        %v1541 = vrot.slane %v1525, %v1540
        %v1543 = vunpack.c.l.s4 1966171168
        %v1544 = vunpack.c.0.s8 %v1543
        %v1545 = vlaneseq
        %v1546 = vshrl.u32 %v1545, 7
        %v1547 = vsub.s32 %v1544, %v1546
        %v1548 = vrot.slane %v1526, %v1547
        %v1550 = vunpack.c.l.s4 1966171168
        %v1551 = vunpack.c.0.s8 %v1550
        %v1552 = vlaneseq
        %v1553 = vshrl.u32 %v1552, 7
        %v1554 = vsub.s32 %v1551, %v1553
        %v1555 = vrot.slane %v1527, %v1554
        %v1556 = vcombine.high %v1534, %v1534
        %v1557 = vcombine.high %v1541, %v1541
        %v1558 = vcombine.high %v1548, %v1548
        %v1559 = vcombine.high %v1555, %v1555
        %v1560 = vcombine.low %v1508, %v1509
        %v1561 = vcombine.high %v1508, %v1509
        %v1563 = vunpack.c.l.s4 1966171168
        %v1564 = vunpack.c.0.s8 %v1563
        %v1565 = vlaneseq
        %v1566 = vshrl.u32 %v1565, 7
        %v1567 = vsub.s32 %v1564, %v1566
        %v1568 = vrot.slane %v1560, %v1567
        %v1570 = vunpack.c.l.s4 1966171168
        %v1571 = vunpack.c.0.s8 %v1570
        %v1572 = vlaneseq
        %v1573 = vshrl.u32 %v1572, 7
        %v1574 = vsub.s32 %v1571, %v1573
        %v1575 = vrot.slane %v1561, %v1574
        %v1576 = vcombine.high %v1568, %v1568
        %v1577 = vcombine.high %v1575, %v1575
        %v1579 = vunpack.c.l.s4 1966171168
        %v1580 = vunpack.c.0.s8 %v1579
        %v1581 = vlaneseq
        %v1582 = vshrl.u32 %v1581, 7
        %v1583 = vsub.s32 %v1580, %v1582
        %v1584 = vrot.slane %v1568, %v1583
        %v1586 = vunpack.c.l.s4 1966171168
        %v1587 = vunpack.c.0.s8 %v1586
        %v1588 = vlaneseq
        %v1589 = vshrl.u32 %v1588, 7
        %v1590 = vsub.s32 %v1587, %v1589
        %v1591 = vrot.slane %v1575, %v1590
        %v1593 = vunpack.c.l.s4 1966171168
        %v1594 = vunpack.c.0.s8 %v1593
        %v1595 = vlaneseq
        %v1596 = vshrl.u32 %v1595, 7
        %v1597 = vsub.s32 %v1594, %v1596
        %v1598 = vrot.slane %v1576, %v1597
        %v1600 = vunpack.c.l.s4 1966171168
        %v1601 = vunpack.c.0.s8 %v1600
        %v1602 = vlaneseq
        %v1603 = vshrl.u32 %v1602, 7
        %v1604 = vsub.s32 %v1601, %v1603
        %v1605 = vrot.slane %v1577, %v1604
        %v1606 = vcombine.high %v1584, %v1584
        %v1607 = vcombine.high %v1591, %v1591
        %v1608 = vcombine.high %v1598, %v1598
        %v1609 = vcombine.high %v1605, %v1605
        %v1610 = vlaneseq
        %v1611 = vshrl.u32 %v1610, 7
        %v1612 = vsub.s32 0, %v1611
        %v1613 = vrot.slane %v1534, %v1612
        %v1614 = vlaneseq
        %v1615 = vshrl.u32 %v1614, 7
        %v1616 = vsub.s32 1, %v1615
        %v1617 = vrot.slane %v1534, %v1616
        %v1618 = vlaneseq
        %v1619 = vshrl.u32 %v1618, 7
        %v1620 = vsub.s32 0, %v1619
        %v1621 = vrot.slane %v1548, %v1620
        %v1622 = vlaneseq
        %v1623 = vshrl.u32 %v1622, 7
        %v1624 = vsub.s32 1, %v1623
        %v1625 = vrot.slane %v1548, %v1624
        %v1626 = vlaneseq
        %v1627 = vshrl.u32 %v1626, 7
        %v1628 = vsub.s32 0, %v1627
        %v1629 = vrot.slane %v1556, %v1628
        %v1630 = vlaneseq
        %v1631 = vshrl.u32 %v1630, 7
        %v1632 = vsub.s32 1, %v1631
        %v1633 = vrot.slane %v1556, %v1632
        %v1634 = vlaneseq
        %v1635 = vshrl.u32 %v1634, 7
        %v1636 = vsub.s32 0, %v1635
        %v1637 = vrot.slane %v1558, %v1636
        %v1638 = vlaneseq
        %v1639 = vshrl.u32 %v1638, 7
        %v1640 = vsub.s32 1, %v1639
        %v1641 = vrot.slane %v1558, %v1640
        %v1642 = vlaneseq
        %v1643 = vshrl.u32 %v1642, 7
        %v1644 = vsub.s32 0, %v1643
        %v1645 = vrot.slane %v1541, %v1644
        %v1646 = vlaneseq
        %v1647 = vshrl.u32 %v1646, 7
        %v1648 = vsub.s32 1, %v1647
        %v1649 = vrot.slane %v1541, %v1648
        %v1650 = vlaneseq
        %v1651 = vshrl.u32 %v1650, 7
        %v1652 = vsub.s32 0, %v1651
        %v1653 = vrot.slane %v1555, %v1652
        %v1654 = vlaneseq
        %v1655 = vshrl.u32 %v1654, 7
        %v1656 = vsub.s32 1, %v1655
        %v1657 = vrot.slane %v1555, %v1656
        %v1658 = vlaneseq
        %v1659 = vshrl.u32 %v1658, 7
        %v1660 = vsub.s32 0, %v1659
        %v1661 = vrot.slane %v1557, %v1660
        %v1662 = vlaneseq
        %v1663 = vshrl.u32 %v1662, 7
        %v1664 = vsub.s32 1, %v1663
        %v1665 = vrot.slane %v1557, %v1664
        %v1666 = vlaneseq
        %v1667 = vshrl.u32 %v1666, 7
        %v1668 = vsub.s32 0, %v1667
        %v1669 = vrot.slane %v1559, %v1668
        %v1670 = vlaneseq
        %v1671 = vshrl.u32 %v1670, 7
        %v1672 = vsub.s32 1, %v1671
        %v1673 = vrot.slane %v1559, %v1672
        %v1674 = vlaneseq
        %v1675 = vshrl.u32 %v1674, 7
        %v1676 = vsub.s32 0, %v1675
        %v1677 = vrot.slane %v1584, %v1676
        %v1678 = vlaneseq
        %v1679 = vshrl.u32 %v1678, 7
        %v1680 = vsub.s32 1, %v1679
        %v1681 = vrot.slane %v1584, %v1680
        %v1682 = vlaneseq
        %v1683 = vshrl.u32 %v1682, 7
        %v1684 = vsub.s32 0, %v1683
        %v1685 = vrot.slane %v1598, %v1684
        %v1686 = vlaneseq
        %v1687 = vshrl.u32 %v1686, 7
        %v1688 = vsub.s32 1, %v1687
        %v1689 = vrot.slane %v1598, %v1688
        %v1690 = vlaneseq
        %v1691 = vshrl.u32 %v1690, 7
        %v1692 = vsub.s32 0, %v1691
        %v1693 = vrot.slane %v1606, %v1692
        %v1694 = vlaneseq
        %v1695 = vshrl.u32 %v1694, 7
        %v1696 = vsub.s32 1, %v1695
        %v1697 = vrot.slane %v1606, %v1696
        %v1698 = vlaneseq
        %v1699 = vshrl.u32 %v1698, 7
        %v1700 = vsub.s32 0, %v1699
        %v1701 = vrot.slane %v1608, %v1700
        %v1702 = vlaneseq
        %v1703 = vshrl.u32 %v1702, 7
        %v1704 = vsub.s32 1, %v1703
        %v1705 = vrot.slane %v1608, %v1704
        %v1706 = vlaneseq
        %v1707 = vshrl.u32 %v1706, 7
        %v1708 = vsub.s32 0, %v1707
        %v1709 = vrot.slane %v1591, %v1708
        %v1710 = vlaneseq
        %v1711 = vshrl.u32 %v1710, 7
        %v1712 = vsub.s32 1, %v1711
        %v1713 = vrot.slane %v1591, %v1712
        %v1714 = vlaneseq
        %v1715 = vshrl.u32 %v1714, 7
        %v1716 = vsub.s32 0, %v1715
        %v1717 = vrot.slane %v1605, %v1716
        %v1718 = vlaneseq
        %v1719 = vshrl.u32 %v1718, 7
        %v1720 = vsub.s32 1, %v1719
        %v1721 = vrot.slane %v1605, %v1720
        %v1722 = vlaneseq
        %v1723 = vshrl.u32 %v1722, 7
        %v1724 = vsub.s32 0, %v1723
        %v1725 = vrot.slane %v1607, %v1724
        %v1726 = vlaneseq
        %v1727 = vshrl.u32 %v1726, 7
        %v1728 = vsub.s32 1, %v1727
        %v1729 = vrot.slane %v1607, %v1728
        %v1730 = vlaneseq
        %v1731 = vshrl.u32 %v1730, 7
        %v1732 = vsub.s32 0, %v1731
        %v1733 = vrot.slane %v1609, %v1732
        %v1734 = vlaneseq
        %v1735 = vshrl.u32 %v1734, 7
        %v1736 = vsub.s32 1, %v1735
        %v1737 = vrot.slane %v1609, %v1736
        %v1738 = vshra.s32 %v1613, %v639
        %v1739 = vshra.s32 %v1617, %v639
        %v1740 = vshra.s32 %v1621, %v639
        %v1741 = vshra.s32 %v1625, %v639
        %v1742 = vshra.s32 %v1629, %v639
        %v1743 = vshra.s32 %v1633, %v639
        %v1744 = vshra.s32 %v1637, %v639
        %v1745 = vshra.s32 %v1641, %v639
        %v1746 = vshra.s32 %v1645, %v639
        %v1747 = vshra.s32 %v1649, %v639
        %v1748 = vshra.s32 %v1653, %v639
        %v1749 = vshra.s32 %v1657, %v639
        %v1750 = vshra.s32 %v1661, %v639
        %v1751 = vshra.s32 %v1665, %v639
        %v1752 = vshra.s32 %v1669, %v639
        %v1753 = vshra.s32 %v1673, %v639
        %v1754 = vshra.s32 %v1677, %v639
        %v1755 = vshra.s32 %v1681, %v639
        %v1756 = vshra.s32 %v1685, %v639
        %v1757 = vshra.s32 %v1689, %v639
        %v1758 = vshra.s32 %v1693, %v639
        %v1759 = vshra.s32 %v1697, %v639
        %v1760 = vshra.s32 %v1701, %v639
        %v1761 = vshra.s32 %v1705, %v639
        %v1762 = vshra.s32 %v1709, %v639
        %v1763 = vshra.s32 %v1713, %v639
        %v1764 = vshra.s32 %v1717, %v639
        %v1765 = vshra.s32 %v1721, %v639
        %v1766 = vshra.s32 %v1725, %v639
        %v1767 = vshra.s32 %v1729, %v639
        %v1768 = vshra.s32 %v1733, %v639
        %v1769 = vshra.s32 %v1737, %v639
        %v1770 = vand.u32 %v1738, 15
        %v1771 = vand.u32 %v1739, 15
        %v1772 = vand.u32 %v1740, 15
        %v1773 = vand.u32 %v1741, 15
        %v1774 = vand.u32 %v1742, 15
        %v1775 = vand.u32 %v1743, 15
        %v1776 = vand.u32 %v1744, 15
        %v1777 = vand.u32 %v1745, 15
        %v1778 = vand.u32 %v1746, 15
        %v1779 = vand.u32 %v1747, 15
        %v1780 = vand.u32 %v1748, 15
        %v1781 = vand.u32 %v1749, 15
        %v1782 = vand.u32 %v1750, 15
        %v1783 = vand.u32 %v1751, 15
        %v1784 = vand.u32 %v1752, 15
        %v1785 = vand.u32 %v1753, 15
        %v1786 = vand.u32 %v1754, 15
        %v1787 = vand.u32 %v1755, 15
        %v1788 = vand.u32 %v1756, 15
        %v1789 = vand.u32 %v1757, 15
        %v1790 = vand.u32 %v1758, 15
        %v1791 = vand.u32 %v1759, 15
        %v1792 = vand.u32 %v1760, 15
        %v1793 = vand.u32 %v1761, 15
        %v1794 = vand.u32 %v1762, 15
        %v1795 = vand.u32 %v1763, 15
        %v1796 = vand.u32 %v1764, 15
        %v1797 = vand.u32 %v1765, 15
        %v1798 = vand.u32 %v1766, 15
        %v1799 = vand.u32 %v1767, 15
        %v1800 = vand.u32 %v1768, 15
        %v1801 = vand.u32 %v1769, 15
        %v1802 = vcvt.s32.f32 %v1770
        %v1803 = vcvt.s32.f32 %v1771
        %v1804 = vcvt.s32.f32 %v1772
        %v1805 = vcvt.s32.f32 %v1773
        %v1806 = vcvt.s32.f32 %v1774
        %v1807 = vcvt.s32.f32 %v1775
        %v1808 = vcvt.s32.f32 %v1776
        %v1809 = vcvt.s32.f32 %v1777
        %v1810 = vcvt.s32.f32 %v1778
        %v1811 = vcvt.s32.f32 %v1779
        %v1812 = vcvt.s32.f32 %v1780
        %v1813 = vcvt.s32.f32 %v1781
        %v1814 = vcvt.s32.f32 %v1782
        %v1815 = vcvt.s32.f32 %v1783
        %v1816 = vcvt.s32.f32 %v1784
        %v1817 = vcvt.s32.f32 %v1785
        %v1818 = vcvt.s32.f32 %v1786
        %v1819 = vcvt.s32.f32 %v1787
        %v1820 = vcvt.s32.f32 %v1788
        %v1821 = vcvt.s32.f32 %v1789
        %v1822 = vcvt.s32.f32 %v1790
        %v1823 = vcvt.s32.f32 %v1791
        %v1824 = vcvt.s32.f32 %v1792
        %v1825 = vcvt.s32.f32 %v1793
        %v1826 = vcvt.s32.f32 %v1794
        %v1827 = vcvt.s32.f32 %v1795
        %v1828 = vcvt.s32.f32 %v1796
        %v1829 = vcvt.s32.f32 %v1797
        %v1830 = vcvt.s32.f32 %v1798
        %v1831 = vcvt.s32.f32 %v1799
        %v1832 = vcvt.s32.f32 %v1800
        %v1833 = vcvt.s32.f32 %v1801
        %v1834 = vpack.c.bf16 %v1804, %v1802
        %v1835 = vpack.c.bf16 %v1805, %v1803
        %v1836 = vpack.c.bf16 %v1808, %v1806
        %v1837 = vpack.c.bf16 %v1809, %v1807
        %v1838 = vpack.c.bf16 %v1812, %v1810
        %v1839 = vpack.c.bf16 %v1813, %v1811
        %v1840 = vpack.c.bf16 %v1816, %v1814
        %v1841 = vpack.c.bf16 %v1817, %v1815
        %v1842 = vpack.c.bf16 %v1820, %v1818
        %v1843 = vpack.c.bf16 %v1821, %v1819
        %v1844 = vpack.c.bf16 %v1824, %v1822
        %v1845 = vpack.c.bf16 %v1825, %v1823
        %v1846 = vpack.c.bf16 %v1828, %v1826
        %v1847 = vpack.c.bf16 %v1829, %v1827
        %v1848 = vpack.c.bf16 %v1832, %v1830
        %v1849 = vpack.c.bf16 %v1833, %v1831
        %v1850 = vunpack.c.h.b16 %v613
        %v1851 = vunpack.c.h.b16 %v616
        %v1852 = vpack.c.b16 %v1851, %v1850
        %1854 = vmatprep.subr.bf16.mxu0 %v1849
        %1855 = vmatpush1.bf16.msra.mxu0 %v1848
        %1856 = vmatprep.subr.bf16.mxu0 %v1847
        %1857 = vmatpush1.bf16.msra.mxu0 %v1846
        %1858 = vmatprep.subr.bf16.mxu0 %v1845
        %1859 = vmatpush1.bf16.msra.mxu0 %v1844
        %1860 = vmatprep.subr.bf16.mxu0 %v1843
        %1861 = vmatpush1.bf16.msra.mxu0 %v1842
        %1862 = vmatprep.subr.bf16.mxu0 %v1841
        %1863 = vmatpush1.bf16.msra.mxu0 %v1840
        %1864 = vmatprep.subr.bf16.mxu0 %v1839
        %1865 = vmatpush1.bf16.msra.mxu0 %v1838
        %1866 = vmatprep.subr.bf16.mxu0 %v1837
        %1867 = vmatpush1.bf16.msra.mxu0 %v1836
        %1868 = vmatprep.subr.bf16.mxu0 %v1835
        %1869 = vmatpush1.bf16.msra.mxu0 %v1834
        %1870 = vmatprep.subr.bf16.mxu0 0
        %1871 = vmatpush2.bf16.msra.mxu0 0
        %1872 = vmatprep.subr.bf16.mxu0 0
        %1873 = vmatpush2.bf16.msra.mxu0 0
        %1874 = vmatprep.subr.bf16.mxu0 0
        %1875 = vmatpush2.bf16.msra.mxu0 0
        %1876 = vmatprep.subr.bf16.mxu0 0
        %1877 = vmatpush2.bf16.msra.mxu0 0
        %1878 = vmatprep.subr.bf16.mxu0 0
        %1879 = vmatpush2.bf16.msra.mxu0 0
        %1880 = vmatprep.subr.bf16.mxu0 0
        %1881 = vmatpush2.bf16.msra.mxu0 0
        %1882 = vmatprep.subr.bf16.mxu0 0
        %1883 = vmatpush2.bf16.msra.mxu0 0
        %1884 = vmatprep.subr.bf16.mxu0 0
        %1885 = vmatpush2.bf16.msra.mxu0 0
        %1886 = vmatprep.mubr.bf16.mxu0 0
        %1887 = vmatmul.mubr.bf16.gmra.mxu0 %v1852
        %v1888 = vpop.f32.mrf.mxu0
        %v1889 = vadd.f32 0.0, %v1888
        %v1890 = vpop.f32.mrf.mxu0
        %v1891 = vadd.f32 0.0, %v1890
        %v1892 = vpop.f32.mrf.mxu0
        %v1893 = vadd.f32 0.0, %v1892
        %v1894 = vpop.f32.mrf.mxu0
        %v1895 = vadd.f32 0.0, %v1894
        %1896 = vdwg.mxu0
        %s1897 = scalar_lea.vmem %s487, 2 [#allocation9]
        %v1898 = vld [vmem:[%s1897] sm:$0x3]
        %v1900 = vlaneseq
        %v1901 = vshrl.u32 %v1900, 7
        %v1902 = vsub.s32 0, %v1901
        %v1903 = vrot.slane %v1898, %v1902
        %v1904 = vlaneseq
        %v1905 = vshrl.u32 %v1904, 7
        %v1906 = vsub.s32 1, %v1905
        %v1907 = vrot.slane %v1898, %v1906
        %v1910 = vmul.f32 %v1889, %v1903
        %v1911 = vmul.f32 %v1891, %v1907
        %v1912 = vmul.f32 %v1893, %v1903
        %v1913 = vmul.f32 %v1895, %v1907
        %s1914 = scalar_lea.vmem %s496, 2 [#allocation10]
        %v1915 = vld [vmem:[%s1914] sm:$0x3]
        %v1917 = vlaneseq
        %v1918 = vshrl.u32 %v1917, 7
        %v1919 = vsub.s32 0, %v1918
        %v1920 = vrot.slane %v1915, %v1919
        %v1921 = vlaneseq
        %v1922 = vshrl.u32 %v1921, 7
        %v1923 = vsub.s32 1, %v1922
        %v1924 = vrot.slane %v1915, %v1923
        %v1927 = vmul.f32 %v1503, %v1920
        %v1928 = vmul.f32 %v1503, %v1924
        %v1929 = vmul.f32 %v1505, %v1920
        %v1930 = vmul.f32 %v1505, %v1924
        %v1931 = vsub.f32 %v1910, %v1927
        %v1932 = vsub.f32 %v1911, %v1928
        %v1933 = vsub.f32 %v1912, %v1929
        %v1934 = vsub.f32 %v1913, %v1930
        %v1935 = vadd.f32 %v1065, %v1931
        %v1936 = vadd.f32 %v1066, %v1932
        %v1937 = vadd.f32 %v1067, %v1933
        %v1938 = vadd.f32 %v1068, %v1934
        %v1939 = vld [vmem:[%s505 + $0x20] sm:$0xff]
        %v1940 = vld [vmem:[%s505 + $0x28] sm:$0xff]
        %v1941 = vld [vmem:[%s505 + $0x30] sm:$0xff]
        %v1942 = vld [vmem:[%s505 + $0x38] sm:$0xff]
        %v1943 = vcombine.low %v1939, %v1940
        %v1944 = vcombine.high %v1939, %v1940
        %v1946 = vunpack.c.l.s4 1966171168
        %v1947 = vunpack.c.0.s8 %v1946
        %v1948 = vlaneseq
        %v1949 = vshrl.u32 %v1948, 7
        %v1950 = vsub.s32 %v1947, %v1949
        %v1951 = vrot.slane %v1943, %v1950
        %v1953 = vunpack.c.l.s4 1966171168
        %v1954 = vunpack.c.0.s8 %v1953
        %v1955 = vlaneseq
        %v1956 = vshrl.u32 %v1955, 7
        %v1957 = vsub.s32 %v1954, %v1956
        %v1958 = vrot.slane %v1944, %v1957
        %v1959 = vcombine.high %v1951, %v1951
        %v1960 = vcombine.high %v1958, %v1958
        %v1962 = vunpack.c.l.s4 1966171168
        %v1963 = vunpack.c.0.s8 %v1962
        %v1964 = vlaneseq
        %v1965 = vshrl.u32 %v1964, 7
        %v1966 = vsub.s32 %v1963, %v1965
        %v1967 = vrot.slane %v1951, %v1966
        %v1969 = vunpack.c.l.s4 1966171168
        %v1970 = vunpack.c.0.s8 %v1969
        %v1971 = vlaneseq
        %v1972 = vshrl.u32 %v1971, 7
        %v1973 = vsub.s32 %v1970, %v1972
        %v1974 = vrot.slane %v1958, %v1973
        %v1976 = vunpack.c.l.s4 1966171168
        %v1977 = vunpack.c.0.s8 %v1976
        %v1978 = vlaneseq
        %v1979 = vshrl.u32 %v1978, 7
        %v1980 = vsub.s32 %v1977, %v1979
        %v1981 = vrot.slane %v1959, %v1980
        %v1983 = vunpack.c.l.s4 1966171168
        %v1984 = vunpack.c.0.s8 %v1983
        %v1985 = vlaneseq
        %v1986 = vshrl.u32 %v1985, 7
        %v1987 = vsub.s32 %v1984, %v1986
        %v1988 = vrot.slane %v1960, %v1987
        %v1989 = vcombine.high %v1967, %v1967
        %v1990 = vcombine.high %v1974, %v1974
        %v1991 = vcombine.high %v1981, %v1981
        %v1992 = vcombine.high %v1988, %v1988
        %v1993 = vcombine.low %v1941, %v1942
        %v1994 = vcombine.high %v1941, %v1942
        %v1996 = vunpack.c.l.s4 1966171168
        %v1997 = vunpack.c.0.s8 %v1996
        %v1998 = vlaneseq
        %v1999 = vshrl.u32 %v1998, 7
        %v2000 = vsub.s32 %v1997, %v1999
        %v2001 = vrot.slane %v1993, %v2000
        %v2003 = vunpack.c.l.s4 1966171168
        %v2004 = vunpack.c.0.s8 %v2003
        %v2005 = vlaneseq
        %v2006 = vshrl.u32 %v2005, 7
        %v2007 = vsub.s32 %v2004, %v2006
        %v2008 = vrot.slane %v1994, %v2007
        %v2009 = vcombine.high %v2001, %v2001
        %v2010 = vcombine.high %v2008, %v2008
        %v2012 = vunpack.c.l.s4 1966171168
        %v2013 = vunpack.c.0.s8 %v2012
        %v2014 = vlaneseq
        %v2015 = vshrl.u32 %v2014, 7
        %v2016 = vsub.s32 %v2013, %v2015
        %v2017 = vrot.slane %v2001, %v2016
        %v2019 = vunpack.c.l.s4 1966171168
        %v2020 = vunpack.c.0.s8 %v2019
        %v2021 = vlaneseq
        %v2022 = vshrl.u32 %v2021, 7
        %v2023 = vsub.s32 %v2020, %v2022
        %v2024 = vrot.slane %v2008, %v2023
        %v2026 = vunpack.c.l.s4 1966171168
        %v2027 = vunpack.c.0.s8 %v2026
        %v2028 = vlaneseq
        %v2029 = vshrl.u32 %v2028, 7
        %v2030 = vsub.s32 %v2027, %v2029
        %v2031 = vrot.slane %v2009, %v2030
        %v2033 = vunpack.c.l.s4 1966171168
        %v2034 = vunpack.c.0.s8 %v2033
        %v2035 = vlaneseq
        %v2036 = vshrl.u32 %v2035, 7
        %v2037 = vsub.s32 %v2034, %v2036
        %v2038 = vrot.slane %v2010, %v2037
        %v2039 = vcombine.high %v2017, %v2017
        %v2040 = vcombine.high %v2024, %v2024
        %v2041 = vcombine.high %v2031, %v2031
        %v2042 = vcombine.high %v2038, %v2038
        %v2043 = vlaneseq
        %v2044 = vshrl.u32 %v2043, 7
        %v2045 = vsub.s32 0, %v2044
        %v2046 = vrot.slane %v1967, %v2045
        %v2047 = vlaneseq
        %v2048 = vshrl.u32 %v2047, 7
        %v2049 = vsub.s32 1, %v2048
        %v2050 = vrot.slane %v1967, %v2049
        %v2051 = vlaneseq
        %v2052 = vshrl.u32 %v2051, 7
        %v2053 = vsub.s32 0, %v2052
        %v2054 = vrot.slane %v1981, %v2053
        %v2055 = vlaneseq
        %v2056 = vshrl.u32 %v2055, 7
        %v2057 = vsub.s32 1, %v2056
        %v2058 = vrot.slane %v1981, %v2057
        %v2059 = vlaneseq
        %v2060 = vshrl.u32 %v2059, 7
        %v2061 = vsub.s32 0, %v2060
        %v2062 = vrot.slane %v1989, %v2061
        %v2063 = vlaneseq
        %v2064 = vshrl.u32 %v2063, 7
        %v2065 = vsub.s32 1, %v2064
        %v2066 = vrot.slane %v1989, %v2065
        %v2067 = vlaneseq
        %v2068 = vshrl.u32 %v2067, 7
        %v2069 = vsub.s32 0, %v2068
        %v2070 = vrot.slane %v1991, %v2069
        %v2071 = vlaneseq
        %v2072 = vshrl.u32 %v2071, 7
        %v2073 = vsub.s32 1, %v2072
        %v2074 = vrot.slane %v1991, %v2073
        %v2075 = vlaneseq
        %v2076 = vshrl.u32 %v2075, 7
        %v2077 = vsub.s32 0, %v2076
        %v2078 = vrot.slane %v1974, %v2077
        %v2079 = vlaneseq
        %v2080 = vshrl.u32 %v2079, 7
        %v2081 = vsub.s32 1, %v2080
        %v2082 = vrot.slane %v1974, %v2081
        %v2083 = vlaneseq
        %v2084 = vshrl.u32 %v2083, 7
        %v2085 = vsub.s32 0, %v2084
        %v2086 = vrot.slane %v1988, %v2085
        %v2087 = vlaneseq
        %v2088 = vshrl.u32 %v2087, 7
        %v2089 = vsub.s32 1, %v2088
        %v2090 = vrot.slane %v1988, %v2089
        %v2091 = vlaneseq
        %v2092 = vshrl.u32 %v2091, 7
        %v2093 = vsub.s32 0, %v2092
        %v2094 = vrot.slane %v1990, %v2093
        %v2095 = vlaneseq
        %v2096 = vshrl.u32 %v2095, 7
        %v2097 = vsub.s32 1, %v2096
        %v2098 = vrot.slane %v1990, %v2097
        %v2099 = vlaneseq
        %v2100 = vshrl.u32 %v2099, 7
        %v2101 = vsub.s32 0, %v2100
        %v2102 = vrot.slane %v1992, %v2101
        %v2103 = vlaneseq
        %v2104 = vshrl.u32 %v2103, 7
        %v2105 = vsub.s32 1, %v2104
        %v2106 = vrot.slane %v1992, %v2105
        %v2107 = vlaneseq
        %v2108 = vshrl.u32 %v2107, 7
        %v2109 = vsub.s32 0, %v2108
        %v2110 = vrot.slane %v2017, %v2109
        %v2111 = vlaneseq
        %v2112 = vshrl.u32 %v2111, 7
        %v2113 = vsub.s32 1, %v2112
        %v2114 = vrot.slane %v2017, %v2113
        %v2115 = vlaneseq
        %v2116 = vshrl.u32 %v2115, 7
        %v2117 = vsub.s32 0, %v2116
        %v2118 = vrot.slane %v2031, %v2117
        %v2119 = vlaneseq
        %v2120 = vshrl.u32 %v2119, 7
        %v2121 = vsub.s32 1, %v2120
        %v2122 = vrot.slane %v2031, %v2121
        %v2123 = vlaneseq
        %v2124 = vshrl.u32 %v2123, 7
        %v2125 = vsub.s32 0, %v2124
        %v2126 = vrot.slane %v2039, %v2125
        %v2127 = vlaneseq
        %v2128 = vshrl.u32 %v2127, 7
        %v2129 = vsub.s32 1, %v2128
        %v2130 = vrot.slane %v2039, %v2129
        %v2131 = vlaneseq
        %v2132 = vshrl.u32 %v2131, 7
        %v2133 = vsub.s32 0, %v2132
        %v2134 = vrot.slane %v2041, %v2133
        %v2135 = vlaneseq
        %v2136 = vshrl.u32 %v2135, 7
        %v2137 = vsub.s32 1, %v2136
        %v2138 = vrot.slane %v2041, %v2137
        %v2139 = vlaneseq
        %v2140 = vshrl.u32 %v2139, 7
        %v2141 = vsub.s32 0, %v2140
        %v2142 = vrot.slane %v2024, %v2141
        %v2143 = vlaneseq
        %v2144 = vshrl.u32 %v2143, 7
        %v2145 = vsub.s32 1, %v2144
        %v2146 = vrot.slane %v2024, %v2145
        %v2147 = vlaneseq
        %v2148 = vshrl.u32 %v2147, 7
        %v2149 = vsub.s32 0, %v2148
        %v2150 = vrot.slane %v2038, %v2149
        %v2151 = vlaneseq
        %v2152 = vshrl.u32 %v2151, 7
        %v2153 = vsub.s32 1, %v2152
        %v2154 = vrot.slane %v2038, %v2153
        %v2155 = vlaneseq
        %v2156 = vshrl.u32 %v2155, 7
        %v2157 = vsub.s32 0, %v2156
        %v2158 = vrot.slane %v2040, %v2157
        %v2159 = vlaneseq
        %v2160 = vshrl.u32 %v2159, 7
        %v2161 = vsub.s32 1, %v2160
        %v2162 = vrot.slane %v2040, %v2161
        %v2163 = vlaneseq
        %v2164 = vshrl.u32 %v2163, 7
        %v2165 = vsub.s32 0, %v2164
        %v2166 = vrot.slane %v2042, %v2165
        %v2167 = vlaneseq
        %v2168 = vshrl.u32 %v2167, 7
        %v2169 = vsub.s32 1, %v2168
        %v2170 = vrot.slane %v2042, %v2169
        %v2171 = vshra.s32 %v2046, %v639
        %v2172 = vshra.s32 %v2050, %v639
        %v2173 = vshra.s32 %v2054, %v639
        %v2174 = vshra.s32 %v2058, %v639
        %v2175 = vshra.s32 %v2062, %v639
        %v2176 = vshra.s32 %v2066, %v639
        %v2177 = vshra.s32 %v2070, %v639
        %v2178 = vshra.s32 %v2074, %v639
        %v2179 = vshra.s32 %v2078, %v639
        %v2180 = vshra.s32 %v2082, %v639
        %v2181 = vshra.s32 %v2086, %v639
        %v2182 = vshra.s32 %v2090, %v639
        %v2183 = vshra.s32 %v2094, %v639
        %v2184 = vshra.s32 %v2098, %v639
        %v2185 = vshra.s32 %v2102, %v639
        %v2186 = vshra.s32 %v2106, %v639
        %v2187 = vshra.s32 %v2110, %v639
        %v2188 = vshra.s32 %v2114, %v639
        %v2189 = vshra.s32 %v2118, %v639
        %v2190 = vshra.s32 %v2122, %v639
        %v2191 = vshra.s32 %v2126, %v639
        %v2192 = vshra.s32 %v2130, %v639
        %v2193 = vshra.s32 %v2134, %v639
        %v2194 = vshra.s32 %v2138, %v639
        %v2195 = vshra.s32 %v2142, %v639
        %v2196 = vshra.s32 %v2146, %v639
        %v2197 = vshra.s32 %v2150, %v639
        %v2198 = vshra.s32 %v2154, %v639
        %v2199 = vshra.s32 %v2158, %v639
        %v2200 = vshra.s32 %v2162, %v639
        %v2201 = vshra.s32 %v2166, %v639
        %v2202 = vshra.s32 %v2170, %v639
        %v2203 = vand.u32 %v2171, 15
        %v2204 = vand.u32 %v2172, 15
        %v2205 = vand.u32 %v2173, 15
        %v2206 = vand.u32 %v2174, 15
        %v2207 = vand.u32 %v2175, 15
        %v2208 = vand.u32 %v2176, 15
        %v2209 = vand.u32 %v2177, 15
        %v2210 = vand.u32 %v2178, 15
        %v2211 = vand.u32 %v2179, 15
        %v2212 = vand.u32 %v2180, 15
        %v2213 = vand.u32 %v2181, 15
        %v2214 = vand.u32 %v2182, 15
        %v2215 = vand.u32 %v2183, 15
        %v2216 = vand.u32 %v2184, 15
        %v2217 = vand.u32 %v2185, 15
        %v2218 = vand.u32 %v2186, 15
        %v2219 = vand.u32 %v2187, 15
        %v2220 = vand.u32 %v2188, 15
        %v2221 = vand.u32 %v2189, 15
        %v2222 = vand.u32 %v2190, 15
        %v2223 = vand.u32 %v2191, 15
        %v2224 = vand.u32 %v2192, 15
        %v2225 = vand.u32 %v2193, 15
        %v2226 = vand.u32 %v2194, 15
        %v2227 = vand.u32 %v2195, 15
        %v2228 = vand.u32 %v2196, 15
        %v2229 = vand.u32 %v2197, 15
        %v2230 = vand.u32 %v2198, 15
        %v2231 = vand.u32 %v2199, 15
        %v2232 = vand.u32 %v2200, 15
        %v2233 = vand.u32 %v2201, 15
        %v2234 = vand.u32 %v2202, 15
        %v2235 = vcvt.s32.f32 %v2203
        %v2236 = vcvt.s32.f32 %v2204
        %v2237 = vcvt.s32.f32 %v2205
        %v2238 = vcvt.s32.f32 %v2206
        %v2239 = vcvt.s32.f32 %v2207
        %v2240 = vcvt.s32.f32 %v2208
        %v2241 = vcvt.s32.f32 %v2209
        %v2242 = vcvt.s32.f32 %v2210
        %v2243 = vcvt.s32.f32 %v2211
        %v2244 = vcvt.s32.f32 %v2212
        %v2245 = vcvt.s32.f32 %v2213
        %v2246 = vcvt.s32.f32 %v2214
        %v2247 = vcvt.s32.f32 %v2215
        %v2248 = vcvt.s32.f32 %v2216
        %v2249 = vcvt.s32.f32 %v2217
        %v2250 = vcvt.s32.f32 %v2218
        %v2251 = vcvt.s32.f32 %v2219
        %v2252 = vcvt.s32.f32 %v2220
        %v2253 = vcvt.s32.f32 %v2221
        %v2254 = vcvt.s32.f32 %v2222
        %v2255 = vcvt.s32.f32 %v2223
        %v2256 = vcvt.s32.f32 %v2224
        %v2257 = vcvt.s32.f32 %v2225
        %v2258 = vcvt.s32.f32 %v2226
        %v2259 = vcvt.s32.f32 %v2227
        %v2260 = vcvt.s32.f32 %v2228
        %v2261 = vcvt.s32.f32 %v2229
        %v2262 = vcvt.s32.f32 %v2230
        %v2263 = vcvt.s32.f32 %v2231
        %v2264 = vcvt.s32.f32 %v2232
        %v2265 = vcvt.s32.f32 %v2233
        %v2266 = vcvt.s32.f32 %v2234
        %v2267 = vpack.c.bf16 %v2237, %v2235
        %v2268 = vpack.c.bf16 %v2238, %v2236
        %v2269 = vpack.c.bf16 %v2241, %v2239
        %v2270 = vpack.c.bf16 %v2242, %v2240
        %v2271 = vpack.c.bf16 %v2245, %v2243
        %v2272 = vpack.c.bf16 %v2246, %v2244
        %v2273 = vpack.c.bf16 %v2249, %v2247
        %v2274 = vpack.c.bf16 %v2250, %v2248
        %v2275 = vpack.c.bf16 %v2253, %v2251
        %v2276 = vpack.c.bf16 %v2254, %v2252
        %v2277 = vpack.c.bf16 %v2257, %v2255
        %v2278 = vpack.c.bf16 %v2258, %v2256
        %v2279 = vpack.c.bf16 %v2261, %v2259
        %v2280 = vpack.c.bf16 %v2262, %v2260
        %v2281 = vpack.c.bf16 %v2265, %v2263
        %v2282 = vpack.c.bf16 %v2266, %v2264
        %2283 = vmatprep.subr.bf16.mxu0 %v2282
        %2284 = vmatpush1.bf16.msra.mxu0 %v2281
        %2285 = vmatprep.subr.bf16.mxu0 %v2280
        %2286 = vmatpush1.bf16.msra.mxu0 %v2279
        %2287 = vmatprep.subr.bf16.mxu0 %v2278
        %2288 = vmatpush1.bf16.msra.mxu0 %v2277
        %2289 = vmatprep.subr.bf16.mxu0 %v2276
        %2290 = vmatpush1.bf16.msra.mxu0 %v2275
        %2291 = vmatprep.subr.bf16.mxu0 %v2274
        %2292 = vmatpush1.bf16.msra.mxu0 %v2273
        %2293 = vmatprep.subr.bf16.mxu0 %v2272
        %2294 = vmatpush1.bf16.msra.mxu0 %v2271
        %2295 = vmatprep.subr.bf16.mxu0 %v2270
        %2296 = vmatpush1.bf16.msra.mxu0 %v2269
        %2297 = vmatprep.subr.bf16.mxu0 %v2268
        %2298 = vmatpush1.bf16.msra.mxu0 %v2267
        %2299 = vmatprep.subr.bf16.mxu0 0
        %2300 = vmatpush2.bf16.msra.mxu0 0
        %2301 = vmatprep.subr.bf16.mxu0 0
        %2302 = vmatpush2.bf16.msra.mxu0 0
        %2303 = vmatprep.subr.bf16.mxu0 0
        %2304 = vmatpush2.bf16.msra.mxu0 0
        %2305 = vmatprep.subr.bf16.mxu0 0
        %2306 = vmatpush2.bf16.msra.mxu0 0
        %2307 = vmatprep.subr.bf16.mxu0 0
        %2308 = vmatpush2.bf16.msra.mxu0 0
        %2309 = vmatprep.subr.bf16.mxu0 0
        %2310 = vmatpush2.bf16.msra.mxu0 0
        %2311 = vmatprep.subr.bf16.mxu0 0
        %2312 = vmatpush2.bf16.msra.mxu0 0
        %2313 = vmatprep.subr.bf16.mxu0 0
        %2314 = vmatpush2.bf16.msra.mxu0 0
        %2315 = vmatprep.mubr.bf16.mxu0 0
        %2316 = vmatmul.mubr.bf16.gmra.mxu0 %v1852
        %v2317 = vpop.f32.mrf.mxu0
        %v2318 = vadd.f32 0.0, %v2317
        %v2319 = vpop.f32.mrf.mxu0
        %v2320 = vadd.f32 0.0, %v2319
        %v2321 = vpop.f32.mrf.mxu0
        %v2322 = vadd.f32 0.0, %v2321
        %v2323 = vpop.f32.mrf.mxu0
        %v2324 = vadd.f32 0.0, %v2323
        %2325 = vdwg.mxu0
        %s2326 = scalar_lea.vmem %s514, 2 [#allocation13]
        %v2327 = vld [vmem:[%s2326] sm:$0x3]
        %v2329 = vlaneseq
        %v2330 = vshrl.u32 %v2329, 7
        %v2331 = vsub.s32 0, %v2330
        %v2332 = vrot.slane %v2327, %v2331
        %v2333 = vlaneseq
        %v2334 = vshrl.u32 %v2333, 7
        %v2335 = vsub.s32 1, %v2334
        %v2336 = vrot.slane %v2327, %v2335
        %v2339 = vmul.f32 %v2318, %v2332
        %v2340 = vmul.f32 %v2320, %v2336
        %v2341 = vmul.f32 %v2322, %v2332
        %v2342 = vmul.f32 %v2324, %v2336
        %s2343 = scalar_lea.vmem %s523, 2 [#allocation15]
        %v2344 = vld [vmem:[%s2343] sm:$0x3]
        %v2346 = vlaneseq
        %v2347 = vshrl.u32 %v2346, 7
        %v2348 = vsub.s32 0, %v2347
        %v2349 = vrot.slane %v2344, %v2348
        %v2350 = vlaneseq
        %v2351 = vshrl.u32 %v2350, 7
        %v2352 = vsub.s32 1, %v2351
        %v2353 = vrot.slane %v2344, %v2352
        %v2356 = vmul.f32 %v1503, %v2349
        %v2357 = vmul.f32 %v1503, %v2353
        %v2358 = vmul.f32 %v1505, %v2349
        %v2359 = vmul.f32 %v1505, %v2353
        %v2360 = vsub.f32 %v2339, %v2356
        %v2361 = vsub.f32 %v2340, %v2357
        %v2362 = vsub.f32 %v2341, %v2358
        %v2363 = vsub.f32 %v2342, %v2359
        %v2364 = vadd.f32 %v1492, %v2360
        %v2365 = vadd.f32 %v1493, %v2361
        %v2366 = vadd.f32 %v1494, %v2362
        %v2367 = vadd.f32 %v1495, %v2363
        %v2368 = vunpack.c.l.bf16 %v614
        %v2369 = vunpack.c.l.bf16 %v617
        %2370 = vadd.xlane.f32.xlu0 %v2368
        %v2371 = vpop.xlane.xlu0 %2370
        %2372 = vadd.xlane.f32.xlu0 %v2369
        %v2373 = vpop.xlane.xlu0 %2372
        %v2374 = vld [vmem:[%s478 + $0x40] sm:$0xff]
        %v2375 = vld [vmem:[%s478 + $0x48] sm:$0xff]
        %v2376 = vld [vmem:[%s478 + $0x50] sm:$0xff]
        %v2377 = vld [vmem:[%s478 + $0x58] sm:$0xff]
        %v2378 = vcombine.low %v2374, %v2375
        %v2379 = vcombine.high %v2374, %v2375
        %v2381 = vunpack.c.l.s4 1966171168
        %v2382 = vunpack.c.0.s8 %v2381
        %v2383 = vlaneseq
        %v2384 = vshrl.u32 %v2383, 7
        %v2385 = vsub.s32 %v2382, %v2384
        %v2386 = vrot.slane %v2378, %v2385
        %v2388 = vunpack.c.l.s4 1966171168
        %v2389 = vunpack.c.0.s8 %v2388
        %v2390 = vlaneseq
        %v2391 = vshrl.u32 %v2390, 7
        %v2392 = vsub.s32 %v2389, %v2391
        %v2393 = vrot.slane %v2379, %v2392
        %v2394 = vcombine.high %v2386, %v2386
        %v2395 = vcombine.high %v2393, %v2393
        %v2397 = vunpack.c.l.s4 1966171168
        %v2398 = vunpack.c.0.s8 %v2397
        %v2399 = vlaneseq
        %v2400 = vshrl.u32 %v2399, 7
        %v2401 = vsub.s32 %v2398, %v2400
        %v2402 = vrot.slane %v2386, %v2401
        %v2404 = vunpack.c.l.s4 1966171168
        %v2405 = vunpack.c.0.s8 %v2404
        %v2406 = vlaneseq
        %v2407 = vshrl.u32 %v2406, 7
        %v2408 = vsub.s32 %v2405, %v2407
        %v2409 = vrot.slane %v2393, %v2408
        %v2411 = vunpack.c.l.s4 1966171168
        %v2412 = vunpack.c.0.s8 %v2411
        %v2413 = vlaneseq
        %v2414 = vshrl.u32 %v2413, 7
        %v2415 = vsub.s32 %v2412, %v2414
        %v2416 = vrot.slane %v2394, %v2415
        %v2418 = vunpack.c.l.s4 1966171168
        %v2419 = vunpack.c.0.s8 %v2418
        %v2420 = vlaneseq
        %v2421 = vshrl.u32 %v2420, 7
        %v2422 = vsub.s32 %v2419, %v2421
        %v2423 = vrot.slane %v2395, %v2422
        %v2424 = vcombine.high %v2402, %v2402
        %v2425 = vcombine.high %v2409, %v2409
        %v2426 = vcombine.high %v2416, %v2416
        %v2427 = vcombine.high %v2423, %v2423
        %v2428 = vcombine.low %v2376, %v2377
        %v2429 = vcombine.high %v2376, %v2377
        %v2431 = vunpack.c.l.s4 1966171168
        %v2432 = vunpack.c.0.s8 %v2431
        %v2433 = vlaneseq
        %v2434 = vshrl.u32 %v2433, 7
        %v2435 = vsub.s32 %v2432, %v2434
        %v2436 = vrot.slane %v2428, %v2435
        %v2438 = vunpack.c.l.s4 1966171168
        %v2439 = vunpack.c.0.s8 %v2438
        %v2440 = vlaneseq
        %v2441 = vshrl.u32 %v2440, 7
        %v2442 = vsub.s32 %v2439, %v2441
        %v2443 = vrot.slane %v2429, %v2442
        %v2444 = vcombine.high %v2436, %v2436
        %v2445 = vcombine.high %v2443, %v2443
        %v2447 = vunpack.c.l.s4 1966171168
        %v2448 = vunpack.c.0.s8 %v2447
        %v2449 = vlaneseq
        %v2450 = vshrl.u32 %v2449, 7
        %v2451 = vsub.s32 %v2448, %v2450
        %v2452 = vrot.slane %v2436, %v2451
        %v2454 = vunpack.c.l.s4 1966171168
        %v2455 = vunpack.c.0.s8 %v2454
        %v2456 = vlaneseq
        %v2457 = vshrl.u32 %v2456, 7
        %v2458 = vsub.s32 %v2455, %v2457
        %v2459 = vrot.slane %v2443, %v2458
        %v2461 = vunpack.c.l.s4 1966171168
        %v2462 = vunpack.c.0.s8 %v2461
        %v2463 = vlaneseq
        %v2464 = vshrl.u32 %v2463, 7
        %v2465 = vsub.s32 %v2462, %v2464
        %v2466 = vrot.slane %v2444, %v2465
        %v2468 = vunpack.c.l.s4 1966171168
        %v2469 = vunpack.c.0.s8 %v2468
        %v2470 = vlaneseq
        %v2471 = vshrl.u32 %v2470, 7
        %v2472 = vsub.s32 %v2469, %v2471
        %v2473 = vrot.slane %v2445, %v2472
        %v2474 = vcombine.high %v2452, %v2452
        %v2475 = vcombine.high %v2459, %v2459
        %v2476 = vcombine.high %v2466, %v2466
        %v2477 = vcombine.high %v2473, %v2473
        %v2478 = vlaneseq
        %v2479 = vshrl.u32 %v2478, 7
        %v2480 = vsub.s32 0, %v2479
        %v2481 = vrot.slane %v2402, %v2480
        %v2482 = vlaneseq
        %v2483 = vshrl.u32 %v2482, 7
        %v2484 = vsub.s32 1, %v2483
        %v2485 = vrot.slane %v2402, %v2484
        %v2486 = vlaneseq
        %v2487 = vshrl.u32 %v2486, 7
        %v2488 = vsub.s32 0, %v2487
        %v2489 = vrot.slane %v2416, %v2488
        %v2490 = vlaneseq
        %v2491 = vshrl.u32 %v2490, 7
        %v2492 = vsub.s32 1, %v2491
        %v2493 = vrot.slane %v2416, %v2492
        %v2494 = vlaneseq
        %v2495 = vshrl.u32 %v2494, 7
        %v2496 = vsub.s32 0, %v2495
        %v2497 = vrot.slane %v2424, %v2496
        %v2498 = vlaneseq
        %v2499 = vshrl.u32 %v2498, 7
        %v2500 = vsub.s32 1, %v2499
        %v2501 = vrot.slane %v2424, %v2500
        %v2502 = vlaneseq
        %v2503 = vshrl.u32 %v2502, 7
        %v2504 = vsub.s32 0, %v2503
        %v2505 = vrot.slane %v2426, %v2504
        %v2506 = vlaneseq
        %v2507 = vshrl.u32 %v2506, 7
        %v2508 = vsub.s32 1, %v2507
        %v2509 = vrot.slane %v2426, %v2508
        %v2510 = vlaneseq
        %v2511 = vshrl.u32 %v2510, 7
        %v2512 = vsub.s32 0, %v2511
        %v2513 = vrot.slane %v2409, %v2512
        %v2514 = vlaneseq
        %v2515 = vshrl.u32 %v2514, 7
        %v2516 = vsub.s32 1, %v2515
        %v2517 = vrot.slane %v2409, %v2516
        %v2518 = vlaneseq
        %v2519 = vshrl.u32 %v2518, 7
        %v2520 = vsub.s32 0, %v2519
        %v2521 = vrot.slane %v2423, %v2520
        %v2522 = vlaneseq
        %v2523 = vshrl.u32 %v2522, 7
        %v2524 = vsub.s32 1, %v2523
        %v2525 = vrot.slane %v2423, %v2524
        %v2526 = vlaneseq
        %v2527 = vshrl.u32 %v2526, 7
        %v2528 = vsub.s32 0, %v2527
        %v2529 = vrot.slane %v2425, %v2528
        %v2530 = vlaneseq
        %v2531 = vshrl.u32 %v2530, 7
        %v2532 = vsub.s32 1, %v2531
        %v2533 = vrot.slane %v2425, %v2532
        %v2534 = vlaneseq
        %v2535 = vshrl.u32 %v2534, 7
        %v2536 = vsub.s32 0, %v2535
        %v2537 = vrot.slane %v2427, %v2536
        %v2538 = vlaneseq
        %v2539 = vshrl.u32 %v2538, 7
        %v2540 = vsub.s32 1, %v2539
        %v2541 = vrot.slane %v2427, %v2540
        %v2542 = vlaneseq
        %v2543 = vshrl.u32 %v2542, 7
        %v2544 = vsub.s32 0, %v2543
        %v2545 = vrot.slane %v2452, %v2544
        %v2546 = vlaneseq
        %v2547 = vshrl.u32 %v2546, 7
        %v2548 = vsub.s32 1, %v2547
        %v2549 = vrot.slane %v2452, %v2548
        %v2550 = vlaneseq
        %v2551 = vshrl.u32 %v2550, 7
        %v2552 = vsub.s32 0, %v2551
        %v2553 = vrot.slane %v2466, %v2552
        %v2554 = vlaneseq
        %v2555 = vshrl.u32 %v2554, 7
        %v2556 = vsub.s32 1, %v2555
        %v2557 = vrot.slane %v2466, %v2556
        %v2558 = vlaneseq
        %v2559 = vshrl.u32 %v2558, 7
        %v2560 = vsub.s32 0, %v2559
        %v2561 = vrot.slane %v2474, %v2560
        %v2562 = vlaneseq
        %v2563 = vshrl.u32 %v2562, 7
        %v2564 = vsub.s32 1, %v2563
        %v2565 = vrot.slane %v2474, %v2564
        %v2566 = vlaneseq
        %v2567 = vshrl.u32 %v2566, 7
        %v2568 = vsub.s32 0, %v2567
        %v2569 = vrot.slane %v2476, %v2568
        %v2570 = vlaneseq
        %v2571 = vshrl.u32 %v2570, 7
        %v2572 = vsub.s32 1, %v2571
        %v2573 = vrot.slane %v2476, %v2572
        %v2574 = vlaneseq
        %v2575 = vshrl.u32 %v2574, 7
        %v2576 = vsub.s32 0, %v2575
        %v2577 = vrot.slane %v2459, %v2576
        %v2578 = vlaneseq
        %v2579 = vshrl.u32 %v2578, 7
        %v2580 = vsub.s32 1, %v2579
        %v2581 = vrot.slane %v2459, %v2580
        %v2582 = vlaneseq
        %v2583 = vshrl.u32 %v2582, 7
        %v2584 = vsub.s32 0, %v2583
        %v2585 = vrot.slane %v2473, %v2584
        %v2586 = vlaneseq
        %v2587 = vshrl.u32 %v2586, 7
        %v2588 = vsub.s32 1, %v2587
        %v2589 = vrot.slane %v2473, %v2588
        %v2590 = vlaneseq
        %v2591 = vshrl.u32 %v2590, 7
        %v2592 = vsub.s32 0, %v2591
        %v2593 = vrot.slane %v2475, %v2592
        %v2594 = vlaneseq
        %v2595 = vshrl.u32 %v2594, 7
        %v2596 = vsub.s32 1, %v2595
        %v2597 = vrot.slane %v2475, %v2596
        %v2598 = vlaneseq
        %v2599 = vshrl.u32 %v2598, 7
        %v2600 = vsub.s32 0, %v2599
        %v2601 = vrot.slane %v2477, %v2600
        %v2602 = vlaneseq
        %v2603 = vshrl.u32 %v2602, 7
        %v2604 = vsub.s32 1, %v2603
        %v2605 = vrot.slane %v2477, %v2604
        %v2606 = vshra.s32 %v2481, %v639
        %v2607 = vshra.s32 %v2485, %v639
        %v2608 = vshra.s32 %v2489, %v639
        %v2609 = vshra.s32 %v2493, %v639
        %v2610 = vshra.s32 %v2497, %v639
        %v2611 = vshra.s32 %v2501, %v639
        %v2612 = vshra.s32 %v2505, %v639
        %v2613 = vshra.s32 %v2509, %v639
        %v2614 = vshra.s32 %v2513, %v639
        %v2615 = vshra.s32 %v2517, %v639
        %v2616 = vshra.s32 %v2521, %v639
        %v2617 = vshra.s32 %v2525, %v639
        %v2618 = vshra.s32 %v2529, %v639
        %v2619 = vshra.s32 %v2533, %v639
        %v2620 = vshra.s32 %v2537, %v639
        %v2621 = vshra.s32 %v2541, %v639
        %v2622 = vshra.s32 %v2545, %v639
        %v2623 = vshra.s32 %v2549, %v639
        %v2624 = vshra.s32 %v2553, %v639
        %v2625 = vshra.s32 %v2557, %v639
        %v2626 = vshra.s32 %v2561, %v639
        %v2627 = vshra.s32 %v2565, %v639
        %v2628 = vshra.s32 %v2569, %v639
        %v2629 = vshra.s32 %v2573, %v639
        %v2630 = vshra.s32 %v2577, %v639
        %v2631 = vshra.s32 %v2581, %v639
        %v2632 = vshra.s32 %v2585, %v639
        %v2633 = vshra.s32 %v2589, %v639
        %v2634 = vshra.s32 %v2593, %v639
        %v2635 = vshra.s32 %v2597, %v639
        %v2636 = vshra.s32 %v2601, %v639
        %v2637 = vshra.s32 %v2605, %v639
        %v2638 = vand.u32 %v2606, 15
        %v2639 = vand.u32 %v2607, 15
        %v2640 = vand.u32 %v2608, 15
        %v2641 = vand.u32 %v2609, 15
        %v2642 = vand.u32 %v2610, 15
        %v2643 = vand.u32 %v2611, 15
        %v2644 = vand.u32 %v2612, 15
        %v2645 = vand.u32 %v2613, 15
        %v2646 = vand.u32 %v2614, 15
        %v2647 = vand.u32 %v2615, 15
        %v2648 = vand.u32 %v2616, 15
        %v2649 = vand.u32 %v2617, 15
        %v2650 = vand.u32 %v2618, 15
        %v2651 = vand.u32 %v2619, 15
        %v2652 = vand.u32 %v2620, 15
        %v2653 = vand.u32 %v2621, 15
        %v2654 = vand.u32 %v2622, 15
        %v2655 = vand.u32 %v2623, 15
        %v2656 = vand.u32 %v2624, 15
        %v2657 = vand.u32 %v2625, 15
        %v2658 = vand.u32 %v2626, 15
        %v2659 = vand.u32 %v2627, 15
        %v2660 = vand.u32 %v2628, 15
        %v2661 = vand.u32 %v2629, 15
        %v2662 = vand.u32 %v2630, 15
        %v2663 = vand.u32 %v2631, 15
        %v2664 = vand.u32 %v2632, 15
        %v2665 = vand.u32 %v2633, 15
        %v2666 = vand.u32 %v2634, 15
        %v2667 = vand.u32 %v2635, 15
        %v2668 = vand.u32 %v2636, 15
        %v2669 = vand.u32 %v2637, 15
        %v2670 = vcvt.s32.f32 %v2638
        %v2671 = vcvt.s32.f32 %v2639
        %v2672 = vcvt.s32.f32 %v2640
        %v2673 = vcvt.s32.f32 %v2641
        %v2674 = vcvt.s32.f32 %v2642
        %v2675 = vcvt.s32.f32 %v2643
        %v2676 = vcvt.s32.f32 %v2644
        %v2677 = vcvt.s32.f32 %v2645
        %v2678 = vcvt.s32.f32 %v2646
        %v2679 = vcvt.s32.f32 %v2647
        %v2680 = vcvt.s32.f32 %v2648
        %v2681 = vcvt.s32.f32 %v2649
        %v2682 = vcvt.s32.f32 %v2650
        %v2683 = vcvt.s32.f32 %v2651
        %v2684 = vcvt.s32.f32 %v2652
        %v2685 = vcvt.s32.f32 %v2653
        %v2686 = vcvt.s32.f32 %v2654
        %v2687 = vcvt.s32.f32 %v2655
        %v2688 = vcvt.s32.f32 %v2656
        %v2689 = vcvt.s32.f32 %v2657
        %v2690 = vcvt.s32.f32 %v2658
        %v2691 = vcvt.s32.f32 %v2659
        %v2692 = vcvt.s32.f32 %v2660
        %v2693 = vcvt.s32.f32 %v2661
        %v2694 = vcvt.s32.f32 %v2662
        %v2695 = vcvt.s32.f32 %v2663
        %v2696 = vcvt.s32.f32 %v2664
        %v2697 = vcvt.s32.f32 %v2665
        %v2698 = vcvt.s32.f32 %v2666
        %v2699 = vcvt.s32.f32 %v2667
        %v2700 = vcvt.s32.f32 %v2668
        %v2701 = vcvt.s32.f32 %v2669
        %v2702 = vpack.c.bf16 %v2672, %v2670
        %v2703 = vpack.c.bf16 %v2673, %v2671
        %v2704 = vpack.c.bf16 %v2676, %v2674
        %v2705 = vpack.c.bf16 %v2677, %v2675
        %v2706 = vpack.c.bf16 %v2680, %v2678
        %v2707 = vpack.c.bf16 %v2681, %v2679
        %v2708 = vpack.c.bf16 %v2684, %v2682
        %v2709 = vpack.c.bf16 %v2685, %v2683
        %v2710 = vpack.c.bf16 %v2688, %v2686
        %v2711 = vpack.c.bf16 %v2689, %v2687
        %v2712 = vpack.c.bf16 %v2692, %v2690
        %v2713 = vpack.c.bf16 %v2693, %v2691
        %v2714 = vpack.c.bf16 %v2696, %v2694
        %v2715 = vpack.c.bf16 %v2697, %v2695
        %v2716 = vpack.c.bf16 %v2700, %v2698
        %v2717 = vpack.c.bf16 %v2701, %v2699
        %v2720 = vunpack.c.l.b16 %v614
        %v2721 = vunpack.c.l.b16 %v617
        %v2722 = vpack.c.b16 %v2721, %v2720
        %2724 = vmatprep.subr.bf16.mxu0 %v2717
        %2725 = vmatpush1.bf16.msra.mxu0 %v2716
        %2726 = vmatprep.subr.bf16.mxu0 %v2715
        %2727 = vmatpush1.bf16.msra.mxu0 %v2714
        %2728 = vmatprep.subr.bf16.mxu0 %v2713
        %2729 = vmatpush1.bf16.msra.mxu0 %v2712
        %2730 = vmatprep.subr.bf16.mxu0 %v2711
        %2731 = vmatpush1.bf16.msra.mxu0 %v2710
        %2732 = vmatprep.subr.bf16.mxu0 %v2709
        %2733 = vmatpush1.bf16.msra.mxu0 %v2708
        %2734 = vmatprep.subr.bf16.mxu0 %v2707
        %2735 = vmatpush1.bf16.msra.mxu0 %v2706
        %2736 = vmatprep.subr.bf16.mxu0 %v2705
        %2737 = vmatpush1.bf16.msra.mxu0 %v2704
        %2738 = vmatprep.subr.bf16.mxu0 %v2703
        %2739 = vmatpush1.bf16.msra.mxu0 %v2702
        %2740 = vmatprep.subr.bf16.mxu0 0
        %2741 = vmatpush2.bf16.msra.mxu0 0
        %2742 = vmatprep.subr.bf16.mxu0 0
        %2743 = vmatpush2.bf16.msra.mxu0 0
        %2744 = vmatprep.subr.bf16.mxu0 0
        %2745 = vmatpush2.bf16.msra.mxu0 0
        %2746 = vmatprep.subr.bf16.mxu0 0
        %2747 = vmatpush2.bf16.msra.mxu0 0
        %2748 = vmatprep.subr.bf16.mxu0 0
        %2749 = vmatpush2.bf16.msra.mxu0 0
        %2750 = vmatprep.subr.bf16.mxu0 0
        %2751 = vmatpush2.bf16.msra.mxu0 0
        %2752 = vmatprep.subr.bf16.mxu0 0
        %2753 = vmatpush2.bf16.msra.mxu0 0
        %2754 = vmatprep.subr.bf16.mxu0 0
        %2755 = vmatpush2.bf16.msra.mxu0 0
        %2756 = vmatprep.mubr.bf16.mxu0 0
        %2757 = vmatmul.mubr.bf16.gmra.mxu0 %v2722
        %v2758 = vpop.f32.mrf.mxu0
        %v2759 = vadd.f32 0.0, %v2758
        %v2760 = vpop.f32.mrf.mxu0
        %v2761 = vadd.f32 0.0, %v2760
        %v2762 = vpop.f32.mrf.mxu0
        %v2763 = vadd.f32 0.0, %v2762
        %v2764 = vpop.f32.mrf.mxu0
        %v2765 = vadd.f32 0.0, %v2764
        %2766 = vdwg.mxu0
        %s2767 = scalar_lea.vmem %s487, 4 [#allocation9]
        %v2768 = vld [vmem:[%s2767] sm:$0x3]
        %v2770 = vlaneseq
        %v2771 = vshrl.u32 %v2770, 7
        %v2772 = vsub.s32 0, %v2771
        %v2773 = vrot.slane %v2768, %v2772
        %v2774 = vlaneseq
        %v2775 = vshrl.u32 %v2774, 7
        %v2776 = vsub.s32 1, %v2775
        %v2777 = vrot.slane %v2768, %v2776
        %v2780 = vmul.f32 %v2759, %v2773
        %v2781 = vmul.f32 %v2761, %v2777
        %v2782 = vmul.f32 %v2763, %v2773
        %v2783 = vmul.f32 %v2765, %v2777
        %s2784 = scalar_lea.vmem %s496, 4 [#allocation10]
        %v2785 = vld [vmem:[%s2784] sm:$0x3]
        %v2787 = vlaneseq
        %v2788 = vshrl.u32 %v2787, 7
        %v2789 = vsub.s32 0, %v2788
        %v2790 = vrot.slane %v2785, %v2789
        %v2791 = vlaneseq
        %v2792 = vshrl.u32 %v2791, 7
        %v2793 = vsub.s32 1, %v2792
        %v2794 = vrot.slane %v2785, %v2793
        %v2797 = vmul.f32 %v2371, %v2790
        %v2798 = vmul.f32 %v2371, %v2794
        %v2799 = vmul.f32 %v2373, %v2790
        %v2800 = vmul.f32 %v2373, %v2794
        %v2801 = vsub.f32 %v2780, %v2797
        %v2802 = vsub.f32 %v2781, %v2798
        %v2803 = vsub.f32 %v2782, %v2799
        %v2804 = vsub.f32 %v2783, %v2800
        %v2805 = vadd.f32 %v1935, %v2801
        %v2806 = vadd.f32 %v1936, %v2802
        %v2807 = vadd.f32 %v1937, %v2803
        %v2808 = vadd.f32 %v1938, %v2804
        %v2809 = vld [vmem:[%s505 + $0x40] sm:$0xff]
        %v2810 = vld [vmem:[%s505 + $0x48] sm:$0xff]
        %v2811 = vld [vmem:[%s505 + $0x50] sm:$0xff]
        %v2812 = vld [vmem:[%s505 + $0x58] sm:$0xff]
        %v2813 = vcombine.low %v2809, %v2810
        %v2814 = vcombine.high %v2809, %v2810
        %v2816 = vunpack.c.l.s4 1966171168
        %v2817 = vunpack.c.0.s8 %v2816
        %v2818 = vlaneseq
        %v2819 = vshrl.u32 %v2818, 7
        %v2820 = vsub.s32 %v2817, %v2819
        %v2821 = vrot.slane %v2813, %v2820
        %v2823 = vunpack.c.l.s4 1966171168
        %v2824 = vunpack.c.0.s8 %v2823
        %v2825 = vlaneseq
        %v2826 = vshrl.u32 %v2825, 7
        %v2827 = vsub.s32 %v2824, %v2826
        %v2828 = vrot.slane %v2814, %v2827
        %v2829 = vcombine.high %v2821, %v2821
        %v2830 = vcombine.high %v2828, %v2828
        %v2832 = vunpack.c.l.s4 1966171168
        %v2833 = vunpack.c.0.s8 %v2832
        %v2834 = vlaneseq
        %v2835 = vshrl.u32 %v2834, 7
        %v2836 = vsub.s32 %v2833, %v2835
        %v2837 = vrot.slane %v2821, %v2836
        %v2839 = vunpack.c.l.s4 1966171168
        %v2840 = vunpack.c.0.s8 %v2839
        %v2841 = vlaneseq
        %v2842 = vshrl.u32 %v2841, 7
        %v2843 = vsub.s32 %v2840, %v2842
        %v2844 = vrot.slane %v2828, %v2843
        %v2846 = vunpack.c.l.s4 1966171168
        %v2847 = vunpack.c.0.s8 %v2846
        %v2848 = vlaneseq
        %v2849 = vshrl.u32 %v2848, 7
        %v2850 = vsub.s32 %v2847, %v2849
        %v2851 = vrot.slane %v2829, %v2850
        %v2853 = vunpack.c.l.s4 1966171168
        %v2854 = vunpack.c.0.s8 %v2853
        %v2855 = vlaneseq
        %v2856 = vshrl.u32 %v2855, 7
        %v2857 = vsub.s32 %v2854, %v2856
        %v2858 = vrot.slane %v2830, %v2857
        %v2859 = vcombine.high %v2837, %v2837
        %v2860 = vcombine.high %v2844, %v2844
        %v2861 = vcombine.high %v2851, %v2851
        %v2862 = vcombine.high %v2858, %v2858
        %v2863 = vcombine.low %v2811, %v2812
        %v2864 = vcombine.high %v2811, %v2812
        %v2866 = vunpack.c.l.s4 1966171168
        %v2867 = vunpack.c.0.s8 %v2866
        %v2868 = vlaneseq
        %v2869 = vshrl.u32 %v2868, 7
        %v2870 = vsub.s32 %v2867, %v2869
        %v2871 = vrot.slane %v2863, %v2870
        %v2873 = vunpack.c.l.s4 1966171168
        %v2874 = vunpack.c.0.s8 %v2873
        %v2875 = vlaneseq
        %v2876 = vshrl.u32 %v2875, 7
        %v2877 = vsub.s32 %v2874, %v2876
        %v2878 = vrot.slane %v2864, %v2877
        %v2879 = vcombine.high %v2871, %v2871
        %v2880 = vcombine.high %v2878, %v2878
        %v2882 = vunpack.c.l.s4 1966171168
        %v2883 = vunpack.c.0.s8 %v2882
        %v2884 = vlaneseq
        %v2885 = vshrl.u32 %v2884, 7
        %v2886 = vsub.s32 %v2883, %v2885
        %v2887 = vrot.slane %v2871, %v2886
        %v2889 = vunpack.c.l.s4 1966171168
        %v2890 = vunpack.c.0.s8 %v2889
        %v2891 = vlaneseq
        %v2892 = vshrl.u32 %v2891, 7
        %v2893 = vsub.s32 %v2890, %v2892
        %v2894 = vrot.slane %v2878, %v2893
        %v2896 = vunpack.c.l.s4 1966171168
        %v2897 = vunpack.c.0.s8 %v2896
        %v2898 = vlaneseq
        %v2899 = vshrl.u32 %v2898, 7
        %v2900 = vsub.s32 %v2897, %v2899
        %v2901 = vrot.slane %v2879, %v2900
        %v2903 = vunpack.c.l.s4 1966171168
        %v2904 = vunpack.c.0.s8 %v2903
        %v2905 = vlaneseq
        %v2906 = vshrl.u32 %v2905, 7
        %v2907 = vsub.s32 %v2904, %v2906
        %v2908 = vrot.slane %v2880, %v2907
        %v2909 = vcombine.high %v2887, %v2887
        %v2910 = vcombine.high %v2894, %v2894
        %v2911 = vcombine.high %v2901, %v2901
        %v2912 = vcombine.high %v2908, %v2908
        %v2913 = vlaneseq
        %v2914 = vshrl.u32 %v2913, 7
        %v2915 = vsub.s32 0, %v2914
        %v2916 = vrot.slane %v2837, %v2915
        %v2917 = vlaneseq
        %v2918 = vshrl.u32 %v2917, 7
        %v2919 = vsub.s32 1, %v2918
        %v2920 = vrot.slane %v2837, %v2919
        %v2921 = vlaneseq
        %v2922 = vshrl.u32 %v2921, 7
        %v2923 = vsub.s32 0, %v2922
        %v2924 = vrot.slane %v2851, %v2923
        %v2925 = vlaneseq
        %v2926 = vshrl.u32 %v2925, 7
        %v2927 = vsub.s32 1, %v2926
        %v2928 = vrot.slane %v2851, %v2927
        %v2929 = vlaneseq
        %v2930 = vshrl.u32 %v2929, 7
        %v2931 = vsub.s32 0, %v2930
        %v2932 = vrot.slane %v2859, %v2931
        %v2933 = vlaneseq
        %v2934 = vshrl.u32 %v2933, 7
        %v2935 = vsub.s32 1, %v2934
        %v2936 = vrot.slane %v2859, %v2935
        %v2937 = vlaneseq
        %v2938 = vshrl.u32 %v2937, 7
        %v2939 = vsub.s32 0, %v2938
        %v2940 = vrot.slane %v2861, %v2939
        %v2941 = vlaneseq
        %v2942 = vshrl.u32 %v2941, 7
        %v2943 = vsub.s32 1, %v2942
        %v2944 = vrot.slane %v2861, %v2943
        %v2945 = vlaneseq
        %v2946 = vshrl.u32 %v2945, 7
        %v2947 = vsub.s32 0, %v2946
        %v2948 = vrot.slane %v2844, %v2947
        %v2949 = vlaneseq
        %v2950 = vshrl.u32 %v2949, 7
        %v2951 = vsub.s32 1, %v2950
        %v2952 = vrot.slane %v2844, %v2951
        %v2953 = vlaneseq
        %v2954 = vshrl.u32 %v2953, 7
        %v2955 = vsub.s32 0, %v2954
        %v2956 = vrot.slane %v2858, %v2955
        %v2957 = vlaneseq
        %v2958 = vshrl.u32 %v2957, 7
        %v2959 = vsub.s32 1, %v2958
        %v2960 = vrot.slane %v2858, %v2959
        %v2961 = vlaneseq
        %v2962 = vshrl.u32 %v2961, 7
        %v2963 = vsub.s32 0, %v2962
        %v2964 = vrot.slane %v2860, %v2963
        %v2965 = vlaneseq
        %v2966 = vshrl.u32 %v2965, 7
        %v2967 = vsub.s32 1, %v2966
        %v2968 = vrot.slane %v2860, %v2967
        %v2969 = vlaneseq
        %v2970 = vshrl.u32 %v2969, 7
        %v2971 = vsub.s32 0, %v2970
        %v2972 = vrot.slane %v2862, %v2971
        %v2973 = vlaneseq
        %v2974 = vshrl.u32 %v2973, 7
        %v2975 = vsub.s32 1, %v2974
        %v2976 = vrot.slane %v2862, %v2975
        %v2977 = vlaneseq
        %v2978 = vshrl.u32 %v2977, 7
        %v2979 = vsub.s32 0, %v2978
        %v2980 = vrot.slane %v2887, %v2979
        %v2981 = vlaneseq
        %v2982 = vshrl.u32 %v2981, 7
        %v2983 = vsub.s32 1, %v2982
        %v2984 = vrot.slane %v2887, %v2983
        %v2985 = vlaneseq
        %v2986 = vshrl.u32 %v2985, 7
        %v2987 = vsub.s32 0, %v2986
        %v2988 = vrot.slane %v2901, %v2987
        %v2989 = vlaneseq
        %v2990 = vshrl.u32 %v2989, 7
        %v2991 = vsub.s32 1, %v2990
        %v2992 = vrot.slane %v2901, %v2991
        %v2993 = vlaneseq
        %v2994 = vshrl.u32 %v2993, 7
        %v2995 = vsub.s32 0, %v2994
        %v2996 = vrot.slane %v2909, %v2995
        %v2997 = vlaneseq
        %v2998 = vshrl.u32 %v2997, 7
        %v2999 = vsub.s32 1, %v2998
        %v3000 = vrot.slane %v2909, %v2999
        %v3001 = vlaneseq
        %v3002 = vshrl.u32 %v3001, 7
        %v3003 = vsub.s32 0, %v3002
        %v3004 = vrot.slane %v2911, %v3003
        %v3005 = vlaneseq
        %v3006 = vshrl.u32 %v3005, 7
        %v3007 = vsub.s32 1, %v3006
        %v3008 = vrot.slane %v2911, %v3007
        %v3009 = vlaneseq
        %v3010 = vshrl.u32 %v3009, 7
        %v3011 = vsub.s32 0, %v3010
        %v3012 = vrot.slane %v2894, %v3011
        %v3013 = vlaneseq
        %v3014 = vshrl.u32 %v3013, 7
        %v3015 = vsub.s32 1, %v3014
        %v3016 = vrot.slane %v2894, %v3015
        %v3017 = vlaneseq
        %v3018 = vshrl.u32 %v3017, 7
        %v3019 = vsub.s32 0, %v3018
        %v3020 = vrot.slane %v2908, %v3019
        %v3021 = vlaneseq
        %v3022 = vshrl.u32 %v3021, 7
        %v3023 = vsub.s32 1, %v3022
        %v3024 = vrot.slane %v2908, %v3023
        %v3025 = vlaneseq
        %v3026 = vshrl.u32 %v3025, 7
        %v3027 = vsub.s32 0, %v3026
        %v3028 = vrot.slane %v2910, %v3027
        %v3029 = vlaneseq
        %v3030 = vshrl.u32 %v3029, 7
        %v3031 = vsub.s32 1, %v3030
        %v3032 = vrot.slane %v2910, %v3031
        %v3033 = vlaneseq
        %v3034 = vshrl.u32 %v3033, 7
        %v3035 = vsub.s32 0, %v3034
        %v3036 = vrot.slane %v2912, %v3035
        %v3037 = vlaneseq
        %v3038 = vshrl.u32 %v3037, 7
        %v3039 = vsub.s32 1, %v3038
        %v3040 = vrot.slane %v2912, %v3039
        %v3041 = vshra.s32 %v2916, %v639
        %v3042 = vshra.s32 %v2920, %v639
        %v3043 = vshra.s32 %v2924, %v639
        %v3044 = vshra.s32 %v2928, %v639
        %v3045 = vshra.s32 %v2932, %v639
        %v3046 = vshra.s32 %v2936, %v639
        %v3047 = vshra.s32 %v2940, %v639
        %v3048 = vshra.s32 %v2944, %v639
        %v3049 = vshra.s32 %v2948, %v639
        %v3050 = vshra.s32 %v2952, %v639
        %v3051 = vshra.s32 %v2956, %v639
        %v3052 = vshra.s32 %v2960, %v639
        %v3053 = vshra.s32 %v2964, %v639
        %v3054 = vshra.s32 %v2968, %v639
        %v3055 = vshra.s32 %v2972, %v639
        %v3056 = vshra.s32 %v2976, %v639
        %v3057 = vshra.s32 %v2980, %v639
        %v3058 = vshra.s32 %v2984, %v639
        %v3059 = vshra.s32 %v2988, %v639
        %v3060 = vshra.s32 %v2992, %v639
        %v3061 = vshra.s32 %v2996, %v639
        %v3062 = vshra.s32 %v3000, %v639
        %v3063 = vshra.s32 %v3004, %v639
        %v3064 = vshra.s32 %v3008, %v639
        %v3065 = vshra.s32 %v3012, %v639
        %v3066 = vshra.s32 %v3016, %v639
        %v3067 = vshra.s32 %v3020, %v639
        %v3068 = vshra.s32 %v3024, %v639
        %v3069 = vshra.s32 %v3028, %v639
        %v3070 = vshra.s32 %v3032, %v639
        %v3071 = vshra.s32 %v3036, %v639
        %v3072 = vshra.s32 %v3040, %v639
        %v3073 = vand.u32 %v3041, 15
        %v3074 = vand.u32 %v3042, 15
        %v3075 = vand.u32 %v3043, 15
        %v3076 = vand.u32 %v3044, 15
        %v3077 = vand.u32 %v3045, 15
        %v3078 = vand.u32 %v3046, 15
        %v3079 = vand.u32 %v3047, 15
        %v3080 = vand.u32 %v3048, 15
        %v3081 = vand.u32 %v3049, 15
        %v3082 = vand.u32 %v3050, 15
        %v3083 = vand.u32 %v3051, 15
        %v3084 = vand.u32 %v3052, 15
        %v3085 = vand.u32 %v3053, 15
        %v3086 = vand.u32 %v3054, 15
        %v3087 = vand.u32 %v3055, 15
        %v3088 = vand.u32 %v3056, 15
        %v3089 = vand.u32 %v3057, 15
        %v3090 = vand.u32 %v3058, 15
        %v3091 = vand.u32 %v3059, 15
        %v3092 = vand.u32 %v3060, 15
        %v3093 = vand.u32 %v3061, 15
        %v3094 = vand.u32 %v3062, 15
        %v3095 = vand.u32 %v3063, 15
        %v3096 = vand.u32 %v3064, 15
        %v3097 = vand.u32 %v3065, 15
        %v3098 = vand.u32 %v3066, 15
        %v3099 = vand.u32 %v3067, 15
        %v3100 = vand.u32 %v3068, 15
        %v3101 = vand.u32 %v3069, 15
        %v3102 = vand.u32 %v3070, 15
        %v3103 = vand.u32 %v3071, 15
        %v3104 = vand.u32 %v3072, 15
        %v3105 = vcvt.s32.f32 %v3073
        %v3106 = vcvt.s32.f32 %v3074
        %v3107 = vcvt.s32.f32 %v3075
        %v3108 = vcvt.s32.f32 %v3076
        %v3109 = vcvt.s32.f32 %v3077
        %v3110 = vcvt.s32.f32 %v3078
        %v3111 = vcvt.s32.f32 %v3079
        %v3112 = vcvt.s32.f32 %v3080
        %v3113 = vcvt.s32.f32 %v3081
        %v3114 = vcvt.s32.f32 %v3082
        %v3115 = vcvt.s32.f32 %v3083
        %v3116 = vcvt.s32.f32 %v3084
        %v3117 = vcvt.s32.f32 %v3085
        %v3118 = vcvt.s32.f32 %v3086
        %v3119 = vcvt.s32.f32 %v3087
        %v3120 = vcvt.s32.f32 %v3088
        %v3121 = vcvt.s32.f32 %v3089
        %v3122 = vcvt.s32.f32 %v3090
        %v3123 = vcvt.s32.f32 %v3091
        %v3124 = vcvt.s32.f32 %v3092
        %v3125 = vcvt.s32.f32 %v3093
        %v3126 = vcvt.s32.f32 %v3094
        %v3127 = vcvt.s32.f32 %v3095
        %v3128 = vcvt.s32.f32 %v3096
        %v3129 = vcvt.s32.f32 %v3097
        %v3130 = vcvt.s32.f32 %v3098
        %v3131 = vcvt.s32.f32 %v3099
        %v3132 = vcvt.s32.f32 %v3100
        %v3133 = vcvt.s32.f32 %v3101
        %v3134 = vcvt.s32.f32 %v3102
        %v3135 = vcvt.s32.f32 %v3103
        %v3136 = vcvt.s32.f32 %v3104
        %v3137 = vpack.c.bf16 %v3107, %v3105
        %v3138 = vpack.c.bf16 %v3108, %v3106
        %v3139 = vpack.c.bf16 %v3111, %v3109
        %v3140 = vpack.c.bf16 %v3112, %v3110
        %v3141 = vpack.c.bf16 %v3115, %v3113
        %v3142 = vpack.c.bf16 %v3116, %v3114
        %v3143 = vpack.c.bf16 %v3119, %v3117
        %v3144 = vpack.c.bf16 %v3120, %v3118
        %v3145 = vpack.c.bf16 %v3123, %v3121
        %v3146 = vpack.c.bf16 %v3124, %v3122
        %v3147 = vpack.c.bf16 %v3127, %v3125
        %v3148 = vpack.c.bf16 %v3128, %v3126
        %v3149 = vpack.c.bf16 %v3131, %v3129
        %v3150 = vpack.c.bf16 %v3132, %v3130
        %v3151 = vpack.c.bf16 %v3135, %v3133
        %v3152 = vpack.c.bf16 %v3136, %v3134
        %3153 = vmatprep.subr.bf16.mxu0 %v3152
        %3154 = vmatpush1.bf16.msra.mxu0 %v3151
        %3155 = vmatprep.subr.bf16.mxu0 %v3150
        %3156 = vmatpush1.bf16.msra.mxu0 %v3149
        %3157 = vmatprep.subr.bf16.mxu0 %v3148
        %3158 = vmatpush1.bf16.msra.mxu0 %v3147
        %3159 = vmatprep.subr.bf16.mxu0 %v3146
        %3160 = vmatpush1.bf16.msra.mxu0 %v3145
        %3161 = vmatprep.subr.bf16.mxu0 %v3144
        %3162 = vmatpush1.bf16.msra.mxu0 %v3143
        %3163 = vmatprep.subr.bf16.mxu0 %v3142
        %3164 = vmatpush1.bf16.msra.mxu0 %v3141
        %3165 = vmatprep.subr.bf16.mxu0 %v3140
        %3166 = vmatpush1.bf16.msra.mxu0 %v3139
        %3167 = vmatprep.subr.bf16.mxu0 %v3138
        %3168 = vmatpush1.bf16.msra.mxu0 %v3137
        %3169 = vmatprep.subr.bf16.mxu0 0
        %3170 = vmatpush2.bf16.msra.mxu0 0
        %3171 = vmatprep.subr.bf16.mxu0 0
        %3172 = vmatpush2.bf16.msra.mxu0 0
        %3173 = vmatprep.subr.bf16.mxu0 0
        %3174 = vmatpush2.bf16.msra.mxu0 0
        %3175 = vmatprep.subr.bf16.mxu0 0
        %3176 = vmatpush2.bf16.msra.mxu0 0
        %3177 = vmatprep.subr.bf16.mxu0 0
        %3178 = vmatpush2.bf16.msra.mxu0 0
        %3179 = vmatprep.subr.bf16.mxu0 0
        %3180 = vmatpush2.bf16.msra.mxu0 0
        %3181 = vmatprep.subr.bf16.mxu0 0
        %3182 = vmatpush2.bf16.msra.mxu0 0
        %3183 = vmatprep.subr.bf16.mxu0 0
        %3184 = vmatpush2.bf16.msra.mxu0 0
        %3185 = vmatprep.mubr.bf16.mxu0 0
        %3186 = vmatmul.mubr.bf16.gmra.mxu0 %v2722
        %v3187 = vpop.f32.mrf.mxu0
        %v3188 = vadd.f32 0.0, %v3187
        %v3189 = vpop.f32.mrf.mxu0
        %v3190 = vadd.f32 0.0, %v3189
        %v3191 = vpop.f32.mrf.mxu0
        %v3192 = vadd.f32 0.0, %v3191
        %v3193 = vpop.f32.mrf.mxu0
        %v3194 = vadd.f32 0.0, %v3193
        %3195 = vdwg.mxu0
        %s3196 = scalar_lea.vmem %s514, 4 [#allocation13]
        %v3197 = vld [vmem:[%s3196] sm:$0x3]
        %v3199 = vlaneseq
        %v3200 = vshrl.u32 %v3199, 7
        %v3201 = vsub.s32 0, %v3200
        %v3202 = vrot.slane %v3197, %v3201
        %v3203 = vlaneseq
        %v3204 = vshrl.u32 %v3203, 7
        %v3205 = vsub.s32 1, %v3204
        %v3206 = vrot.slane %v3197, %v3205
        %v3209 = vmul.f32 %v3188, %v3202
        %v3210 = vmul.f32 %v3190, %v3206
        %v3211 = vmul.f32 %v3192, %v3202
        %v3212 = vmul.f32 %v3194, %v3206
        %s3213 = scalar_lea.vmem %s523, 4 [#allocation15]
        %v3214 = vld [vmem:[%s3213] sm:$0x3]
        %v3216 = vlaneseq
        %v3217 = vshrl.u32 %v3216, 7
        %v3218 = vsub.s32 0, %v3217
        %v3219 = vrot.slane %v3214, %v3218
        %v3220 = vlaneseq
        %v3221 = vshrl.u32 %v3220, 7
        %v3222 = vsub.s32 1, %v3221
        %v3223 = vrot.slane %v3214, %v3222
        %v3226 = vmul.f32 %v2371, %v3219
        %v3227 = vmul.f32 %v2371, %v3223
        %v3228 = vmul.f32 %v2373, %v3219
        %v3229 = vmul.f32 %v2373, %v3223
        %v3230 = vsub.f32 %v3209, %v3226
        %v3231 = vsub.f32 %v3210, %v3227
        %v3232 = vsub.f32 %v3211, %v3228
        %v3233 = vsub.f32 %v3212, %v3229
        %v3234 = vadd.f32 %v2364, %v3230
        %v3235 = vadd.f32 %v2365, %v3231
        %v3236 = vadd.f32 %v2366, %v3232
        %v3237 = vadd.f32 %v2367, %v3233
        %v3238 = vrot.slane %v614, 4
        %v3239 = vrot.slane %v617, 4
        %v3242 = vunpack.c.l.bf16 %v3238
        %v3243 = vunpack.c.l.bf16 %v3239
        %3244 = vadd.xlane.f32.xlu0 %v3242
        %v3245 = vpop.xlane.xlu0 %3244
        %3246 = vadd.xlane.f32.xlu0 %v3243
        %v3247 = vpop.xlane.xlu0 %3246
        %v3248 = vld [vmem:[%s478 + $0x60] sm:$0xff]
        %v3249 = vld [vmem:[%s478 + $0x68] sm:$0xff]
        %v3250 = vld [vmem:[%s478 + $0x70] sm:$0xff]
        %v3251 = vld [vmem:[%s478 + $0x78] sm:$0xff]
        %v3252 = vcombine.low %v3248, %v3249
        %v3253 = vcombine.high %v3248, %v3249
        %v3255 = vunpack.c.l.s4 1966171168
        %v3256 = vunpack.c.0.s8 %v3255
        %v3257 = vlaneseq
        %v3258 = vshrl.u32 %v3257, 7
        %v3259 = vsub.s32 %v3256, %v3258
        %v3260 = vrot.slane %v3252, %v3259
        %v3262 = vunpack.c.l.s4 1966171168
        %v3263 = vunpack.c.0.s8 %v3262
        %v3264 = vlaneseq
        %v3265 = vshrl.u32 %v3264, 7
        %v3266 = vsub.s32 %v3263, %v3265
        %v3267 = vrot.slane %v3253, %v3266
        %v3268 = vcombine.high %v3260, %v3260
        %v3269 = vcombine.high %v3267, %v3267
        %v3271 = vunpack.c.l.s4 1966171168
        %v3272 = vunpack.c.0.s8 %v3271
        %v3273 = vlaneseq
        %v3274 = vshrl.u32 %v3273, 7
        %v3275 = vsub.s32 %v3272, %v3274
        %v3276 = vrot.slane %v3260, %v3275
        %v3278 = vunpack.c.l.s4 1966171168
        %v3279 = vunpack.c.0.s8 %v3278
        %v3280 = vlaneseq
        %v3281 = vshrl.u32 %v3280, 7
        %v3282 = vsub.s32 %v3279, %v3281
        %v3283 = vrot.slane %v3267, %v3282
        %v3285 = vunpack.c.l.s4 1966171168
        %v3286 = vunpack.c.0.s8 %v3285
        %v3287 = vlaneseq
        %v3288 = vshrl.u32 %v3287, 7
        %v3289 = vsub.s32 %v3286, %v3288
        %v3290 = vrot.slane %v3268, %v3289
        %v3292 = vunpack.c.l.s4 1966171168
        %v3293 = vunpack.c.0.s8 %v3292
        %v3294 = vlaneseq
        %v3295 = vshrl.u32 %v3294, 7
        %v3296 = vsub.s32 %v3293, %v3295
        %v3297 = vrot.slane %v3269, %v3296
        %v3298 = vcombine.high %v3276, %v3276
        %v3299 = vcombine.high %v3283, %v3283
        %v3300 = vcombine.high %v3290, %v3290
        %v3301 = vcombine.high %v3297, %v3297
        %v3302 = vcombine.low %v3250, %v3251
        %v3303 = vcombine.high %v3250, %v3251
        %v3305 = vunpack.c.l.s4 1966171168
        %v3306 = vunpack.c.0.s8 %v3305
        %v3307 = vlaneseq
        %v3308 = vshrl.u32 %v3307, 7
        %v3309 = vsub.s32 %v3306, %v3308
        %v3310 = vrot.slane %v3302, %v3309
        %v3312 = vunpack.c.l.s4 1966171168
        %v3313 = vunpack.c.0.s8 %v3312
        %v3314 = vlaneseq
        %v3315 = vshrl.u32 %v3314, 7
        %v3316 = vsub.s32 %v3313, %v3315
        %v3317 = vrot.slane %v3303, %v3316
        %v3318 = vcombine.high %v3310, %v3310
        %v3319 = vcombine.high %v3317, %v3317
        %v3321 = vunpack.c.l.s4 1966171168
        %v3322 = vunpack.c.0.s8 %v3321
        %v3323 = vlaneseq
        %v3324 = vshrl.u32 %v3323, 7
        %v3325 = vsub.s32 %v3322, %v3324
        %v3326 = vrot.slane %v3310, %v3325
        %v3328 = vunpack.c.l.s4 1966171168
        %v3329 = vunpack.c.0.s8 %v3328
        %v3330 = vlaneseq
        %v3331 = vshrl.u32 %v3330, 7
        %v3332 = vsub.s32 %v3329, %v3331
        %v3333 = vrot.slane %v3317, %v3332
        %v3335 = vunpack.c.l.s4 1966171168
        %v3336 = vunpack.c.0.s8 %v3335
        %v3337 = vlaneseq
        %v3338 = vshrl.u32 %v3337, 7
        %v3339 = vsub.s32 %v3336, %v3338
        %v3340 = vrot.slane %v3318, %v3339
        %v3342 = vunpack.c.l.s4 1966171168
        %v3343 = vunpack.c.0.s8 %v3342
        %v3344 = vlaneseq
        %v3345 = vshrl.u32 %v3344, 7
        %v3346 = vsub.s32 %v3343, %v3345
        %v3347 = vrot.slane %v3319, %v3346
        %v3348 = vcombine.high %v3326, %v3326
        %v3349 = vcombine.high %v3333, %v3333
        %v3350 = vcombine.high %v3340, %v3340
        %v3351 = vcombine.high %v3347, %v3347
        %v3352 = vlaneseq
        %v3353 = vshrl.u32 %v3352, 7
        %v3354 = vsub.s32 0, %v3353
        %v3355 = vrot.slane %v3276, %v3354
        %v3356 = vlaneseq
        %v3357 = vshrl.u32 %v3356, 7
        %v3358 = vsub.s32 1, %v3357
        %v3359 = vrot.slane %v3276, %v3358
        %v3360 = vlaneseq
        %v3361 = vshrl.u32 %v3360, 7
        %v3362 = vsub.s32 0, %v3361
        %v3363 = vrot.slane %v3290, %v3362
        %v3364 = vlaneseq
        %v3365 = vshrl.u32 %v3364, 7
        %v3366 = vsub.s32 1, %v3365
        %v3367 = vrot.slane %v3290, %v3366
        %v3368 = vlaneseq
        %v3369 = vshrl.u32 %v3368, 7
        %v3370 = vsub.s32 0, %v3369
        %v3371 = vrot.slane %v3298, %v3370
        %v3372 = vlaneseq
        %v3373 = vshrl.u32 %v3372, 7
        %v3374 = vsub.s32 1, %v3373
        %v3375 = vrot.slane %v3298, %v3374
        %v3376 = vlaneseq
        %v3377 = vshrl.u32 %v3376, 7
        %v3378 = vsub.s32 0, %v3377
        %v3379 = vrot.slane %v3300, %v3378
        %v3380 = vlaneseq
        %v3381 = vshrl.u32 %v3380, 7
        %v3382 = vsub.s32 1, %v3381
        %v3383 = vrot.slane %v3300, %v3382
        %v3384 = vlaneseq
        %v3385 = vshrl.u32 %v3384, 7
        %v3386 = vsub.s32 0, %v3385
        %v3387 = vrot.slane %v3283, %v3386
        %v3388 = vlaneseq
        %v3389 = vshrl.u32 %v3388, 7
        %v3390 = vsub.s32 1, %v3389
        %v3391 = vrot.slane %v3283, %v3390
        %v3392 = vlaneseq
        %v3393 = vshrl.u32 %v3392, 7
        %v3394 = vsub.s32 0, %v3393
        %v3395 = vrot.slane %v3297, %v3394
        %v3396 = vlaneseq
        %v3397 = vshrl.u32 %v3396, 7
        %v3398 = vsub.s32 1, %v3397
        %v3399 = vrot.slane %v3297, %v3398
        %v3400 = vlaneseq
        %v3401 = vshrl.u32 %v3400, 7
        %v3402 = vsub.s32 0, %v3401
        %v3403 = vrot.slane %v3299, %v3402
        %v3404 = vlaneseq
        %v3405 = vshrl.u32 %v3404, 7
        %v3406 = vsub.s32 1, %v3405
        %v3407 = vrot.slane %v3299, %v3406
        %v3408 = vlaneseq
        %v3409 = vshrl.u32 %v3408, 7
        %v3410 = vsub.s32 0, %v3409
        %v3411 = vrot.slane %v3301, %v3410
        %v3412 = vlaneseq
        %v3413 = vshrl.u32 %v3412, 7
        %v3414 = vsub.s32 1, %v3413
        %v3415 = vrot.slane %v3301, %v3414
        %v3416 = vlaneseq
        %v3417 = vshrl.u32 %v3416, 7
        %v3418 = vsub.s32 0, %v3417
        %v3419 = vrot.slane %v3326, %v3418
        %v3420 = vlaneseq
        %v3421 = vshrl.u32 %v3420, 7
        %v3422 = vsub.s32 1, %v3421
        %v3423 = vrot.slane %v3326, %v3422
        %v3424 = vlaneseq
        %v3425 = vshrl.u32 %v3424, 7
        %v3426 = vsub.s32 0, %v3425
        %v3427 = vrot.slane %v3340, %v3426
        %v3428 = vlaneseq
        %v3429 = vshrl.u32 %v3428, 7
        %v3430 = vsub.s32 1, %v3429
        %v3431 = vrot.slane %v3340, %v3430
        %v3432 = vlaneseq
        %v3433 = vshrl.u32 %v3432, 7
        %v3434 = vsub.s32 0, %v3433
        %v3435 = vrot.slane %v3348, %v3434
        %v3436 = vlaneseq
        %v3437 = vshrl.u32 %v3436, 7
        %v3438 = vsub.s32 1, %v3437
        %v3439 = vrot.slane %v3348, %v3438
        %v3440 = vlaneseq
        %v3441 = vshrl.u32 %v3440, 7
        %v3442 = vsub.s32 0, %v3441
        %v3443 = vrot.slane %v3350, %v3442
        %v3444 = vlaneseq
        %v3445 = vshrl.u32 %v3444, 7
        %v3446 = vsub.s32 1, %v3445
        %v3447 = vrot.slane %v3350, %v3446
        %v3448 = vlaneseq
        %v3449 = vshrl.u32 %v3448, 7
        %v3450 = vsub.s32 0, %v3449
        %v3451 = vrot.slane %v3333, %v3450
        %v3452 = vlaneseq
        %v3453 = vshrl.u32 %v3452, 7
        %v3454 = vsub.s32 1, %v3453
        %v3455 = vrot.slane %v3333, %v3454
        %v3456 = vlaneseq
        %v3457 = vshrl.u32 %v3456, 7
        %v3458 = vsub.s32 0, %v3457
        %v3459 = vrot.slane %v3347, %v3458
        %v3460 = vlaneseq
        %v3461 = vshrl.u32 %v3460, 7
        %v3462 = vsub.s32 1, %v3461
        %v3463 = vrot.slane %v3347, %v3462
        %v3464 = vlaneseq
        %v3465 = vshrl.u32 %v3464, 7
        %v3466 = vsub.s32 0, %v3465
        %v3467 = vrot.slane %v3349, %v3466
        %v3468 = vlaneseq
        %v3469 = vshrl.u32 %v3468, 7
        %v3470 = vsub.s32 1, %v3469
        %v3471 = vrot.slane %v3349, %v3470
        %v3472 = vlaneseq
        %v3473 = vshrl.u32 %v3472, 7
        %v3474 = vsub.s32 0, %v3473
        %v3475 = vrot.slane %v3351, %v3474
        %v3476 = vlaneseq
        %v3477 = vshrl.u32 %v3476, 7
        %v3478 = vsub.s32 1, %v3477
        %v3479 = vrot.slane %v3351, %v3478
        %v3480 = vshra.s32 %v3355, %v639
        %v3481 = vshra.s32 %v3359, %v639
        %v3482 = vshra.s32 %v3363, %v639
        %v3483 = vshra.s32 %v3367, %v639
        %v3484 = vshra.s32 %v3371, %v639
        %v3485 = vshra.s32 %v3375, %v639
        %v3486 = vshra.s32 %v3379, %v639
        %v3487 = vshra.s32 %v3383, %v639
        %v3488 = vshra.s32 %v3387, %v639
        %v3489 = vshra.s32 %v3391, %v639
        %v3490 = vshra.s32 %v3395, %v639
        %v3491 = vshra.s32 %v3399, %v639
        %v3492 = vshra.s32 %v3403, %v639
        %v3493 = vshra.s32 %v3407, %v639
        %v3494 = vshra.s32 %v3411, %v639
        %v3495 = vshra.s32 %v3415, %v639
        %v3496 = vshra.s32 %v3419, %v639
        %v3497 = vshra.s32 %v3423, %v639
        %v3498 = vshra.s32 %v3427, %v639
        %v3499 = vshra.s32 %v3431, %v639
        %v3500 = vshra.s32 %v3435, %v639
        %v3501 = vshra.s32 %v3439, %v639
        %v3502 = vshra.s32 %v3443, %v639
        %v3503 = vshra.s32 %v3447, %v639
        %v3504 = vshra.s32 %v3451, %v639
        %v3505 = vshra.s32 %v3455, %v639
        %v3506 = vshra.s32 %v3459, %v639
        %v3507 = vshra.s32 %v3463, %v639
        %v3508 = vshra.s32 %v3467, %v639
        %v3509 = vshra.s32 %v3471, %v639
        %v3510 = vshra.s32 %v3475, %v639
        %v3511 = vshra.s32 %v3479, %v639
        %v3512 = vand.u32 %v3480, 15
        %v3513 = vand.u32 %v3481, 15
        %v3514 = vand.u32 %v3482, 15
        %v3515 = vand.u32 %v3483, 15
        %v3516 = vand.u32 %v3484, 15
        %v3517 = vand.u32 %v3485, 15
        %v3518 = vand.u32 %v3486, 15
        %v3519 = vand.u32 %v3487, 15
        %v3520 = vand.u32 %v3488, 15
        %v3521 = vand.u32 %v3489, 15
        %v3522 = vand.u32 %v3490, 15
        %v3523 = vand.u32 %v3491, 15
        %v3524 = vand.u32 %v3492, 15
        %v3525 = vand.u32 %v3493, 15
        %v3526 = vand.u32 %v3494, 15
        %v3527 = vand.u32 %v3495, 15
        %v3528 = vand.u32 %v3496, 15
        %v3529 = vand.u32 %v3497, 15
        %v3530 = vand.u32 %v3498, 15
        %v3531 = vand.u32 %v3499, 15
        %v3532 = vand.u32 %v3500, 15
        %v3533 = vand.u32 %v3501, 15
        %v3534 = vand.u32 %v3502, 15
        %v3535 = vand.u32 %v3503, 15
        %v3536 = vand.u32 %v3504, 15
        %v3537 = vand.u32 %v3505, 15
        %v3538 = vand.u32 %v3506, 15
        %v3539 = vand.u32 %v3507, 15
        %v3540 = vand.u32 %v3508, 15
        %v3541 = vand.u32 %v3509, 15
        %v3542 = vand.u32 %v3510, 15
        %v3543 = vand.u32 %v3511, 15
        %v3544 = vcvt.s32.f32 %v3512
        %v3545 = vcvt.s32.f32 %v3513
        %v3546 = vcvt.s32.f32 %v3514
        %v3547 = vcvt.s32.f32 %v3515
        %v3548 = vcvt.s32.f32 %v3516
        %v3549 = vcvt.s32.f32 %v3517
        %v3550 = vcvt.s32.f32 %v3518
        %v3551 = vcvt.s32.f32 %v3519
        %v3552 = vcvt.s32.f32 %v3520
        %v3553 = vcvt.s32.f32 %v3521
        %v3554 = vcvt.s32.f32 %v3522
        %v3555 = vcvt.s32.f32 %v3523
        %v3556 = vcvt.s32.f32 %v3524
        %v3557 = vcvt.s32.f32 %v3525
        %v3558 = vcvt.s32.f32 %v3526
        %v3559 = vcvt.s32.f32 %v3527
        %v3560 = vcvt.s32.f32 %v3528
        %v3561 = vcvt.s32.f32 %v3529
        %v3562 = vcvt.s32.f32 %v3530
        %v3563 = vcvt.s32.f32 %v3531
        %v3564 = vcvt.s32.f32 %v3532
        %v3565 = vcvt.s32.f32 %v3533
        %v3566 = vcvt.s32.f32 %v3534
        %v3567 = vcvt.s32.f32 %v3535
        %v3568 = vcvt.s32.f32 %v3536
        %v3569 = vcvt.s32.f32 %v3537
        %v3570 = vcvt.s32.f32 %v3538
        %v3571 = vcvt.s32.f32 %v3539
        %v3572 = vcvt.s32.f32 %v3540
        %v3573 = vcvt.s32.f32 %v3541
        %v3574 = vcvt.s32.f32 %v3542
        %v3575 = vcvt.s32.f32 %v3543
        %v3576 = vpack.c.bf16 %v3546, %v3544
        %v3577 = vpack.c.bf16 %v3547, %v3545
        %v3578 = vpack.c.bf16 %v3550, %v3548
        %v3579 = vpack.c.bf16 %v3551, %v3549
        %v3580 = vpack.c.bf16 %v3554, %v3552
        %v3581 = vpack.c.bf16 %v3555, %v3553
        %v3582 = vpack.c.bf16 %v3558, %v3556
        %v3583 = vpack.c.bf16 %v3559, %v3557
        %v3584 = vpack.c.bf16 %v3562, %v3560
        %v3585 = vpack.c.bf16 %v3563, %v3561
        %v3586 = vpack.c.bf16 %v3566, %v3564
        %v3587 = vpack.c.bf16 %v3567, %v3565
        %v3588 = vpack.c.bf16 %v3570, %v3568
        %v3589 = vpack.c.bf16 %v3571, %v3569
        %v3590 = vpack.c.bf16 %v3574, %v3572
        %v3591 = vpack.c.bf16 %v3575, %v3573
        %v3592 = vunpack.c.h.b16 %v614
        %v3593 = vunpack.c.h.b16 %v617
        %v3594 = vpack.c.b16 %v3593, %v3592
        %3596 = vmatprep.subr.bf16.mxu0 %v3591
        %3597 = vmatpush1.bf16.msra.mxu0 %v3590
        %3598 = vmatprep.subr.bf16.mxu0 %v3589
        %3599 = vmatpush1.bf16.msra.mxu0 %v3588
        %3600 = vmatprep.subr.bf16.mxu0 %v3587
        %3601 = vmatpush1.bf16.msra.mxu0 %v3586
        %3602 = vmatprep.subr.bf16.mxu0 %v3585
        %3603 = vmatpush1.bf16.msra.mxu0 %v3584
        %3604 = vmatprep.subr.bf16.mxu0 %v3583
        %3605 = vmatpush1.bf16.msra.mxu0 %v3582
        %3606 = vmatprep.subr.bf16.mxu0 %v3581
        %3607 = vmatpush1.bf16.msra.mxu0 %v3580
        %3608 = vmatprep.subr.bf16.mxu0 %v3579
        %3609 = vmatpush1.bf16.msra.mxu0 %v3578
        %3610 = vmatprep.subr.bf16.mxu0 %v3577
        %3611 = vmatpush1.bf16.msra.mxu0 %v3576
        %3612 = vmatprep.subr.bf16.mxu0 0
        %3613 = vmatpush2.bf16.msra.mxu0 0
        %3614 = vmatprep.subr.bf16.mxu0 0
        %3615 = vmatpush2.bf16.msra.mxu0 0
        %3616 = vmatprep.subr.bf16.mxu0 0
        %3617 = vmatpush2.bf16.msra.mxu0 0
        %3618 = vmatprep.subr.bf16.mxu0 0
        %3619 = vmatpush2.bf16.msra.mxu0 0
        %3620 = vmatprep.subr.bf16.mxu0 0
        %3621 = vmatpush2.bf16.msra.mxu0 0
        %3622 = vmatprep.subr.bf16.mxu0 0
        %3623 = vmatpush2.bf16.msra.mxu0 0
        %3624 = vmatprep.subr.bf16.mxu0 0
        %3625 = vmatpush2.bf16.msra.mxu0 0
        %3626 = vmatprep.subr.bf16.mxu0 0
        %3627 = vmatpush2.bf16.msra.mxu0 0
        %3628 = vmatprep.mubr.bf16.mxu0 0
        %3629 = vmatmul.mubr.bf16.gmra.mxu0 %v3594
        %v3630 = vpop.f32.mrf.mxu0
        %v3631 = vadd.f32 0.0, %v3630
        %v3632 = vpop.f32.mrf.mxu0
        %v3633 = vadd.f32 0.0, %v3632
        %v3634 = vpop.f32.mrf.mxu0
        %v3635 = vadd.f32 0.0, %v3634
        %v3636 = vpop.f32.mrf.mxu0
        %v3637 = vadd.f32 0.0, %v3636
        %3638 = vdwg.mxu0
        %s3639 = scalar_lea.vmem %s487, 6 [#allocation9]
        %v3640 = vld [vmem:[%s3639] sm:$0x3]
        %v3642 = vlaneseq
        %v3643 = vshrl.u32 %v3642, 7
        %v3644 = vsub.s32 0, %v3643
        %v3645 = vrot.slane %v3640, %v3644
        %v3646 = vlaneseq
        %v3647 = vshrl.u32 %v3646, 7
        %v3648 = vsub.s32 1, %v3647
        %v3649 = vrot.slane %v3640, %v3648
        %v3652 = vmul.f32 %v3631, %v3645
        %v3653 = vmul.f32 %v3633, %v3649
        %v3654 = vmul.f32 %v3635, %v3645
        %v3655 = vmul.f32 %v3637, %v3649
        %s3656 = scalar_lea.vmem %s496, 6 [#allocation10]
        %v3657 = vld [vmem:[%s3656] sm:$0x3]
        %v3659 = vlaneseq
        %v3660 = vshrl.u32 %v3659, 7
        %v3661 = vsub.s32 0, %v3660
        %v3662 = vrot.slane %v3657, %v3661
        %v3663 = vlaneseq
        %v3664 = vshrl.u32 %v3663, 7
        %v3665 = vsub.s32 1, %v3664
        %v3666 = vrot.slane %v3657, %v3665
        %v3669 = vmul.f32 %v3245, %v3662
        %v3670 = vmul.f32 %v3245, %v3666
        %v3671 = vmul.f32 %v3247, %v3662
        %v3672 = vmul.f32 %v3247, %v3666
        %v3673 = vsub.f32 %v3652, %v3669
        %v3674 = vsub.f32 %v3653, %v3670
        %v3675 = vsub.f32 %v3654, %v3671
        %v3676 = vsub.f32 %v3655, %v3672
        %v3677 = vadd.f32 %v2805, %v3673
        %v3678 = vadd.f32 %v2806, %v3674
        %v3679 = vadd.f32 %v2807, %v3675
        %v3680 = vadd.f32 %v2808, %v3676
        %v3681 = vld [vmem:[%s505 + $0x60] sm:$0xff]
        %v3682 = vld [vmem:[%s505 + $0x68] sm:$0xff]
        %v3683 = vld [vmem:[%s505 + $0x70] sm:$0xff]
        %v3684 = vld [vmem:[%s505 + $0x78] sm:$0xff]
        %v3685 = vcombine.low %v3681, %v3682
        %v3686 = vcombine.high %v3681, %v3682
        %v3688 = vunpack.c.l.s4 1966171168
        %v3689 = vunpack.c.0.s8 %v3688
        %v3690 = vlaneseq
        %v3691 = vshrl.u32 %v3690, 7
        %v3692 = vsub.s32 %v3689, %v3691
        %v3693 = vrot.slane %v3685, %v3692
        %v3695 = vunpack.c.l.s4 1966171168
        %v3696 = vunpack.c.0.s8 %v3695
        %v3697 = vlaneseq
        %v3698 = vshrl.u32 %v3697, 7
        %v3699 = vsub.s32 %v3696, %v3698
        %v3700 = vrot.slane %v3686, %v3699
        %v3701 = vcombine.high %v3693, %v3693
        %v3702 = vcombine.high %v3700, %v3700
        %v3704 = vunpack.c.l.s4 1966171168
        %v3705 = vunpack.c.0.s8 %v3704
        %v3706 = vlaneseq
        %v3707 = vshrl.u32 %v3706, 7
        %v3708 = vsub.s32 %v3705, %v3707
        %v3709 = vrot.slane %v3693, %v3708
        %v3711 = vunpack.c.l.s4 1966171168
        %v3712 = vunpack.c.0.s8 %v3711
        %v3713 = vlaneseq
        %v3714 = vshrl.u32 %v3713, 7
        %v3715 = vsub.s32 %v3712, %v3714
        %v3716 = vrot.slane %v3700, %v3715
        %v3718 = vunpack.c.l.s4 1966171168
        %v3719 = vunpack.c.0.s8 %v3718
        %v3720 = vlaneseq
        %v3721 = vshrl.u32 %v3720, 7
        %v3722 = vsub.s32 %v3719, %v3721
        %v3723 = vrot.slane %v3701, %v3722
        %v3725 = vunpack.c.l.s4 1966171168
        %v3726 = vunpack.c.0.s8 %v3725
        %v3727 = vlaneseq
        %v3728 = vshrl.u32 %v3727, 7
        %v3729 = vsub.s32 %v3726, %v3728
        %v3730 = vrot.slane %v3702, %v3729
        %v3731 = vcombine.high %v3709, %v3709
        %v3732 = vcombine.high %v3716, %v3716
        %v3733 = vcombine.high %v3723, %v3723
        %v3734 = vcombine.high %v3730, %v3730
        %v3735 = vcombine.low %v3683, %v3684
        %v3736 = vcombine.high %v3683, %v3684
        %v3738 = vunpack.c.l.s4 1966171168
        %v3739 = vunpack.c.0.s8 %v3738
        %v3740 = vlaneseq
        %v3741 = vshrl.u32 %v3740, 7
        %v3742 = vsub.s32 %v3739, %v3741
        %v3743 = vrot.slane %v3735, %v3742
        %v3745 = vunpack.c.l.s4 1966171168
        %v3746 = vunpack.c.0.s8 %v3745
        %v3747 = vlaneseq
        %v3748 = vshrl.u32 %v3747, 7
        %v3749 = vsub.s32 %v3746, %v3748
        %v3750 = vrot.slane %v3736, %v3749
        %v3751 = vcombine.high %v3743, %v3743
        %v3752 = vcombine.high %v3750, %v3750
        %v3754 = vunpack.c.l.s4 1966171168
        %v3755 = vunpack.c.0.s8 %v3754
        %v3756 = vlaneseq
        %v3757 = vshrl.u32 %v3756, 7
        %v3758 = vsub.s32 %v3755, %v3757
        %v3759 = vrot.slane %v3743, %v3758
        %v3761 = vunpack.c.l.s4 1966171168
        %v3762 = vunpack.c.0.s8 %v3761
        %v3763 = vlaneseq
        %v3764 = vshrl.u32 %v3763, 7
        %v3765 = vsub.s32 %v3762, %v3764
        %v3766 = vrot.slane %v3750, %v3765
        %v3768 = vunpack.c.l.s4 1966171168
        %v3769 = vunpack.c.0.s8 %v3768
        %v3770 = vlaneseq
        %v3771 = vshrl.u32 %v3770, 7
        %v3772 = vsub.s32 %v3769, %v3771
        %v3773 = vrot.slane %v3751, %v3772
        %v3775 = vunpack.c.l.s4 1966171168
        %v3776 = vunpack.c.0.s8 %v3775
        %v3777 = vlaneseq
        %v3778 = vshrl.u32 %v3777, 7
        %v3779 = vsub.s32 %v3776, %v3778
        %v3780 = vrot.slane %v3752, %v3779
        %v3781 = vcombine.high %v3759, %v3759
        %v3782 = vcombine.high %v3766, %v3766
        %v3783 = vcombine.high %v3773, %v3773
        %v3784 = vcombine.high %v3780, %v3780
        %v3785 = vlaneseq
        %v3786 = vshrl.u32 %v3785, 7
        %v3787 = vsub.s32 0, %v3786
        %v3788 = vrot.slane %v3709, %v3787
        %v3789 = vlaneseq
        %v3790 = vshrl.u32 %v3789, 7
        %v3791 = vsub.s32 1, %v3790
        %v3792 = vrot.slane %v3709, %v3791
        %v3793 = vlaneseq
        %v3794 = vshrl.u32 %v3793, 7
        %v3795 = vsub.s32 0, %v3794
        %v3796 = vrot.slane %v3723, %v3795
        %v3797 = vlaneseq
        %v3798 = vshrl.u32 %v3797, 7
        %v3799 = vsub.s32 1, %v3798
        %v3800 = vrot.slane %v3723, %v3799
        %v3801 = vlaneseq
        %v3802 = vshrl.u32 %v3801, 7
        %v3803 = vsub.s32 0, %v3802
        %v3804 = vrot.slane %v3731, %v3803
        %v3805 = vlaneseq
        %v3806 = vshrl.u32 %v3805, 7
        %v3807 = vsub.s32 1, %v3806
        %v3808 = vrot.slane %v3731, %v3807
        %v3809 = vlaneseq
        %v3810 = vshrl.u32 %v3809, 7
        %v3811 = vsub.s32 0, %v3810
        %v3812 = vrot.slane %v3733, %v3811
        %v3813 = vlaneseq
        %v3814 = vshrl.u32 %v3813, 7
        %v3815 = vsub.s32 1, %v3814
        %v3816 = vrot.slane %v3733, %v3815
        %v3817 = vlaneseq
        %v3818 = vshrl.u32 %v3817, 7
        %v3819 = vsub.s32 0, %v3818
        %v3820 = vrot.slane %v3716, %v3819
        %v3821 = vlaneseq
        %v3822 = vshrl.u32 %v3821, 7
        %v3823 = vsub.s32 1, %v3822
        %v3824 = vrot.slane %v3716, %v3823
        %v3825 = vlaneseq
        %v3826 = vshrl.u32 %v3825, 7
        %v3827 = vsub.s32 0, %v3826
        %v3828 = vrot.slane %v3730, %v3827
        %v3829 = vlaneseq
        %v3830 = vshrl.u32 %v3829, 7
        %v3831 = vsub.s32 1, %v3830
        %v3832 = vrot.slane %v3730, %v3831
        %v3833 = vlaneseq
        %v3834 = vshrl.u32 %v3833, 7
        %v3835 = vsub.s32 0, %v3834
        %v3836 = vrot.slane %v3732, %v3835
        %v3837 = vlaneseq
        %v3838 = vshrl.u32 %v3837, 7
        %v3839 = vsub.s32 1, %v3838
        %v3840 = vrot.slane %v3732, %v3839
        %v3841 = vlaneseq
        %v3842 = vshrl.u32 %v3841, 7
        %v3843 = vsub.s32 0, %v3842
        %v3844 = vrot.slane %v3734, %v3843
        %v3845 = vlaneseq
        %v3846 = vshrl.u32 %v3845, 7
        %v3847 = vsub.s32 1, %v3846
        %v3848 = vrot.slane %v3734, %v3847
        %v3849 = vlaneseq
        %v3850 = vshrl.u32 %v3849, 7
        %v3851 = vsub.s32 0, %v3850
        %v3852 = vrot.slane %v3759, %v3851
        %v3853 = vlaneseq
        %v3854 = vshrl.u32 %v3853, 7
        %v3855 = vsub.s32 1, %v3854
        %v3856 = vrot.slane %v3759, %v3855
        %v3857 = vlaneseq
        %v3858 = vshrl.u32 %v3857, 7
        %v3859 = vsub.s32 0, %v3858
        %v3860 = vrot.slane %v3773, %v3859
        %v3861 = vlaneseq
        %v3862 = vshrl.u32 %v3861, 7
        %v3863 = vsub.s32 1, %v3862
        %v3864 = vrot.slane %v3773, %v3863
        %v3865 = vlaneseq
        %v3866 = vshrl.u32 %v3865, 7
        %v3867 = vsub.s32 0, %v3866
        %v3868 = vrot.slane %v3781, %v3867
        %v3869 = vlaneseq
        %v3870 = vshrl.u32 %v3869, 7
        %v3871 = vsub.s32 1, %v3870
        %v3872 = vrot.slane %v3781, %v3871
        %v3873 = vlaneseq
        %v3874 = vshrl.u32 %v3873, 7
        %v3875 = vsub.s32 0, %v3874
        %v3876 = vrot.slane %v3783, %v3875
        %v3877 = vlaneseq
        %v3878 = vshrl.u32 %v3877, 7
        %v3879 = vsub.s32 1, %v3878
        %v3880 = vrot.slane %v3783, %v3879
        %v3881 = vlaneseq
        %v3882 = vshrl.u32 %v3881, 7
        %v3883 = vsub.s32 0, %v3882
        %v3884 = vrot.slane %v3766, %v3883
        %v3885 = vlaneseq
        %v3886 = vshrl.u32 %v3885, 7
        %v3887 = vsub.s32 1, %v3886
        %v3888 = vrot.slane %v3766, %v3887
        %v3889 = vlaneseq
        %v3890 = vshrl.u32 %v3889, 7
        %v3891 = vsub.s32 0, %v3890
        %v3892 = vrot.slane %v3780, %v3891
        %v3893 = vlaneseq
        %v3894 = vshrl.u32 %v3893, 7
        %v3895 = vsub.s32 1, %v3894
        %v3896 = vrot.slane %v3780, %v3895
        %v3897 = vlaneseq
        %v3898 = vshrl.u32 %v3897, 7
        %v3899 = vsub.s32 0, %v3898
        %v3900 = vrot.slane %v3782, %v3899
        %v3901 = vlaneseq
        %v3902 = vshrl.u32 %v3901, 7
        %v3903 = vsub.s32 1, %v3902
        %v3904 = vrot.slane %v3782, %v3903
        %v3905 = vlaneseq
        %v3906 = vshrl.u32 %v3905, 7
        %v3907 = vsub.s32 0, %v3906
        %v3908 = vrot.slane %v3784, %v3907
        %v3909 = vlaneseq
        %v3910 = vshrl.u32 %v3909, 7
        %v3911 = vsub.s32 1, %v3910
        %v3912 = vrot.slane %v3784, %v3911
        %v3913 = vshra.s32 %v3788, %v639
        %v3914 = vshra.s32 %v3792, %v639
        %v3915 = vshra.s32 %v3796, %v639
        %v3916 = vshra.s32 %v3800, %v639
        %v3917 = vshra.s32 %v3804, %v639
        %v3918 = vshra.s32 %v3808, %v639
        %v3919 = vshra.s32 %v3812, %v639
        %v3920 = vshra.s32 %v3816, %v639
        %v3921 = vshra.s32 %v3820, %v639
        %v3922 = vshra.s32 %v3824, %v639
        %v3923 = vshra.s32 %v3828, %v639
        %v3924 = vshra.s32 %v3832, %v639
        %v3925 = vshra.s32 %v3836, %v639
        %v3926 = vshra.s32 %v3840, %v639
        %v3927 = vshra.s32 %v3844, %v639
        %v3928 = vshra.s32 %v3848, %v639
        %v3929 = vshra.s32 %v3852, %v639
        %v3930 = vshra.s32 %v3856, %v639
        %v3931 = vshra.s32 %v3860, %v639
        %v3932 = vshra.s32 %v3864, %v639
        %v3933 = vshra.s32 %v3868, %v639
        %v3934 = vshra.s32 %v3872, %v639
        %v3935 = vshra.s32 %v3876, %v639
        %v3936 = vshra.s32 %v3880, %v639
        %v3937 = vshra.s32 %v3884, %v639
        %v3938 = vshra.s32 %v3888, %v639
        %v3939 = vshra.s32 %v3892, %v639
        %v3940 = vshra.s32 %v3896, %v639
        %v3941 = vshra.s32 %v3900, %v639
        %v3942 = vshra.s32 %v3904, %v639
        %v3943 = vshra.s32 %v3908, %v639
        %v3944 = vshra.s32 %v3912, %v639
        %v3945 = vand.u32 %v3913, 15
        %v3946 = vand.u32 %v3914, 15
        %v3947 = vand.u32 %v3915, 15
        %v3948 = vand.u32 %v3916, 15
        %v3949 = vand.u32 %v3917, 15
        %v3950 = vand.u32 %v3918, 15
        %v3951 = vand.u32 %v3919, 15
        %v3952 = vand.u32 %v3920, 15
        %v3953 = vand.u32 %v3921, 15
        %v3954 = vand.u32 %v3922, 15
        %v3955 = vand.u32 %v3923, 15
        %v3956 = vand.u32 %v3924, 15
        %v3957 = vand.u32 %v3925, 15
        %v3958 = vand.u32 %v3926, 15
        %v3959 = vand.u32 %v3927, 15
        %v3960 = vand.u32 %v3928, 15
        %v3961 = vand.u32 %v3929, 15
        %v3962 = vand.u32 %v3930, 15
        %v3963 = vand.u32 %v3931, 15
        %v3964 = vand.u32 %v3932, 15
        %v3965 = vand.u32 %v3933, 15
        %v3966 = vand.u32 %v3934, 15
        %v3967 = vand.u32 %v3935, 15
        %v3968 = vand.u32 %v3936, 15
        %v3969 = vand.u32 %v3937, 15
        %v3970 = vand.u32 %v3938, 15
        %v3971 = vand.u32 %v3939, 15
        %v3972 = vand.u32 %v3940, 15
        %v3973 = vand.u32 %v3941, 15
        %v3974 = vand.u32 %v3942, 15
        %v3975 = vand.u32 %v3943, 15
        %v3976 = vand.u32 %v3944, 15
        %v3977 = vcvt.s32.f32 %v3945
        %v3978 = vcvt.s32.f32 %v3946
        %v3979 = vcvt.s32.f32 %v3947
        %v3980 = vcvt.s32.f32 %v3948
        %v3981 = vcvt.s32.f32 %v3949
        %v3982 = vcvt.s32.f32 %v3950
        %v3983 = vcvt.s32.f32 %v3951
        %v3984 = vcvt.s32.f32 %v3952
        %v3985 = vcvt.s32.f32 %v3953
        %v3986 = vcvt.s32.f32 %v3954
        %v3987 = vcvt.s32.f32 %v3955
        %v3988 = vcvt.s32.f32 %v3956
        %v3989 = vcvt.s32.f32 %v3957
        %v3990 = vcvt.s32.f32 %v3958
        %v3991 = vcvt.s32.f32 %v3959
        %v3992 = vcvt.s32.f32 %v3960
        %v3993 = vcvt.s32.f32 %v3961
        %v3994 = vcvt.s32.f32 %v3962
        %v3995 = vcvt.s32.f32 %v3963
        %v3996 = vcvt.s32.f32 %v3964
        %v3997 = vcvt.s32.f32 %v3965
        %v3998 = vcvt.s32.f32 %v3966
        %v3999 = vcvt.s32.f32 %v3967
        %v4000 = vcvt.s32.f32 %v3968
        %v4001 = vcvt.s32.f32 %v3969
        %v4002 = vcvt.s32.f32 %v3970
        %v4003 = vcvt.s32.f32 %v3971
        %v4004 = vcvt.s32.f32 %v3972
        %v4005 = vcvt.s32.f32 %v3973
        %v4006 = vcvt.s32.f32 %v3974
        %v4007 = vcvt.s32.f32 %v3975
        %v4008 = vcvt.s32.f32 %v3976
        %v4009 = vpack.c.bf16 %v3979, %v3977
        %v4010 = vpack.c.bf16 %v3980, %v3978
        %v4011 = vpack.c.bf16 %v3983, %v3981
        %v4012 = vpack.c.bf16 %v3984, %v3982
        %v4013 = vpack.c.bf16 %v3987, %v3985
        %v4014 = vpack.c.bf16 %v3988, %v3986
        %v4015 = vpack.c.bf16 %v3991, %v3989
        %v4016 = vpack.c.bf16 %v3992, %v3990
        %v4017 = vpack.c.bf16 %v3995, %v3993
        %v4018 = vpack.c.bf16 %v3996, %v3994
        %v4019 = vpack.c.bf16 %v3999, %v3997
        %v4020 = vpack.c.bf16 %v4000, %v3998
        %v4021 = vpack.c.bf16 %v4003, %v4001
        %v4022 = vpack.c.bf16 %v4004, %v4002
        %v4023 = vpack.c.bf16 %v4007, %v4005
        %v4024 = vpack.c.bf16 %v4008, %v4006
        %4025 = vmatprep.subr.bf16.mxu0 %v4024
        %4026 = vmatpush1.bf16.msra.mxu0 %v4023
        %4027 = vmatprep.subr.bf16.mxu0 %v4022
        %4028 = vmatpush1.bf16.msra.mxu0 %v4021
        %4029 = vmatprep.subr.bf16.mxu0 %v4020
        %4030 = vmatpush1.bf16.msra.mxu0 %v4019
        %4031 = vmatprep.subr.bf16.mxu0 %v4018
        %4032 = vmatpush1.bf16.msra.mxu0 %v4017
        %4033 = vmatprep.subr.bf16.mxu0 %v4016
        %4034 = vmatpush1.bf16.msra.mxu0 %v4015
        %4035 = vmatprep.subr.bf16.mxu0 %v4014
        %4036 = vmatpush1.bf16.msra.mxu0 %v4013
        %4037 = vmatprep.subr.bf16.mxu0 %v4012
        %4038 = vmatpush1.bf16.msra.mxu0 %v4011
        %4039 = vmatprep.subr.bf16.mxu0 %v4010
        %4040 = vmatpush1.bf16.msra.mxu0 %v4009
        %4041 = vmatprep.subr.bf16.mxu0 0
        %4042 = vmatpush2.bf16.msra.mxu0 0
        %4043 = vmatprep.subr.bf16.mxu0 0
        %4044 = vmatpush2.bf16.msra.mxu0 0
        %4045 = vmatprep.subr.bf16.mxu0 0
        %4046 = vmatpush2.bf16.msra.mxu0 0
        %4047 = vmatprep.subr.bf16.mxu0 0
        %4048 = vmatpush2.bf16.msra.mxu0 0
        %4049 = vmatprep.subr.bf16.mxu0 0
        %4050 = vmatpush2.bf16.msra.mxu0 0
        %4051 = vmatprep.subr.bf16.mxu0 0
        %4052 = vmatpush2.bf16.msra.mxu0 0
        %4053 = vmatprep.subr.bf16.mxu0 0
        %4054 = vmatpush2.bf16.msra.mxu0 0
        %4055 = vmatprep.subr.bf16.mxu0 0
        %4056 = vmatpush2.bf16.msra.mxu0 0
        %4057 = vmatprep.mubr.bf16.mxu0 0
        %4058 = vmatmul.mubr.bf16.gmra.mxu0 %v3594
        %v4059 = vpop.f32.mrf.mxu0
        %v4060 = vadd.f32 0.0, %v4059
        %v4061 = vpop.f32.mrf.mxu0
        %v4062 = vadd.f32 0.0, %v4061
        %v4063 = vpop.f32.mrf.mxu0
        %v4064 = vadd.f32 0.0, %v4063
        %v4065 = vpop.f32.mrf.mxu0
        %v4066 = vadd.f32 0.0, %v4065
        %4067 = vdwg.mxu0
        %s4068 = scalar_lea.vmem %s514, 6 [#allocation13]
        %v4069 = vld [vmem:[%s4068] sm:$0x3]
        %v4071 = vlaneseq
        %v4072 = vshrl.u32 %v4071, 7
        %v4073 = vsub.s32 0, %v4072
        %v4074 = vrot.slane %v4069, %v4073
        %v4075 = vlaneseq
        %v4076 = vshrl.u32 %v4075, 7
        %v4077 = vsub.s32 1, %v4076
        %v4078 = vrot.slane %v4069, %v4077
        %v4081 = vmul.f32 %v4060, %v4074
        %v4082 = vmul.f32 %v4062, %v4078
        %v4083 = vmul.f32 %v4064, %v4074
        %v4084 = vmul.f32 %v4066, %v4078
        %s4085 = scalar_lea.vmem %s523, 6 [#allocation15]
        %v4086 = vld [vmem:[%s4085] sm:$0x3]
        %v4088 = vlaneseq
        %v4089 = vshrl.u32 %v4088, 7
        %v4090 = vsub.s32 0, %v4089
        %v4091 = vrot.slane %v4086, %v4090
        %v4092 = vlaneseq
        %v4093 = vshrl.u32 %v4092, 7
        %v4094 = vsub.s32 1, %v4093
        %v4095 = vrot.slane %v4086, %v4094
        %v4098 = vmul.f32 %v3245, %v4091
        %v4099 = vmul.f32 %v3245, %v4095
        %v4100 = vmul.f32 %v3247, %v4091
        %v4101 = vmul.f32 %v3247, %v4095
        %v4102 = vsub.f32 %v4081, %v4098
        %v4103 = vsub.f32 %v4082, %v4099
        %v4104 = vsub.f32 %v4083, %v4100
        %v4105 = vsub.f32 %v4084, %v4101
        %v4106 = vadd.f32 %v3234, %v4102
        %v4107 = vadd.f32 %v3235, %v4103
        %v4108 = vadd.f32 %v3236, %v4104
        %v4109 = vadd.f32 %v3237, %v4105
        %v4110 = vunpack.c.l.bf16 %v615
        %v4111 = vunpack.c.l.bf16 %v618
        %4112 = vadd.xlane.f32.xlu0 %v4110
        %v4113 = vpop.xlane.xlu0 %4112
        %4114 = vadd.xlane.f32.xlu0 %v4111
        %v4115 = vpop.xlane.xlu0 %4114
        %v4116 = vld [vmem:[%s478 + $0x80] sm:$0xff]
        %v4117 = vld [vmem:[%s478 + $0x88] sm:$0xff]
        %v4118 = vld [vmem:[%s478 + $0x90] sm:$0xff]
        %v4119 = vld [vmem:[%s478 + $0x98] sm:$0xff]
        %v4120 = vcombine.low %v4116, %v4117
        %v4121 = vcombine.high %v4116, %v4117
        %v4123 = vunpack.c.l.s4 1966171168
        %v4124 = vunpack.c.0.s8 %v4123
        %v4125 = vlaneseq
        %v4126 = vshrl.u32 %v4125, 7
        %v4127 = vsub.s32 %v4124, %v4126
        %v4128 = vrot.slane %v4120, %v4127
        %v4130 = vunpack.c.l.s4 1966171168
        %v4131 = vunpack.c.0.s8 %v4130
        %v4132 = vlaneseq
        %v4133 = vshrl.u32 %v4132, 7
        %v4134 = vsub.s32 %v4131, %v4133
        %v4135 = vrot.slane %v4121, %v4134
        %v4136 = vcombine.high %v4128, %v4128
        %v4137 = vcombine.high %v4135, %v4135
        %v4139 = vunpack.c.l.s4 1966171168
        %v4140 = vunpack.c.0.s8 %v4139
        %v4141 = vlaneseq
        %v4142 = vshrl.u32 %v4141, 7
        %v4143 = vsub.s32 %v4140, %v4142
        %v4144 = vrot.slane %v4128, %v4143
        %v4146 = vunpack.c.l.s4 1966171168
        %v4147 = vunpack.c.0.s8 %v4146
        %v4148 = vlaneseq
        %v4149 = vshrl.u32 %v4148, 7
        %v4150 = vsub.s32 %v4147, %v4149
        %v4151 = vrot.slane %v4135, %v4150
        %v4153 = vunpack.c.l.s4 1966171168
        %v4154 = vunpack.c.0.s8 %v4153
        %v4155 = vlaneseq
        %v4156 = vshrl.u32 %v4155, 7
        %v4157 = vsub.s32 %v4154, %v4156
        %v4158 = vrot.slane %v4136, %v4157
        %v4160 = vunpack.c.l.s4 1966171168
        %v4161 = vunpack.c.0.s8 %v4160
        %v4162 = vlaneseq
        %v4163 = vshrl.u32 %v4162, 7
        %v4164 = vsub.s32 %v4161, %v4163
        %v4165 = vrot.slane %v4137, %v4164
        %v4166 = vcombine.high %v4144, %v4144
        %v4167 = vcombine.high %v4151, %v4151
        %v4168 = vcombine.high %v4158, %v4158
        %v4169 = vcombine.high %v4165, %v4165
        %v4170 = vcombine.low %v4118, %v4119
        %v4171 = vcombine.high %v4118, %v4119
        %v4173 = vunpack.c.l.s4 1966171168
        %v4174 = vunpack.c.0.s8 %v4173
        %v4175 = vlaneseq
        %v4176 = vshrl.u32 %v4175, 7
        %v4177 = vsub.s32 %v4174, %v4176
        %v4178 = vrot.slane %v4170, %v4177
        %v4180 = vunpack.c.l.s4 1966171168
        %v4181 = vunpack.c.0.s8 %v4180
        %v4182 = vlaneseq
        %v4183 = vshrl.u32 %v4182, 7
        %v4184 = vsub.s32 %v4181, %v4183
        %v4185 = vrot.slane %v4171, %v4184
        %v4186 = vcombine.high %v4178, %v4178
        %v4187 = vcombine.high %v4185, %v4185
        %v4189 = vunpack.c.l.s4 1966171168
        %v4190 = vunpack.c.0.s8 %v4189
        %v4191 = vlaneseq
        %v4192 = vshrl.u32 %v4191, 7
        %v4193 = vsub.s32 %v4190, %v4192
        %v4194 = vrot.slane %v4178, %v4193
        %v4196 = vunpack.c.l.s4 1966171168
        %v4197 = vunpack.c.0.s8 %v4196
        %v4198 = vlaneseq
        %v4199 = vshrl.u32 %v4198, 7
        %v4200 = vsub.s32 %v4197, %v4199
        %v4201 = vrot.slane %v4185, %v4200
        %v4203 = vunpack.c.l.s4 1966171168
        %v4204 = vunpack.c.0.s8 %v4203
        %v4205 = vlaneseq
        %v4206 = vshrl.u32 %v4205, 7
        %v4207 = vsub.s32 %v4204, %v4206
        %v4208 = vrot.slane %v4186, %v4207
        %v4210 = vunpack.c.l.s4 1966171168
        %v4211 = vunpack.c.0.s8 %v4210
        %v4212 = vlaneseq
        %v4213 = vshrl.u32 %v4212, 7
        %v4214 = vsub.s32 %v4211, %v4213
        %v4215 = vrot.slane %v4187, %v4214
        %v4216 = vcombine.high %v4194, %v4194
        %v4217 = vcombine.high %v4201, %v4201
        %v4218 = vcombine.high %v4208, %v4208
        %v4219 = vcombine.high %v4215, %v4215
        %v4220 = vlaneseq
        %v4221 = vshrl.u32 %v4220, 7
        %v4222 = vsub.s32 0, %v4221
        %v4223 = vrot.slane %v4144, %v4222
        %v4224 = vlaneseq
        %v4225 = vshrl.u32 %v4224, 7
        %v4226 = vsub.s32 1, %v4225
        %v4227 = vrot.slane %v4144, %v4226
        %v4228 = vlaneseq
        %v4229 = vshrl.u32 %v4228, 7
        %v4230 = vsub.s32 0, %v4229
        %v4231 = vrot.slane %v4158, %v4230
        %v4232 = vlaneseq
        %v4233 = vshrl.u32 %v4232, 7
        %v4234 = vsub.s32 1, %v4233
        %v4235 = vrot.slane %v4158, %v4234
        %v4236 = vlaneseq
        %v4237 = vshrl.u32 %v4236, 7
        %v4238 = vsub.s32 0, %v4237
        %v4239 = vrot.slane %v4166, %v4238
        %v4240 = vlaneseq
        %v4241 = vshrl.u32 %v4240, 7
        %v4242 = vsub.s32 1, %v4241
        %v4243 = vrot.slane %v4166, %v4242
        %v4244 = vlaneseq
        %v4245 = vshrl.u32 %v4244, 7
        %v4246 = vsub.s32 0, %v4245
        %v4247 = vrot.slane %v4168, %v4246
        %v4248 = vlaneseq
        %v4249 = vshrl.u32 %v4248, 7
        %v4250 = vsub.s32 1, %v4249
        %v4251 = vrot.slane %v4168, %v4250
        %v4252 = vlaneseq
        %v4253 = vshrl.u32 %v4252, 7
        %v4254 = vsub.s32 0, %v4253
        %v4255 = vrot.slane %v4151, %v4254
        %v4256 = vlaneseq
        %v4257 = vshrl.u32 %v4256, 7
        %v4258 = vsub.s32 1, %v4257
        %v4259 = vrot.slane %v4151, %v4258
        %v4260 = vlaneseq
        %v4261 = vshrl.u32 %v4260, 7
        %v4262 = vsub.s32 0, %v4261
        %v4263 = vrot.slane %v4165, %v4262
        %v4264 = vlaneseq
        %v4265 = vshrl.u32 %v4264, 7
        %v4266 = vsub.s32 1, %v4265
        %v4267 = vrot.slane %v4165, %v4266
        %v4268 = vlaneseq
        %v4269 = vshrl.u32 %v4268, 7
        %v4270 = vsub.s32 0, %v4269
        %v4271 = vrot.slane %v4167, %v4270
        %v4272 = vlaneseq
        %v4273 = vshrl.u32 %v4272, 7
        %v4274 = vsub.s32 1, %v4273
        %v4275 = vrot.slane %v4167, %v4274
        %v4276 = vlaneseq
        %v4277 = vshrl.u32 %v4276, 7
        %v4278 = vsub.s32 0, %v4277
        %v4279 = vrot.slane %v4169, %v4278
        %v4280 = vlaneseq
        %v4281 = vshrl.u32 %v4280, 7
        %v4282 = vsub.s32 1, %v4281
        %v4283 = vrot.slane %v4169, %v4282
        %v4284 = vlaneseq
        %v4285 = vshrl.u32 %v4284, 7
        %v4286 = vsub.s32 0, %v4285
        %v4287 = vrot.slane %v4194, %v4286
        %v4288 = vlaneseq
        %v4289 = vshrl.u32 %v4288, 7
        %v4290 = vsub.s32 1, %v4289
        %v4291 = vrot.slane %v4194, %v4290
        %v4292 = vlaneseq
        %v4293 = vshrl.u32 %v4292, 7
        %v4294 = vsub.s32 0, %v4293
        %v4295 = vrot.slane %v4208, %v4294
        %v4296 = vlaneseq
        %v4297 = vshrl.u32 %v4296, 7
        %v4298 = vsub.s32 1, %v4297
        %v4299 = vrot.slane %v4208, %v4298
        %v4300 = vlaneseq
        %v4301 = vshrl.u32 %v4300, 7
        %v4302 = vsub.s32 0, %v4301
        %v4303 = vrot.slane %v4216, %v4302
        %v4304 = vlaneseq
        %v4305 = vshrl.u32 %v4304, 7
        %v4306 = vsub.s32 1, %v4305
        %v4307 = vrot.slane %v4216, %v4306
        %v4308 = vlaneseq
        %v4309 = vshrl.u32 %v4308, 7
        %v4310 = vsub.s32 0, %v4309
        %v4311 = vrot.slane %v4218, %v4310
        %v4312 = vlaneseq
        %v4313 = vshrl.u32 %v4312, 7
        %v4314 = vsub.s32 1, %v4313
        %v4315 = vrot.slane %v4218, %v4314
        %v4316 = vlaneseq
        %v4317 = vshrl.u32 %v4316, 7
        %v4318 = vsub.s32 0, %v4317
        %v4319 = vrot.slane %v4201, %v4318
        %v4320 = vlaneseq
        %v4321 = vshrl.u32 %v4320, 7
        %v4322 = vsub.s32 1, %v4321
        %v4323 = vrot.slane %v4201, %v4322
        %v4324 = vlaneseq
        %v4325 = vshrl.u32 %v4324, 7
        %v4326 = vsub.s32 0, %v4325
        %v4327 = vrot.slane %v4215, %v4326
        %v4328 = vlaneseq
        %v4329 = vshrl.u32 %v4328, 7
        %v4330 = vsub.s32 1, %v4329
        %v4331 = vrot.slane %v4215, %v4330
        %v4332 = vlaneseq
        %v4333 = vshrl.u32 %v4332, 7
        %v4334 = vsub.s32 0, %v4333
        %v4335 = vrot.slane %v4217, %v4334
        %v4336 = vlaneseq
        %v4337 = vshrl.u32 %v4336, 7
        %v4338 = vsub.s32 1, %v4337
        %v4339 = vrot.slane %v4217, %v4338
        %v4340 = vlaneseq
        %v4341 = vshrl.u32 %v4340, 7
        %v4342 = vsub.s32 0, %v4341
        %v4343 = vrot.slane %v4219, %v4342
        %v4344 = vlaneseq
        %v4345 = vshrl.u32 %v4344, 7
        %v4346 = vsub.s32 1, %v4345
        %v4347 = vrot.slane %v4219, %v4346
        %v4348 = vshra.s32 %v4223, %v639
        %v4349 = vshra.s32 %v4227, %v639
        %v4350 = vshra.s32 %v4231, %v639
        %v4351 = vshra.s32 %v4235, %v639
        %v4352 = vshra.s32 %v4239, %v639
        %v4353 = vshra.s32 %v4243, %v639
        %v4354 = vshra.s32 %v4247, %v639
        %v4355 = vshra.s32 %v4251, %v639
        %v4356 = vshra.s32 %v4255, %v639
        %v4357 = vshra.s32 %v4259, %v639
        %v4358 = vshra.s32 %v4263, %v639
        %v4359 = vshra.s32 %v4267, %v639
        %v4360 = vshra.s32 %v4271, %v639
        %v4361 = vshra.s32 %v4275, %v639
        %v4362 = vshra.s32 %v4279, %v639
        %v4363 = vshra.s32 %v4283, %v639
        %v4364 = vshra.s32 %v4287, %v639
        %v4365 = vshra.s32 %v4291, %v639
        %v4366 = vshra.s32 %v4295, %v639
        %v4367 = vshra.s32 %v4299, %v639
        %v4368 = vshra.s32 %v4303, %v639
        %v4369 = vshra.s32 %v4307, %v639
        %v4370 = vshra.s32 %v4311, %v639
        %v4371 = vshra.s32 %v4315, %v639
        %v4372 = vshra.s32 %v4319, %v639
        %v4373 = vshra.s32 %v4323, %v639
        %v4374 = vshra.s32 %v4327, %v639
        %v4375 = vshra.s32 %v4331, %v639
        %v4376 = vshra.s32 %v4335, %v639
        %v4377 = vshra.s32 %v4339, %v639
        %v4378 = vshra.s32 %v4343, %v639
        %v4379 = vshra.s32 %v4347, %v639
        %v4380 = vand.u32 %v4348, 15
        %v4381 = vand.u32 %v4349, 15
        %v4382 = vand.u32 %v4350, 15
        %v4383 = vand.u32 %v4351, 15
        %v4384 = vand.u32 %v4352, 15
        %v4385 = vand.u32 %v4353, 15
        %v4386 = vand.u32 %v4354, 15
        %v4387 = vand.u32 %v4355, 15
        %v4388 = vand.u32 %v4356, 15
        %v4389 = vand.u32 %v4357, 15
        %v4390 = vand.u32 %v4358, 15
        %v4391 = vand.u32 %v4359, 15
        %v4392 = vand.u32 %v4360, 15
        %v4393 = vand.u32 %v4361, 15
        %v4394 = vand.u32 %v4362, 15
        %v4395 = vand.u32 %v4363, 15
        %v4396 = vand.u32 %v4364, 15
        %v4397 = vand.u32 %v4365, 15
        %v4398 = vand.u32 %v4366, 15
        %v4399 = vand.u32 %v4367, 15
        %v4400 = vand.u32 %v4368, 15
        %v4401 = vand.u32 %v4369, 15
        %v4402 = vand.u32 %v4370, 15
        %v4403 = vand.u32 %v4371, 15
        %v4404 = vand.u32 %v4372, 15
        %v4405 = vand.u32 %v4373, 15
        %v4406 = vand.u32 %v4374, 15
        %v4407 = vand.u32 %v4375, 15
        %v4408 = vand.u32 %v4376, 15
        %v4409 = vand.u32 %v4377, 15
        %v4410 = vand.u32 %v4378, 15
        %v4411 = vand.u32 %v4379, 15
        %v4412 = vcvt.s32.f32 %v4380
        %v4413 = vcvt.s32.f32 %v4381
        %v4414 = vcvt.s32.f32 %v4382
        %v4415 = vcvt.s32.f32 %v4383
        %v4416 = vcvt.s32.f32 %v4384
        %v4417 = vcvt.s32.f32 %v4385
        %v4418 = vcvt.s32.f32 %v4386
        %v4419 = vcvt.s32.f32 %v4387
        %v4420 = vcvt.s32.f32 %v4388
        %v4421 = vcvt.s32.f32 %v4389
        %v4422 = vcvt.s32.f32 %v4390
        %v4423 = vcvt.s32.f32 %v4391
        %v4424 = vcvt.s32.f32 %v4392
        %v4425 = vcvt.s32.f32 %v4393
        %v4426 = vcvt.s32.f32 %v4394
        %v4427 = vcvt.s32.f32 %v4395
        %v4428 = vcvt.s32.f32 %v4396
        %v4429 = vcvt.s32.f32 %v4397
        %v4430 = vcvt.s32.f32 %v4398
        %v4431 = vcvt.s32.f32 %v4399
        %v4432 = vcvt.s32.f32 %v4400
        %v4433 = vcvt.s32.f32 %v4401
        %v4434 = vcvt.s32.f32 %v4402
        %v4435 = vcvt.s32.f32 %v4403
        %v4436 = vcvt.s32.f32 %v4404
        %v4437 = vcvt.s32.f32 %v4405
        %v4438 = vcvt.s32.f32 %v4406
        %v4439 = vcvt.s32.f32 %v4407
        %v4440 = vcvt.s32.f32 %v4408
        %v4441 = vcvt.s32.f32 %v4409
        %v4442 = vcvt.s32.f32 %v4410
        %v4443 = vcvt.s32.f32 %v4411
        %v4444 = vpack.c.bf16 %v4414, %v4412
        %v4445 = vpack.c.bf16 %v4415, %v4413
        %v4446 = vpack.c.bf16 %v4418, %v4416
        %v4447 = vpack.c.bf16 %v4419, %v4417
        %v4448 = vpack.c.bf16 %v4422, %v4420
        %v4449 = vpack.c.bf16 %v4423, %v4421
        %v4450 = vpack.c.bf16 %v4426, %v4424
        %v4451 = vpack.c.bf16 %v4427, %v4425
        %v4452 = vpack.c.bf16 %v4430, %v4428
        %v4453 = vpack.c.bf16 %v4431, %v4429
        %v4454 = vpack.c.bf16 %v4434, %v4432
        %v4455 = vpack.c.bf16 %v4435, %v4433
        %v4456 = vpack.c.bf16 %v4438, %v4436
        %v4457 = vpack.c.bf16 %v4439, %v4437
        %v4458 = vpack.c.bf16 %v4442, %v4440
        %v4459 = vpack.c.bf16 %v4443, %v4441
        %v4462 = vunpack.c.l.b16 %v615
        %v4463 = vunpack.c.l.b16 %v618
        %v4464 = vpack.c.b16 %v4463, %v4462
        %4466 = vmatprep.subr.bf16.mxu0 %v4459
        %4467 = vmatpush1.bf16.msra.mxu0 %v4458
        %4468 = vmatprep.subr.bf16.mxu0 %v4457
        %4469 = vmatpush1.bf16.msra.mxu0 %v4456
        %4470 = vmatprep.subr.bf16.mxu0 %v4455
        %4471 = vmatpush1.bf16.msra.mxu0 %v4454
        %4472 = vmatprep.subr.bf16.mxu0 %v4453
        %4473 = vmatpush1.bf16.msra.mxu0 %v4452
        %4474 = vmatprep.subr.bf16.mxu0 %v4451
        %4475 = vmatpush1.bf16.msra.mxu0 %v4450
        %4476 = vmatprep.subr.bf16.mxu0 %v4449
        %4477 = vmatpush1.bf16.msra.mxu0 %v4448
        %4478 = vmatprep.subr.bf16.mxu0 %v4447
        %4479 = vmatpush1.bf16.msra.mxu0 %v4446
        %4480 = vmatprep.subr.bf16.mxu0 %v4445
        %4481 = vmatpush1.bf16.msra.mxu0 %v4444
        %4482 = vmatprep.subr.bf16.mxu0 0
        %4483 = vmatpush2.bf16.msra.mxu0 0
        %4484 = vmatprep.subr.bf16.mxu0 0
        %4485 = vmatpush2.bf16.msra.mxu0 0
        %4486 = vmatprep.subr.bf16.mxu0 0
        %4487 = vmatpush2.bf16.msra.mxu0 0
        %4488 = vmatprep.subr.bf16.mxu0 0
        %4489 = vmatpush2.bf16.msra.mxu0 0
        %4490 = vmatprep.subr.bf16.mxu0 0
        %4491 = vmatpush2.bf16.msra.mxu0 0
        %4492 = vmatprep.subr.bf16.mxu0 0
        %4493 = vmatpush2.bf16.msra.mxu0 0
        %4494 = vmatprep.subr.bf16.mxu0 0
        %4495 = vmatpush2.bf16.msra.mxu0 0
        %4496 = vmatprep.subr.bf16.mxu0 0
        %4497 = vmatpush2.bf16.msra.mxu0 0
        %4498 = vmatprep.mubr.bf16.mxu0 0
        %4499 = vmatmul.mubr.bf16.gmra.mxu0 %v4464
        %v4500 = vpop.f32.mrf.mxu0
        %v4501 = vadd.f32 0.0, %v4500
        %v4502 = vpop.f32.mrf.mxu0
        %v4503 = vadd.f32 0.0, %v4502
        %v4504 = vpop.f32.mrf.mxu0
        %v4505 = vadd.f32 0.0, %v4504
        %v4506 = vpop.f32.mrf.mxu0
        %v4507 = vadd.f32 0.0, %v4506
        %4508 = vdwg.mxu0
        %s4509 = scalar_lea.vmem %s487, 8 [#allocation9]
        %v4510 = vld [vmem:[%s4509] sm:$0x3]
        %v4512 = vlaneseq
        %v4513 = vshrl.u32 %v4512, 7
        %v4514 = vsub.s32 0, %v4513
        %v4515 = vrot.slane %v4510, %v4514
        %v4516 = vlaneseq
        %v4517 = vshrl.u32 %v4516, 7
        %v4518 = vsub.s32 1, %v4517
        %v4519 = vrot.slane %v4510, %v4518
        %v4522 = vmul.f32 %v4501, %v4515
        %v4523 = vmul.f32 %v4503, %v4519
        %v4524 = vmul.f32 %v4505, %v4515
        %v4525 = vmul.f32 %v4507, %v4519
        %s4526 = scalar_lea.vmem %s496, 8 [#allocation10]
        %v4527 = vld [vmem:[%s4526] sm:$0x3]
        %v4529 = vlaneseq
        %v4530 = vshrl.u32 %v4529, 7
        %v4531 = vsub.s32 0, %v4530
        %v4532 = vrot.slane %v4527, %v4531
        %v4533 = vlaneseq
        %v4534 = vshrl.u32 %v4533, 7
        %v4535 = vsub.s32 1, %v4534
        %v4536 = vrot.slane %v4527, %v4535
        %v4539 = vmul.f32 %v4113, %v4532
        %v4540 = vmul.f32 %v4113, %v4536
        %v4541 = vmul.f32 %v4115, %v4532
        %v4542 = vmul.f32 %v4115, %v4536
        %v4543 = vsub.f32 %v4522, %v4539
        %v4544 = vsub.f32 %v4523, %v4540
        %v4545 = vsub.f32 %v4524, %v4541
        %v4546 = vsub.f32 %v4525, %v4542
        %v4547 = vadd.f32 %v3677, %v4543
        %v4548 = vadd.f32 %v3678, %v4544
        %v4549 = vadd.f32 %v3679, %v4545
        %v4550 = vadd.f32 %v3680, %v4546
        %v4551 = vld [vmem:[%s505 + $0x80] sm:$0xff]
        %v4552 = vld [vmem:[%s505 + $0x88] sm:$0xff]
        %v4553 = vld [vmem:[%s505 + $0x90] sm:$0xff]
        %v4554 = vld [vmem:[%s505 + $0x98] sm:$0xff]
        %v4555 = vcombine.low %v4551, %v4552
        %v4556 = vcombine.high %v4551, %v4552
        %v4558 = vunpack.c.l.s4 1966171168
        %v4559 = vunpack.c.0.s8 %v4558
        %v4560 = vlaneseq
        %v4561 = vshrl.u32 %v4560, 7
        %v4562 = vsub.s32 %v4559, %v4561
        %v4563 = vrot.slane %v4555, %v4562
        %v4565 = vunpack.c.l.s4 1966171168
        %v4566 = vunpack.c.0.s8 %v4565
        %v4567 = vlaneseq
        %v4568 = vshrl.u32 %v4567, 7
        %v4569 = vsub.s32 %v4566, %v4568
        %v4570 = vrot.slane %v4556, %v4569
        %v4571 = vcombine.high %v4563, %v4563
        %v4572 = vcombine.high %v4570, %v4570
        %v4574 = vunpack.c.l.s4 1966171168
        %v4575 = vunpack.c.0.s8 %v4574
        %v4576 = vlaneseq
        %v4577 = vshrl.u32 %v4576, 7
        %v4578 = vsub.s32 %v4575, %v4577
        %v4579 = vrot.slane %v4563, %v4578
        %v4581 = vunpack.c.l.s4 1966171168
        %v4582 = vunpack.c.0.s8 %v4581
        %v4583 = vlaneseq
        %v4584 = vshrl.u32 %v4583, 7
        %v4585 = vsub.s32 %v4582, %v4584
        %v4586 = vrot.slane %v4570, %v4585
        %v4588 = vunpack.c.l.s4 1966171168
        %v4589 = vunpack.c.0.s8 %v4588
        %v4590 = vlaneseq
        %v4591 = vshrl.u32 %v4590, 7
        %v4592 = vsub.s32 %v4589, %v4591
        %v4593 = vrot.slane %v4571, %v4592
        %v4595 = vunpack.c.l.s4 1966171168
        %v4596 = vunpack.c.0.s8 %v4595
        %v4597 = vlaneseq
        %v4598 = vshrl.u32 %v4597, 7
        %v4599 = vsub.s32 %v4596, %v4598
        %v4600 = vrot.slane %v4572, %v4599
        %v4601 = vcombine.high %v4579, %v4579
        %v4602 = vcombine.high %v4586, %v4586
        %v4603 = vcombine.high %v4593, %v4593
        %v4604 = vcombine.high %v4600, %v4600
        %v4605 = vcombine.low %v4553, %v4554
        %v4606 = vcombine.high %v4553, %v4554
        %v4608 = vunpack.c.l.s4 1966171168
        %v4609 = vunpack.c.0.s8 %v4608
        %v4610 = vlaneseq
        %v4611 = vshrl.u32 %v4610, 7
        %v4612 = vsub.s32 %v4609, %v4611
        %v4613 = vrot.slane %v4605, %v4612
        %v4615 = vunpack.c.l.s4 1966171168
        %v4616 = vunpack.c.0.s8 %v4615
        %v4617 = vlaneseq
        %v4618 = vshrl.u32 %v4617, 7
        %v4619 = vsub.s32 %v4616, %v4618
        %v4620 = vrot.slane %v4606, %v4619
        %v4621 = vcombine.high %v4613, %v4613
        %v4622 = vcombine.high %v4620, %v4620
        %v4624 = vunpack.c.l.s4 1966171168
        %v4625 = vunpack.c.0.s8 %v4624
        %v4626 = vlaneseq
        %v4627 = vshrl.u32 %v4626, 7
        %v4628 = vsub.s32 %v4625, %v4627
        %v4629 = vrot.slane %v4613, %v4628
        %v4631 = vunpack.c.l.s4 1966171168
        %v4632 = vunpack.c.0.s8 %v4631
        %v4633 = vlaneseq
        %v4634 = vshrl.u32 %v4633, 7
        %v4635 = vsub.s32 %v4632, %v4634
        %v4636 = vrot.slane %v4620, %v4635
        %v4638 = vunpack.c.l.s4 1966171168
        %v4639 = vunpack.c.0.s8 %v4638
        %v4640 = vlaneseq
        %v4641 = vshrl.u32 %v4640, 7
        %v4642 = vsub.s32 %v4639, %v4641
        %v4643 = vrot.slane %v4621, %v4642
        %v4645 = vunpack.c.l.s4 1966171168
        %v4646 = vunpack.c.0.s8 %v4645
        %v4647 = vlaneseq
        %v4648 = vshrl.u32 %v4647, 7
        %v4649 = vsub.s32 %v4646, %v4648
        %v4650 = vrot.slane %v4622, %v4649
        %v4651 = vcombine.high %v4629, %v4629
        %v4652 = vcombine.high %v4636, %v4636
        %v4653 = vcombine.high %v4643, %v4643
        %v4654 = vcombine.high %v4650, %v4650
        %v4655 = vlaneseq
        %v4656 = vshrl.u32 %v4655, 7
        %v4657 = vsub.s32 0, %v4656
        %v4658 = vrot.slane %v4579, %v4657
        %v4659 = vlaneseq
        %v4660 = vshrl.u32 %v4659, 7
        %v4661 = vsub.s32 1, %v4660
        %v4662 = vrot.slane %v4579, %v4661
        %v4663 = vlaneseq
        %v4664 = vshrl.u32 %v4663, 7
        %v4665 = vsub.s32 0, %v4664
        %v4666 = vrot.slane %v4593, %v4665
        %v4667 = vlaneseq
        %v4668 = vshrl.u32 %v4667, 7
        %v4669 = vsub.s32 1, %v4668
        %v4670 = vrot.slane %v4593, %v4669
        %v4671 = vlaneseq
        %v4672 = vshrl.u32 %v4671, 7
        %v4673 = vsub.s32 0, %v4672
        %v4674 = vrot.slane %v4601, %v4673
        %v4675 = vlaneseq
        %v4676 = vshrl.u32 %v4675, 7
        %v4677 = vsub.s32 1, %v4676
        %v4678 = vrot.slane %v4601, %v4677
        %v4679 = vlaneseq
        %v4680 = vshrl.u32 %v4679, 7
        %v4681 = vsub.s32 0, %v4680
        %v4682 = vrot.slane %v4603, %v4681
        %v4683 = vlaneseq
        %v4684 = vshrl.u32 %v4683, 7
        %v4685 = vsub.s32 1, %v4684
        %v4686 = vrot.slane %v4603, %v4685
        %v4687 = vlaneseq
        %v4688 = vshrl.u32 %v4687, 7
        %v4689 = vsub.s32 0, %v4688
        %v4690 = vrot.slane %v4586, %v4689
        %v4691 = vlaneseq
        %v4692 = vshrl.u32 %v4691, 7
        %v4693 = vsub.s32 1, %v4692
        %v4694 = vrot.slane %v4586, %v4693
        %v4695 = vlaneseq
        %v4696 = vshrl.u32 %v4695, 7
        %v4697 = vsub.s32 0, %v4696
        %v4698 = vrot.slane %v4600, %v4697
        %v4699 = vlaneseq
        %v4700 = vshrl.u32 %v4699, 7
        %v4701 = vsub.s32 1, %v4700
        %v4702 = vrot.slane %v4600, %v4701
        %v4703 = vlaneseq
        %v4704 = vshrl.u32 %v4703, 7
        %v4705 = vsub.s32 0, %v4704
        %v4706 = vrot.slane %v4602, %v4705
        %v4707 = vlaneseq
        %v4708 = vshrl.u32 %v4707, 7
        %v4709 = vsub.s32 1, %v4708
        %v4710 = vrot.slane %v4602, %v4709
        %v4711 = vlaneseq
        %v4712 = vshrl.u32 %v4711, 7
        %v4713 = vsub.s32 0, %v4712
        %v4714 = vrot.slane %v4604, %v4713
        %v4715 = vlaneseq
        %v4716 = vshrl.u32 %v4715, 7
        %v4717 = vsub.s32 1, %v4716
        %v4718 = vrot.slane %v4604, %v4717
        %v4719 = vlaneseq
        %v4720 = vshrl.u32 %v4719, 7
        %v4721 = vsub.s32 0, %v4720
        %v4722 = vrot.slane %v4629, %v4721
        %v4723 = vlaneseq
        %v4724 = vshrl.u32 %v4723, 7
        %v4725 = vsub.s32 1, %v4724
        %v4726 = vrot.slane %v4629, %v4725
        %v4727 = vlaneseq
        %v4728 = vshrl.u32 %v4727, 7
        %v4729 = vsub.s32 0, %v4728
        %v4730 = vrot.slane %v4643, %v4729
        %v4731 = vlaneseq
        %v4732 = vshrl.u32 %v4731, 7
        %v4733 = vsub.s32 1, %v4732
        %v4734 = vrot.slane %v4643, %v4733
        %v4735 = vlaneseq
        %v4736 = vshrl.u32 %v4735, 7
        %v4737 = vsub.s32 0, %v4736
        %v4738 = vrot.slane %v4651, %v4737
        %v4739 = vlaneseq
        %v4740 = vshrl.u32 %v4739, 7
        %v4741 = vsub.s32 1, %v4740
        %v4742 = vrot.slane %v4651, %v4741
        %v4743 = vlaneseq
        %v4744 = vshrl.u32 %v4743, 7
        %v4745 = vsub.s32 0, %v4744
        %v4746 = vrot.slane %v4653, %v4745
        %v4747 = vlaneseq
        %v4748 = vshrl.u32 %v4747, 7
        %v4749 = vsub.s32 1, %v4748
        %v4750 = vrot.slane %v4653, %v4749
        %v4751 = vlaneseq
        %v4752 = vshrl.u32 %v4751, 7
        %v4753 = vsub.s32 0, %v4752
        %v4754 = vrot.slane %v4636, %v4753
        %v4755 = vlaneseq
        %v4756 = vshrl.u32 %v4755, 7
        %v4757 = vsub.s32 1, %v4756
        %v4758 = vrot.slane %v4636, %v4757
        %v4759 = vlaneseq
        %v4760 = vshrl.u32 %v4759, 7
        %v4761 = vsub.s32 0, %v4760
        %v4762 = vrot.slane %v4650, %v4761
        %v4763 = vlaneseq
        %v4764 = vshrl.u32 %v4763, 7
        %v4765 = vsub.s32 1, %v4764
        %v4766 = vrot.slane %v4650, %v4765
        %v4767 = vlaneseq
        %v4768 = vshrl.u32 %v4767, 7
        %v4769 = vsub.s32 0, %v4768
        %v4770 = vrot.slane %v4652, %v4769
        %v4771 = vlaneseq
        %v4772 = vshrl.u32 %v4771, 7
        %v4773 = vsub.s32 1, %v4772
        %v4774 = vrot.slane %v4652, %v4773
        %v4775 = vlaneseq
        %v4776 = vshrl.u32 %v4775, 7
        %v4777 = vsub.s32 0, %v4776
        %v4778 = vrot.slane %v4654, %v4777
        %v4779 = vlaneseq
        %v4780 = vshrl.u32 %v4779, 7
        %v4781 = vsub.s32 1, %v4780
        %v4782 = vrot.slane %v4654, %v4781
        %v4783 = vshra.s32 %v4658, %v639
        %v4784 = vshra.s32 %v4662, %v639
        %v4785 = vshra.s32 %v4666, %v639
        %v4786 = vshra.s32 %v4670, %v639
        %v4787 = vshra.s32 %v4674, %v639
        %v4788 = vshra.s32 %v4678, %v639
        %v4789 = vshra.s32 %v4682, %v639
        %v4790 = vshra.s32 %v4686, %v639
        %v4791 = vshra.s32 %v4690, %v639
        %v4792 = vshra.s32 %v4694, %v639
        %v4793 = vshra.s32 %v4698, %v639
        %v4794 = vshra.s32 %v4702, %v639
        %v4795 = vshra.s32 %v4706, %v639
        %v4796 = vshra.s32 %v4710, %v639
        %v4797 = vshra.s32 %v4714, %v639
        %v4798 = vshra.s32 %v4718, %v639
        %v4799 = vshra.s32 %v4722, %v639
        %v4800 = vshra.s32 %v4726, %v639
        %v4801 = vshra.s32 %v4730, %v639
        %v4802 = vshra.s32 %v4734, %v639
        %v4803 = vshra.s32 %v4738, %v639
        %v4804 = vshra.s32 %v4742, %v639
        %v4805 = vshra.s32 %v4746, %v639
        %v4806 = vshra.s32 %v4750, %v639
        %v4807 = vshra.s32 %v4754, %v639
        %v4808 = vshra.s32 %v4758, %v639
        %v4809 = vshra.s32 %v4762, %v639
        %v4810 = vshra.s32 %v4766, %v639
        %v4811 = vshra.s32 %v4770, %v639
        %v4812 = vshra.s32 %v4774, %v639
        %v4813 = vshra.s32 %v4778, %v639
        %v4814 = vshra.s32 %v4782, %v639
        %v4815 = vand.u32 %v4783, 15
        %v4816 = vand.u32 %v4784, 15
        %v4817 = vand.u32 %v4785, 15
        %v4818 = vand.u32 %v4786, 15
        %v4819 = vand.u32 %v4787, 15
        %v4820 = vand.u32 %v4788, 15
        %v4821 = vand.u32 %v4789, 15
        %v4822 = vand.u32 %v4790, 15
        %v4823 = vand.u32 %v4791, 15
        %v4824 = vand.u32 %v4792, 15
        %v4825 = vand.u32 %v4793, 15
        %v4826 = vand.u32 %v4794, 15
        %v4827 = vand.u32 %v4795, 15
        %v4828 = vand.u32 %v4796, 15
        %v4829 = vand.u32 %v4797, 15
        %v4830 = vand.u32 %v4798, 15
        %v4831 = vand.u32 %v4799, 15
        %v4832 = vand.u32 %v4800, 15
        %v4833 = vand.u32 %v4801, 15
        %v4834 = vand.u32 %v4802, 15
        %v4835 = vand.u32 %v4803, 15
        %v4836 = vand.u32 %v4804, 15
        %v4837 = vand.u32 %v4805, 15
        %v4838 = vand.u32 %v4806, 15
        %v4839 = vand.u32 %v4807, 15
        %v4840 = vand.u32 %v4808, 15
        %v4841 = vand.u32 %v4809, 15
        %v4842 = vand.u32 %v4810, 15
        %v4843 = vand.u32 %v4811, 15
        %v4844 = vand.u32 %v4812, 15
        %v4845 = vand.u32 %v4813, 15
        %v4846 = vand.u32 %v4814, 15
        %v4847 = vcvt.s32.f32 %v4815
        %v4848 = vcvt.s32.f32 %v4816
        %v4849 = vcvt.s32.f32 %v4817
        %v4850 = vcvt.s32.f32 %v4818
        %v4851 = vcvt.s32.f32 %v4819
        %v4852 = vcvt.s32.f32 %v4820
        %v4853 = vcvt.s32.f32 %v4821
        %v4854 = vcvt.s32.f32 %v4822
        %v4855 = vcvt.s32.f32 %v4823
        %v4856 = vcvt.s32.f32 %v4824
        %v4857 = vcvt.s32.f32 %v4825
        %v4858 = vcvt.s32.f32 %v4826
        %v4859 = vcvt.s32.f32 %v4827
        %v4860 = vcvt.s32.f32 %v4828
        %v4861 = vcvt.s32.f32 %v4829
        %v4862 = vcvt.s32.f32 %v4830
        %v4863 = vcvt.s32.f32 %v4831
        %v4864 = vcvt.s32.f32 %v4832
        %v4865 = vcvt.s32.f32 %v4833
        %v4866 = vcvt.s32.f32 %v4834
        %v4867 = vcvt.s32.f32 %v4835
        %v4868 = vcvt.s32.f32 %v4836
        %v4869 = vcvt.s32.f32 %v4837
        %v4870 = vcvt.s32.f32 %v4838
        %v4871 = vcvt.s32.f32 %v4839
        %v4872 = vcvt.s32.f32 %v4840
        %v4873 = vcvt.s32.f32 %v4841
        %v4874 = vcvt.s32.f32 %v4842
        %v4875 = vcvt.s32.f32 %v4843
        %v4876 = vcvt.s32.f32 %v4844
        %v4877 = vcvt.s32.f32 %v4845
        %v4878 = vcvt.s32.f32 %v4846
        %v4879 = vpack.c.bf16 %v4849, %v4847
        %v4880 = vpack.c.bf16 %v4850, %v4848
        %v4881 = vpack.c.bf16 %v4853, %v4851
        %v4882 = vpack.c.bf16 %v4854, %v4852
        %v4883 = vpack.c.bf16 %v4857, %v4855
        %v4884 = vpack.c.bf16 %v4858, %v4856
        %v4885 = vpack.c.bf16 %v4861, %v4859
        %v4886 = vpack.c.bf16 %v4862, %v4860
        %v4887 = vpack.c.bf16 %v4865, %v4863
        %v4888 = vpack.c.bf16 %v4866, %v4864
        %v4889 = vpack.c.bf16 %v4869, %v4867
        %v4890 = vpack.c.bf16 %v4870, %v4868
        %v4891 = vpack.c.bf16 %v4873, %v4871
        %v4892 = vpack.c.bf16 %v4874, %v4872
        %v4893 = vpack.c.bf16 %v4877, %v4875
        %v4894 = vpack.c.bf16 %v4878, %v4876
        %4895 = vmatprep.subr.bf16.mxu0 %v4894
        %4896 = vmatpush1.bf16.msra.mxu0 %v4893
        %4897 = vmatprep.subr.bf16.mxu0 %v4892
        %4898 = vmatpush1.bf16.msra.mxu0 %v4891
        %4899 = vmatprep.subr.bf16.mxu0 %v4890
        %4900 = vmatpush1.bf16.msra.mxu0 %v4889
        %4901 = vmatprep.subr.bf16.mxu0 %v4888
        %4902 = vmatpush1.bf16.msra.mxu0 %v4887
        %4903 = vmatprep.subr.bf16.mxu0 %v4886
        %4904 = vmatpush1.bf16.msra.mxu0 %v4885
        %4905 = vmatprep.subr.bf16.mxu0 %v4884
        %4906 = vmatpush1.bf16.msra.mxu0 %v4883
        %4907 = vmatprep.subr.bf16.mxu0 %v4882
        %4908 = vmatpush1.bf16.msra.mxu0 %v4881
        %4909 = vmatprep.subr.bf16.mxu0 %v4880
        %4910 = vmatpush1.bf16.msra.mxu0 %v4879
        %4911 = vmatprep.subr.bf16.mxu0 0
        %4912 = vmatpush2.bf16.msra.mxu0 0
        %4913 = vmatprep.subr.bf16.mxu0 0
        %4914 = vmatpush2.bf16.msra.mxu0 0
        %4915 = vmatprep.subr.bf16.mxu0 0
        %4916 = vmatpush2.bf16.msra.mxu0 0
        %4917 = vmatprep.subr.bf16.mxu0 0
        %4918 = vmatpush2.bf16.msra.mxu0 0
        %4919 = vmatprep.subr.bf16.mxu0 0
        %4920 = vmatpush2.bf16.msra.mxu0 0
        %4921 = vmatprep.subr.bf16.mxu0 0
        %4922 = vmatpush2.bf16.msra.mxu0 0
        %4923 = vmatprep.subr.bf16.mxu0 0
        %4924 = vmatpush2.bf16.msra.mxu0 0
        %4925 = vmatprep.subr.bf16.mxu0 0
        %4926 = vmatpush2.bf16.msra.mxu0 0
        %4927 = vmatprep.mubr.bf16.mxu0 0
        %4928 = vmatmul.mubr.bf16.gmra.mxu0 %v4464
        %v4929 = vpop.f32.mrf.mxu0
        %v4930 = vadd.f32 0.0, %v4929
        %v4931 = vpop.f32.mrf.mxu0
        %v4932 = vadd.f32 0.0, %v4931
        %v4933 = vpop.f32.mrf.mxu0
        %v4934 = vadd.f32 0.0, %v4933
        %v4935 = vpop.f32.mrf.mxu0
        %v4936 = vadd.f32 0.0, %v4935
        %4937 = vdwg.mxu0
        %s4938 = scalar_lea.vmem %s514, 8 [#allocation13]
        %v4939 = vld [vmem:[%s4938] sm:$0x3]
        %v4941 = vlaneseq
        %v4942 = vshrl.u32 %v4941, 7
        %v4943 = vsub.s32 0, %v4942
        %v4944 = vrot.slane %v4939, %v4943
        %v4945 = vlaneseq
        %v4946 = vshrl.u32 %v4945, 7
        %v4947 = vsub.s32 1, %v4946
        %v4948 = vrot.slane %v4939, %v4947
        %v4951 = vmul.f32 %v4930, %v4944
        %v4952 = vmul.f32 %v4932, %v4948
        %v4953 = vmul.f32 %v4934, %v4944
        %v4954 = vmul.f32 %v4936, %v4948
        %s4955 = scalar_lea.vmem %s523, 8 [#allocation15]
        %v4956 = vld [vmem:[%s4955] sm:$0x3]
        %v4958 = vlaneseq
        %v4959 = vshrl.u32 %v4958, 7
        %v4960 = vsub.s32 0, %v4959
        %v4961 = vrot.slane %v4956, %v4960
        %v4962 = vlaneseq
        %v4963 = vshrl.u32 %v4962, 7
        %v4964 = vsub.s32 1, %v4963
        %v4965 = vrot.slane %v4956, %v4964
        %v4968 = vmul.f32 %v4113, %v4961
        %v4969 = vmul.f32 %v4113, %v4965
        %v4970 = vmul.f32 %v4115, %v4961
        %v4971 = vmul.f32 %v4115, %v4965
        %v4972 = vsub.f32 %v4951, %v4968
        %v4973 = vsub.f32 %v4952, %v4969
        %v4974 = vsub.f32 %v4953, %v4970
        %v4975 = vsub.f32 %v4954, %v4971
        %v4976 = vadd.f32 %v4106, %v4972
        %v4977 = vadd.f32 %v4107, %v4973
        %v4978 = vadd.f32 %v4108, %v4974
        %v4979 = vadd.f32 %v4109, %v4975
        %v4980 = vrot.slane %v615, 4
        %v4981 = vrot.slane %v618, 4
        %v4984 = vunpack.c.l.bf16 %v4980
        %v4985 = vunpack.c.l.bf16 %v4981
        %4986 = vadd.xlane.f32.xlu0 %v4984
        %v4987 = vpop.xlane.xlu0 %4986
        %4988 = vadd.xlane.f32.xlu0 %v4985
        %v4989 = vpop.xlane.xlu0 %4988
        %v4990 = vld [vmem:[%s478 + $0xa0] sm:$0xff]
        %v4991 = vld [vmem:[%s478 + $0xa8] sm:$0xff]
        %v4992 = vld [vmem:[%s478 + $0xb0] sm:$0xff]
        %v4993 = vld [vmem:[%s478 + $0xb8] sm:$0xff]
        %v4994 = vcombine.low %v4990, %v4991
        %v4995 = vcombine.high %v4990, %v4991
        %v4997 = vunpack.c.l.s4 1966171168
        %v4998 = vunpack.c.0.s8 %v4997
        %v4999 = vlaneseq
        %v5000 = vshrl.u32 %v4999, 7
        %v5001 = vsub.s32 %v4998, %v5000
        %v5002 = vrot.slane %v4994, %v5001
        %v5004 = vunpack.c.l.s4 1966171168
        %v5005 = vunpack.c.0.s8 %v5004
        %v5006 = vlaneseq
        %v5007 = vshrl.u32 %v5006, 7
        %v5008 = vsub.s32 %v5005, %v5007
        %v5009 = vrot.slane %v4995, %v5008
        %v5010 = vcombine.high %v5002, %v5002
        %v5011 = vcombine.high %v5009, %v5009
        %v5013 = vunpack.c.l.s4 1966171168
        %v5014 = vunpack.c.0.s8 %v5013
        %v5015 = vlaneseq
        %v5016 = vshrl.u32 %v5015, 7
        %v5017 = vsub.s32 %v5014, %v5016
        %v5018 = vrot.slane %v5002, %v5017
        %v5020 = vunpack.c.l.s4 1966171168
        %v5021 = vunpack.c.0.s8 %v5020
        %v5022 = vlaneseq
        %v5023 = vshrl.u32 %v5022, 7
        %v5024 = vsub.s32 %v5021, %v5023
        %v5025 = vrot.slane %v5009, %v5024
        %v5027 = vunpack.c.l.s4 1966171168
        %v5028 = vunpack.c.0.s8 %v5027
        %v5029 = vlaneseq
        %v5030 = vshrl.u32 %v5029, 7
        %v5031 = vsub.s32 %v5028, %v5030
        %v5032 = vrot.slane %v5010, %v5031
        %v5034 = vunpack.c.l.s4 1966171168
        %v5035 = vunpack.c.0.s8 %v5034
        %v5036 = vlaneseq
        %v5037 = vshrl.u32 %v5036, 7
        %v5038 = vsub.s32 %v5035, %v5037
        %v5039 = vrot.slane %v5011, %v5038
        %v5040 = vcombine.high %v5018, %v5018
        %v5041 = vcombine.high %v5025, %v5025
        %v5042 = vcombine.high %v5032, %v5032
        %v5043 = vcombine.high %v5039, %v5039
        %v5044 = vcombine.low %v4992, %v4993
        %v5045 = vcombine.high %v4992, %v4993
        %v5047 = vunpack.c.l.s4 1966171168
        %v5048 = vunpack.c.0.s8 %v5047
        %v5049 = vlaneseq
        %v5050 = vshrl.u32 %v5049, 7
        %v5051 = vsub.s32 %v5048, %v5050
        %v5052 = vrot.slane %v5044, %v5051
        %v5054 = vunpack.c.l.s4 1966171168
        %v5055 = vunpack.c.0.s8 %v5054
        %v5056 = vlaneseq
        %v5057 = vshrl.u32 %v5056, 7
        %v5058 = vsub.s32 %v5055, %v5057
        %v5059 = vrot.slane %v5045, %v5058
        %v5060 = vcombine.high %v5052, %v5052
        %v5061 = vcombine.high %v5059, %v5059
        %v5063 = vunpack.c.l.s4 1966171168
        %v5064 = vunpack.c.0.s8 %v5063
        %v5065 = vlaneseq
        %v5066 = vshrl.u32 %v5065, 7
        %v5067 = vsub.s32 %v5064, %v5066
        %v5068 = vrot.slane %v5052, %v5067
        %v5070 = vunpack.c.l.s4 1966171168
        %v5071 = vunpack.c.0.s8 %v5070
        %v5072 = vlaneseq
        %v5073 = vshrl.u32 %v5072, 7
        %v5074 = vsub.s32 %v5071, %v5073
        %v5075 = vrot.slane %v5059, %v5074
        %v5077 = vunpack.c.l.s4 1966171168
        %v5078 = vunpack.c.0.s8 %v5077
        %v5079 = vlaneseq
        %v5080 = vshrl.u32 %v5079, 7
        %v5081 = vsub.s32 %v5078, %v5080
        %v5082 = vrot.slane %v5060, %v5081
        %v5084 = vunpack.c.l.s4 1966171168
        %v5085 = vunpack.c.0.s8 %v5084
        %v5086 = vlaneseq
        %v5087 = vshrl.u32 %v5086, 7
        %v5088 = vsub.s32 %v5085, %v5087
        %v5089 = vrot.slane %v5061, %v5088
        %v5090 = vcombine.high %v5068, %v5068
        %v5091 = vcombine.high %v5075, %v5075
        %v5092 = vcombine.high %v5082, %v5082
        %v5093 = vcombine.high %v5089, %v5089
        %v5094 = vlaneseq
        %v5095 = vshrl.u32 %v5094, 7
        %v5096 = vsub.s32 0, %v5095
        %v5097 = vrot.slane %v5018, %v5096
        %v5098 = vlaneseq
        %v5099 = vshrl.u32 %v5098, 7
        %v5100 = vsub.s32 1, %v5099
        %v5101 = vrot.slane %v5018, %v5100
        %v5102 = vlaneseq
        %v5103 = vshrl.u32 %v5102, 7
        %v5104 = vsub.s32 0, %v5103
        %v5105 = vrot.slane %v5032, %v5104
        %v5106 = vlaneseq
        %v5107 = vshrl.u32 %v5106, 7
        %v5108 = vsub.s32 1, %v5107
        %v5109 = vrot.slane %v5032, %v5108
        %v5110 = vlaneseq
        %v5111 = vshrl.u32 %v5110, 7
        %v5112 = vsub.s32 0, %v5111
        %v5113 = vrot.slane %v5040, %v5112
        %v5114 = vlaneseq
        %v5115 = vshrl.u32 %v5114, 7
        %v5116 = vsub.s32 1, %v5115
        %v5117 = vrot.slane %v5040, %v5116
        %v5118 = vlaneseq
        %v5119 = vshrl.u32 %v5118, 7
        %v5120 = vsub.s32 0, %v5119
        %v5121 = vrot.slane %v5042, %v5120
        %v5122 = vlaneseq
        %v5123 = vshrl.u32 %v5122, 7
        %v5124 = vsub.s32 1, %v5123
        %v5125 = vrot.slane %v5042, %v5124
        %v5126 = vlaneseq
        %v5127 = vshrl.u32 %v5126, 7
        %v5128 = vsub.s32 0, %v5127
        %v5129 = vrot.slane %v5025, %v5128
        %v5130 = vlaneseq
        %v5131 = vshrl.u32 %v5130, 7
        %v5132 = vsub.s32 1, %v5131
        %v5133 = vrot.slane %v5025, %v5132
        %v5134 = vlaneseq
        %v5135 = vshrl.u32 %v5134, 7
        %v5136 = vsub.s32 0, %v5135
        %v5137 = vrot.slane %v5039, %v5136
        %v5138 = vlaneseq
        %v5139 = vshrl.u32 %v5138, 7
        %v5140 = vsub.s32 1, %v5139
        %v5141 = vrot.slane %v5039, %v5140
        %v5142 = vlaneseq
        %v5143 = vshrl.u32 %v5142, 7
        %v5144 = vsub.s32 0, %v5143
        %v5145 = vrot.slane %v5041, %v5144
        %v5146 = vlaneseq
        %v5147 = vshrl.u32 %v5146, 7
        %v5148 = vsub.s32 1, %v5147
        %v5149 = vrot.slane %v5041, %v5148
        %v5150 = vlaneseq
        %v5151 = vshrl.u32 %v5150, 7
        %v5152 = vsub.s32 0, %v5151
        %v5153 = vrot.slane %v5043, %v5152
        %v5154 = vlaneseq
        %v5155 = vshrl.u32 %v5154, 7
        %v5156 = vsub.s32 1, %v5155
        %v5157 = vrot.slane %v5043, %v5156
        %v5158 = vlaneseq
        %v5159 = vshrl.u32 %v5158, 7
        %v5160 = vsub.s32 0, %v5159
        %v5161 = vrot.slane %v5068, %v5160
        %v5162 = vlaneseq
        %v5163 = vshrl.u32 %v5162, 7
        %v5164 = vsub.s32 1, %v5163
        %v5165 = vrot.slane %v5068, %v5164
        %v5166 = vlaneseq
        %v5167 = vshrl.u32 %v5166, 7
        %v5168 = vsub.s32 0, %v5167
        %v5169 = vrot.slane %v5082, %v5168
        %v5170 = vlaneseq
        %v5171 = vshrl.u32 %v5170, 7
        %v5172 = vsub.s32 1, %v5171
        %v5173 = vrot.slane %v5082, %v5172
        %v5174 = vlaneseq
        %v5175 = vshrl.u32 %v5174, 7
        %v5176 = vsub.s32 0, %v5175
        %v5177 = vrot.slane %v5090, %v5176
        %v5178 = vlaneseq
        %v5179 = vshrl.u32 %v5178, 7
        %v5180 = vsub.s32 1, %v5179
        %v5181 = vrot.slane %v5090, %v5180
        %v5182 = vlaneseq
        %v5183 = vshrl.u32 %v5182, 7
        %v5184 = vsub.s32 0, %v5183
        %v5185 = vrot.slane %v5092, %v5184
        %v5186 = vlaneseq
        %v5187 = vshrl.u32 %v5186, 7
        %v5188 = vsub.s32 1, %v5187
        %v5189 = vrot.slane %v5092, %v5188
        %v5190 = vlaneseq
        %v5191 = vshrl.u32 %v5190, 7
        %v5192 = vsub.s32 0, %v5191
        %v5193 = vrot.slane %v5075, %v5192
        %v5194 = vlaneseq
        %v5195 = vshrl.u32 %v5194, 7
        %v5196 = vsub.s32 1, %v5195
        %v5197 = vrot.slane %v5075, %v5196
        %v5198 = vlaneseq
        %v5199 = vshrl.u32 %v5198, 7
        %v5200 = vsub.s32 0, %v5199
        %v5201 = vrot.slane %v5089, %v5200
        %v5202 = vlaneseq
        %v5203 = vshrl.u32 %v5202, 7
        %v5204 = vsub.s32 1, %v5203
        %v5205 = vrot.slane %v5089, %v5204
        %v5206 = vlaneseq
        %v5207 = vshrl.u32 %v5206, 7
        %v5208 = vsub.s32 0, %v5207
        %v5209 = vrot.slane %v5091, %v5208
        %v5210 = vlaneseq
        %v5211 = vshrl.u32 %v5210, 7
        %v5212 = vsub.s32 1, %v5211
        %v5213 = vrot.slane %v5091, %v5212
        %v5214 = vlaneseq
        %v5215 = vshrl.u32 %v5214, 7
        %v5216 = vsub.s32 0, %v5215
        %v5217 = vrot.slane %v5093, %v5216
        %v5218 = vlaneseq
        %v5219 = vshrl.u32 %v5218, 7
        %v5220 = vsub.s32 1, %v5219
        %v5221 = vrot.slane %v5093, %v5220
        %v5222 = vshra.s32 %v5097, %v639
        %v5223 = vshra.s32 %v5101, %v639
        %v5224 = vshra.s32 %v5105, %v639
        %v5225 = vshra.s32 %v5109, %v639
        %v5226 = vshra.s32 %v5113, %v639
        %v5227 = vshra.s32 %v5117, %v639
        %v5228 = vshra.s32 %v5121, %v639
        %v5229 = vshra.s32 %v5125, %v639
        %v5230 = vshra.s32 %v5129, %v639
        %v5231 = vshra.s32 %v5133, %v639
        %v5232 = vshra.s32 %v5137, %v639
        %v5233 = vshra.s32 %v5141, %v639
        %v5234 = vshra.s32 %v5145, %v639
        %v5235 = vshra.s32 %v5149, %v639
        %v5236 = vshra.s32 %v5153, %v639
        %v5237 = vshra.s32 %v5157, %v639
        %v5238 = vshra.s32 %v5161, %v639
        %v5239 = vshra.s32 %v5165, %v639
        %v5240 = vshra.s32 %v5169, %v639
        %v5241 = vshra.s32 %v5173, %v639
        %v5242 = vshra.s32 %v5177, %v639
        %v5243 = vshra.s32 %v5181, %v639
        %v5244 = vshra.s32 %v5185, %v639
        %v5245 = vshra.s32 %v5189, %v639
        %v5246 = vshra.s32 %v5193, %v639
        %v5247 = vshra.s32 %v5197, %v639
        %v5248 = vshra.s32 %v5201, %v639
        %v5249 = vshra.s32 %v5205, %v639
        %v5250 = vshra.s32 %v5209, %v639
        %v5251 = vshra.s32 %v5213, %v639
        %v5252 = vshra.s32 %v5217, %v639
        %v5253 = vshra.s32 %v5221, %v639
        %v5254 = vand.u32 %v5222, 15
        %v5255 = vand.u32 %v5223, 15
        %v5256 = vand.u32 %v5224, 15
        %v5257 = vand.u32 %v5225, 15
        %v5258 = vand.u32 %v5226, 15
        %v5259 = vand.u32 %v5227, 15
        %v5260 = vand.u32 %v5228, 15
        %v5261 = vand.u32 %v5229, 15
        %v5262 = vand.u32 %v5230, 15
        %v5263 = vand.u32 %v5231, 15
        %v5264 = vand.u32 %v5232, 15
        %v5265 = vand.u32 %v5233, 15
        %v5266 = vand.u32 %v5234, 15
        %v5267 = vand.u32 %v5235, 15
        %v5268 = vand.u32 %v5236, 15
        %v5269 = vand.u32 %v5237, 15
        %v5270 = vand.u32 %v5238, 15
        %v5271 = vand.u32 %v5239, 15
        %v5272 = vand.u32 %v5240, 15
        %v5273 = vand.u32 %v5241, 15
        %v5274 = vand.u32 %v5242, 15
        %v5275 = vand.u32 %v5243, 15
        %v5276 = vand.u32 %v5244, 15
        %v5277 = vand.u32 %v5245, 15
        %v5278 = vand.u32 %v5246, 15
        %v5279 = vand.u32 %v5247, 15
        %v5280 = vand.u32 %v5248, 15
        %v5281 = vand.u32 %v5249, 15
        %v5282 = vand.u32 %v5250, 15
        %v5283 = vand.u32 %v5251, 15
        %v5284 = vand.u32 %v5252, 15
        %v5285 = vand.u32 %v5253, 15
        %v5286 = vcvt.s32.f32 %v5254
        %v5287 = vcvt.s32.f32 %v5255
        %v5288 = vcvt.s32.f32 %v5256
        %v5289 = vcvt.s32.f32 %v5257
        %v5290 = vcvt.s32.f32 %v5258
        %v5291 = vcvt.s32.f32 %v5259
        %v5292 = vcvt.s32.f32 %v5260
        %v5293 = vcvt.s32.f32 %v5261
        %v5294 = vcvt.s32.f32 %v5262
        %v5295 = vcvt.s32.f32 %v5263
        %v5296 = vcvt.s32.f32 %v5264
        %v5297 = vcvt.s32.f32 %v5265
        %v5298 = vcvt.s32.f32 %v5266
        %v5299 = vcvt.s32.f32 %v5267
        %v5300 = vcvt.s32.f32 %v5268
        %v5301 = vcvt.s32.f32 %v5269
        %v5302 = vcvt.s32.f32 %v5270
        %v5303 = vcvt.s32.f32 %v5271
        %v5304 = vcvt.s32.f32 %v5272
        %v5305 = vcvt.s32.f32 %v5273
        %v5306 = vcvt.s32.f32 %v5274
        %v5307 = vcvt.s32.f32 %v5275
        %v5308 = vcvt.s32.f32 %v5276
        %v5309 = vcvt.s32.f32 %v5277
        %v5310 = vcvt.s32.f32 %v5278
        %v5311 = vcvt.s32.f32 %v5279
        %v5312 = vcvt.s32.f32 %v5280
        %v5313 = vcvt.s32.f32 %v5281
        %v5314 = vcvt.s32.f32 %v5282
        %v5315 = vcvt.s32.f32 %v5283
        %v5316 = vcvt.s32.f32 %v5284
        %v5317 = vcvt.s32.f32 %v5285
        %v5318 = vpack.c.bf16 %v5288, %v5286
        %v5319 = vpack.c.bf16 %v5289, %v5287
        %v5320 = vpack.c.bf16 %v5292, %v5290
        %v5321 = vpack.c.bf16 %v5293, %v5291
        %v5322 = vpack.c.bf16 %v5296, %v5294
        %v5323 = vpack.c.bf16 %v5297, %v5295
        %v5324 = vpack.c.bf16 %v5300, %v5298
        %v5325 = vpack.c.bf16 %v5301, %v5299
        %v5326 = vpack.c.bf16 %v5304, %v5302
        %v5327 = vpack.c.bf16 %v5305, %v5303
        %v5328 = vpack.c.bf16 %v5308, %v5306
        %v5329 = vpack.c.bf16 %v5309, %v5307
        %v5330 = vpack.c.bf16 %v5312, %v5310
        %v5331 = vpack.c.bf16 %v5313, %v5311
        %v5332 = vpack.c.bf16 %v5316, %v5314
        %v5333 = vpack.c.bf16 %v5317, %v5315
        %v5334 = vunpack.c.h.b16 %v615
        %v5335 = vunpack.c.h.b16 %v618
        %v5336 = vpack.c.b16 %v5335, %v5334
        %5338 = vmatprep.subr.bf16.mxu0 %v5333
        %5339 = vmatpush1.bf16.msra.mxu0 %v5332
        %5340 = vmatprep.subr.bf16.mxu0 %v5331
        %5341 = vmatpush1.bf16.msra.mxu0 %v5330
        %5342 = vmatprep.subr.bf16.mxu0 %v5329
        %5343 = vmatpush1.bf16.msra.mxu0 %v5328
        %5344 = vmatprep.subr.bf16.mxu0 %v5327
        %5345 = vmatpush1.bf16.msra.mxu0 %v5326
        %5346 = vmatprep.subr.bf16.mxu0 %v5325
        %5347 = vmatpush1.bf16.msra.mxu0 %v5324
        %5348 = vmatprep.subr.bf16.mxu0 %v5323
        %5349 = vmatpush1.bf16.msra.mxu0 %v5322
        %5350 = vmatprep.subr.bf16.mxu0 %v5321
        %5351 = vmatpush1.bf16.msra.mxu0 %v5320
        %5352 = vmatprep.subr.bf16.mxu0 %v5319
        %5353 = vmatpush1.bf16.msra.mxu0 %v5318
        %5354 = vmatprep.subr.bf16.mxu0 0
        %5355 = vmatpush2.bf16.msra.mxu0 0
        %5356 = vmatprep.subr.bf16.mxu0 0
        %5357 = vmatpush2.bf16.msra.mxu0 0
        %5358 = vmatprep.subr.bf16.mxu0 0
        %5359 = vmatpush2.bf16.msra.mxu0 0
        %5360 = vmatprep.subr.bf16.mxu0 0
        %5361 = vmatpush2.bf16.msra.mxu0 0
        %5362 = vmatprep.subr.bf16.mxu0 0
        %5363 = vmatpush2.bf16.msra.mxu0 0
        %5364 = vmatprep.subr.bf16.mxu0 0
        %5365 = vmatpush2.bf16.msra.mxu0 0
        %5366 = vmatprep.subr.bf16.mxu0 0
        %5367 = vmatpush2.bf16.msra.mxu0 0
        %5368 = vmatprep.subr.bf16.mxu0 0
        %5369 = vmatpush2.bf16.msra.mxu0 0
        %5370 = vmatprep.mubr.bf16.mxu0 0
        %5371 = vmatmul.mubr.bf16.gmra.mxu0 %v5336
        %v5372 = vpop.f32.mrf.mxu0
        %v5373 = vadd.f32 0.0, %v5372
        %v5374 = vpop.f32.mrf.mxu0
        %v5375 = vadd.f32 0.0, %v5374
        %v5376 = vpop.f32.mrf.mxu0
        %v5377 = vadd.f32 0.0, %v5376
        %v5378 = vpop.f32.mrf.mxu0
        %v5379 = vadd.f32 0.0, %v5378
        %5380 = vdwg.mxu0
        %s5381 = scalar_lea.vmem %s487, 10 [#allocation9]
        %v5382 = vld [vmem:[%s5381] sm:$0x3]
        %v5384 = vlaneseq
        %v5385 = vshrl.u32 %v5384, 7
        %v5386 = vsub.s32 0, %v5385
        %v5387 = vrot.slane %v5382, %v5386
        %v5388 = vlaneseq
        %v5389 = vshrl.u32 %v5388, 7
        %v5390 = vsub.s32 1, %v5389
        %v5391 = vrot.slane %v5382, %v5390
        %v5394 = vmul.f32 %v5373, %v5387
        %v5395 = vmul.f32 %v5375, %v5391
        %v5396 = vmul.f32 %v5377, %v5387
        %v5397 = vmul.f32 %v5379, %v5391
        %s5398 = scalar_lea.vmem %s496, 10 [#allocation10]
        %v5399 = vld [vmem:[%s5398] sm:$0x3]
        %v5401 = vlaneseq
        %v5402 = vshrl.u32 %v5401, 7
        %v5403 = vsub.s32 0, %v5402
        %v5404 = vrot.slane %v5399, %v5403
        %v5405 = vlaneseq
        %v5406 = vshrl.u32 %v5405, 7
        %v5407 = vsub.s32 1, %v5406
        %v5408 = vrot.slane %v5399, %v5407
        %v5411 = vmul.f32 %v4987, %v5404
        %v5412 = vmul.f32 %v4987, %v5408
        %v5413 = vmul.f32 %v4989, %v5404
        %v5414 = vmul.f32 %v4989, %v5408
        %v5415 = vsub.f32 %v5394, %v5411
        %v5416 = vsub.f32 %v5395, %v5412
        %v5417 = vsub.f32 %v5396, %v5413
        %v5418 = vsub.f32 %v5397, %v5414
        %v5419 = vadd.f32 %v4547, %v5415
        %v5420 = vadd.f32 %v4548, %v5416
        %v5421 = vadd.f32 %v4549, %v5417
        %v5422 = vadd.f32 %v4550, %v5418
        %v5423 = vld [vmem:[%s505 + $0xa0] sm:$0xff]
        %v5424 = vld [vmem:[%s505 + $0xa8] sm:$0xff]
        %v5425 = vld [vmem:[%s505 + $0xb0] sm:$0xff]
        %v5426 = vld [vmem:[%s505 + $0xb8] sm:$0xff]
        %v5427 = vcombine.low %v5423, %v5424
        %v5428 = vcombine.high %v5423, %v5424
        %v5430 = vunpack.c.l.s4 1966171168
        %v5431 = vunpack.c.0.s8 %v5430
        %v5432 = vlaneseq
        %v5433 = vshrl.u32 %v5432, 7
        %v5434 = vsub.s32 %v5431, %v5433
        %v5435 = vrot.slane %v5427, %v5434
        %v5437 = vunpack.c.l.s4 1966171168
        %v5438 = vunpack.c.0.s8 %v5437
        %v5439 = vlaneseq
        %v5440 = vshrl.u32 %v5439, 7
        %v5441 = vsub.s32 %v5438, %v5440
        %v5442 = vrot.slane %v5428, %v5441
        %v5443 = vcombine.high %v5435, %v5435
        %v5444 = vcombine.high %v5442, %v5442
        %v5446 = vunpack.c.l.s4 1966171168
        %v5447 = vunpack.c.0.s8 %v5446
        %v5448 = vlaneseq
        %v5449 = vshrl.u32 %v5448, 7
        %v5450 = vsub.s32 %v5447, %v5449
        %v5451 = vrot.slane %v5435, %v5450
        %v5453 = vunpack.c.l.s4 1966171168
        %v5454 = vunpack.c.0.s8 %v5453
        %v5455 = vlaneseq
        %v5456 = vshrl.u32 %v5455, 7
        %v5457 = vsub.s32 %v5454, %v5456
        %v5458 = vrot.slane %v5442, %v5457
        %v5460 = vunpack.c.l.s4 1966171168
        %v5461 = vunpack.c.0.s8 %v5460
        %v5462 = vlaneseq
        %v5463 = vshrl.u32 %v5462, 7
        %v5464 = vsub.s32 %v5461, %v5463
        %v5465 = vrot.slane %v5443, %v5464
        %v5467 = vunpack.c.l.s4 1966171168
        %v5468 = vunpack.c.0.s8 %v5467
        %v5469 = vlaneseq
        %v5470 = vshrl.u32 %v5469, 7
        %v5471 = vsub.s32 %v5468, %v5470
        %v5472 = vrot.slane %v5444, %v5471
        %v5473 = vcombine.high %v5451, %v5451
        %v5474 = vcombine.high %v5458, %v5458
        %v5475 = vcombine.high %v5465, %v5465
        %v5476 = vcombine.high %v5472, %v5472
        %v5477 = vcombine.low %v5425, %v5426
        %v5478 = vcombine.high %v5425, %v5426
        %v5480 = vunpack.c.l.s4 1966171168
        %v5481 = vunpack.c.0.s8 %v5480
        %v5482 = vlaneseq
        %v5483 = vshrl.u32 %v5482, 7
        %v5484 = vsub.s32 %v5481, %v5483
        %v5485 = vrot.slane %v5477, %v5484
        %v5487 = vunpack.c.l.s4 1966171168
        %v5488 = vunpack.c.0.s8 %v5487
        %v5489 = vlaneseq
        %v5490 = vshrl.u32 %v5489, 7
        %v5491 = vsub.s32 %v5488, %v5490
        %v5492 = vrot.slane %v5478, %v5491
        %v5493 = vcombine.high %v5485, %v5485
        %v5494 = vcombine.high %v5492, %v5492
        %v5496 = vunpack.c.l.s4 1966171168
        %v5497 = vunpack.c.0.s8 %v5496
        %v5498 = vlaneseq
        %v5499 = vshrl.u32 %v5498, 7
        %v5500 = vsub.s32 %v5497, %v5499
        %v5501 = vrot.slane %v5485, %v5500
        %v5503 = vunpack.c.l.s4 1966171168
        %v5504 = vunpack.c.0.s8 %v5503
        %v5505 = vlaneseq
        %v5506 = vshrl.u32 %v5505, 7
        %v5507 = vsub.s32 %v5504, %v5506
        %v5508 = vrot.slane %v5492, %v5507
        %v5510 = vunpack.c.l.s4 1966171168
        %v5511 = vunpack.c.0.s8 %v5510
        %v5512 = vlaneseq
        %v5513 = vshrl.u32 %v5512, 7
        %v5514 = vsub.s32 %v5511, %v5513
        %v5515 = vrot.slane %v5493, %v5514
        %v5517 = vunpack.c.l.s4 1966171168
        %v5518 = vunpack.c.0.s8 %v5517
        %v5519 = vlaneseq
        %v5520 = vshrl.u32 %v5519, 7
        %v5521 = vsub.s32 %v5518, %v5520
        %v5522 = vrot.slane %v5494, %v5521
        %v5523 = vcombine.high %v5501, %v5501
        %v5524 = vcombine.high %v5508, %v5508
        %v5525 = vcombine.high %v5515, %v5515
        %v5526 = vcombine.high %v5522, %v5522
        %v5527 = vlaneseq
        %v5528 = vshrl.u32 %v5527, 7
        %v5529 = vsub.s32 0, %v5528
        %v5530 = vrot.slane %v5451, %v5529
        %v5531 = vlaneseq
        %v5532 = vshrl.u32 %v5531, 7
        %v5533 = vsub.s32 1, %v5532
        %v5534 = vrot.slane %v5451, %v5533
        %v5535 = vlaneseq
        %v5536 = vshrl.u32 %v5535, 7
        %v5537 = vsub.s32 0, %v5536
        %v5538 = vrot.slane %v5465, %v5537
        %v5539 = vlaneseq
        %v5540 = vshrl.u32 %v5539, 7
        %v5541 = vsub.s32 1, %v5540
        %v5542 = vrot.slane %v5465, %v5541
        %v5543 = vlaneseq
        %v5544 = vshrl.u32 %v5543, 7
        %v5545 = vsub.s32 0, %v5544
        %v5546 = vrot.slane %v5473, %v5545
        %v5547 = vlaneseq
        %v5548 = vshrl.u32 %v5547, 7
        %v5549 = vsub.s32 1, %v5548
        %v5550 = vrot.slane %v5473, %v5549
        %v5551 = vlaneseq
        %v5552 = vshrl.u32 %v5551, 7
        %v5553 = vsub.s32 0, %v5552
        %v5554 = vrot.slane %v5475, %v5553
        %v5555 = vlaneseq
        %v5556 = vshrl.u32 %v5555, 7
        %v5557 = vsub.s32 1, %v5556
        %v5558 = vrot.slane %v5475, %v5557
        %v5559 = vlaneseq
        %v5560 = vshrl.u32 %v5559, 7
        %v5561 = vsub.s32 0, %v5560
        %v5562 = vrot.slane %v5458, %v5561
        %v5563 = vlaneseq
        %v5564 = vshrl.u32 %v5563, 7
        %v5565 = vsub.s32 1, %v5564
        %v5566 = vrot.slane %v5458, %v5565
        %v5567 = vlaneseq
        %v5568 = vshrl.u32 %v5567, 7
        %v5569 = vsub.s32 0, %v5568
        %v5570 = vrot.slane %v5472, %v5569
        %v5571 = vlaneseq
        %v5572 = vshrl.u32 %v5571, 7
        %v5573 = vsub.s32 1, %v5572
        %v5574 = vrot.slane %v5472, %v5573
        %v5575 = vlaneseq
        %v5576 = vshrl.u32 %v5575, 7
        %v5577 = vsub.s32 0, %v5576
        %v5578 = vrot.slane %v5474, %v5577
        %v5579 = vlaneseq
        %v5580 = vshrl.u32 %v5579, 7
        %v5581 = vsub.s32 1, %v5580
        %v5582 = vrot.slane %v5474, %v5581
        %v5583 = vlaneseq
        %v5584 = vshrl.u32 %v5583, 7
        %v5585 = vsub.s32 0, %v5584
        %v5586 = vrot.slane %v5476, %v5585
        %v5587 = vlaneseq
        %v5588 = vshrl.u32 %v5587, 7
        %v5589 = vsub.s32 1, %v5588
        %v5590 = vrot.slane %v5476, %v5589
        %v5591 = vlaneseq
        %v5592 = vshrl.u32 %v5591, 7
        %v5593 = vsub.s32 0, %v5592
        %v5594 = vrot.slane %v5501, %v5593
        %v5595 = vlaneseq
        %v5596 = vshrl.u32 %v5595, 7
        %v5597 = vsub.s32 1, %v5596
        %v5598 = vrot.slane %v5501, %v5597
        %v5599 = vlaneseq
        %v5600 = vshrl.u32 %v5599, 7
        %v5601 = vsub.s32 0, %v5600
        %v5602 = vrot.slane %v5515, %v5601
        %v5603 = vlaneseq
        %v5604 = vshrl.u32 %v5603, 7
        %v5605 = vsub.s32 1, %v5604
        %v5606 = vrot.slane %v5515, %v5605
        %v5607 = vlaneseq
        %v5608 = vshrl.u32 %v5607, 7
        %v5609 = vsub.s32 0, %v5608
        %v5610 = vrot.slane %v5523, %v5609
        %v5611 = vlaneseq
        %v5612 = vshrl.u32 %v5611, 7
        %v5613 = vsub.s32 1, %v5612
        %v5614 = vrot.slane %v5523, %v5613
        %v5615 = vlaneseq
        %v5616 = vshrl.u32 %v5615, 7
        %v5617 = vsub.s32 0, %v5616
        %v5618 = vrot.slane %v5525, %v5617
        %v5619 = vlaneseq
        %v5620 = vshrl.u32 %v5619, 7
        %v5621 = vsub.s32 1, %v5620
        %v5622 = vrot.slane %v5525, %v5621
        %v5623 = vlaneseq
        %v5624 = vshrl.u32 %v5623, 7
        %v5625 = vsub.s32 0, %v5624
        %v5626 = vrot.slane %v5508, %v5625
        %v5627 = vlaneseq
        %v5628 = vshrl.u32 %v5627, 7
        %v5629 = vsub.s32 1, %v5628
        %v5630 = vrot.slane %v5508, %v5629
        %v5631 = vlaneseq
        %v5632 = vshrl.u32 %v5631, 7
        %v5633 = vsub.s32 0, %v5632
        %v5634 = vrot.slane %v5522, %v5633
        %v5635 = vlaneseq
        %v5636 = vshrl.u32 %v5635, 7
        %v5637 = vsub.s32 1, %v5636
        %v5638 = vrot.slane %v5522, %v5637
        %v5639 = vlaneseq
        %v5640 = vshrl.u32 %v5639, 7
        %v5641 = vsub.s32 0, %v5640
        %v5642 = vrot.slane %v5524, %v5641
        %v5643 = vlaneseq
        %v5644 = vshrl.u32 %v5643, 7
        %v5645 = vsub.s32 1, %v5644
        %v5646 = vrot.slane %v5524, %v5645
        %v5647 = vlaneseq
        %v5648 = vshrl.u32 %v5647, 7
        %v5649 = vsub.s32 0, %v5648
        %v5650 = vrot.slane %v5526, %v5649
        %v5651 = vlaneseq
        %v5652 = vshrl.u32 %v5651, 7
        %v5653 = vsub.s32 1, %v5652
        %v5654 = vrot.slane %v5526, %v5653
        %v5655 = vshra.s32 %v5530, %v639
        %v5656 = vshra.s32 %v5534, %v639
        %v5657 = vshra.s32 %v5538, %v639
        %v5658 = vshra.s32 %v5542, %v639
        %v5659 = vshra.s32 %v5546, %v639
        %v5660 = vshra.s32 %v5550, %v639
        %v5661 = vshra.s32 %v5554, %v639
        %v5662 = vshra.s32 %v5558, %v639
        %v5663 = vshra.s32 %v5562, %v639
        %v5664 = vshra.s32 %v5566, %v639
        %v5665 = vshra.s32 %v5570, %v639
        %v5666 = vshra.s32 %v5574, %v639
        %v5667 = vshra.s32 %v5578, %v639
        %v5668 = vshra.s32 %v5582, %v639
        %v5669 = vshra.s32 %v5586, %v639
        %v5670 = vshra.s32 %v5590, %v639
        %v5671 = vshra.s32 %v5594, %v639
        %v5672 = vshra.s32 %v5598, %v639
        %v5673 = vshra.s32 %v5602, %v639
        %v5674 = vshra.s32 %v5606, %v639
        %v5675 = vshra.s32 %v5610, %v639
        %v5676 = vshra.s32 %v5614, %v639
        %v5677 = vshra.s32 %v5618, %v639
        %v5678 = vshra.s32 %v5622, %v639
        %v5679 = vshra.s32 %v5626, %v639
        %v5680 = vshra.s32 %v5630, %v639
        %v5681 = vshra.s32 %v5634, %v639
        %v5682 = vshra.s32 %v5638, %v639
        %v5683 = vshra.s32 %v5642, %v639
        %v5684 = vshra.s32 %v5646, %v639
        %v5685 = vshra.s32 %v5650, %v639
        %v5686 = vshra.s32 %v5654, %v639
        %v5687 = vand.u32 %v5655, 15
        %v5688 = vand.u32 %v5656, 15
        %v5689 = vand.u32 %v5657, 15
        %v5690 = vand.u32 %v5658, 15
        %v5691 = vand.u32 %v5659, 15
        %v5692 = vand.u32 %v5660, 15
        %v5693 = vand.u32 %v5661, 15
        %v5694 = vand.u32 %v5662, 15
        %v5695 = vand.u32 %v5663, 15
        %v5696 = vand.u32 %v5664, 15
        %v5697 = vand.u32 %v5665, 15
        %v5698 = vand.u32 %v5666, 15
        %v5699 = vand.u32 %v5667, 15
        %v5700 = vand.u32 %v5668, 15
        %v5701 = vand.u32 %v5669, 15
        %v5702 = vand.u32 %v5670, 15
        %v5703 = vand.u32 %v5671, 15
        %v5704 = vand.u32 %v5672, 15
        %v5705 = vand.u32 %v5673, 15
        %v5706 = vand.u32 %v5674, 15
        %v5707 = vand.u32 %v5675, 15
        %v5708 = vand.u32 %v5676, 15
        %v5709 = vand.u32 %v5677, 15
        %v5710 = vand.u32 %v5678, 15
        %v5711 = vand.u32 %v5679, 15
        %v5712 = vand.u32 %v5680, 15
        %v5713 = vand.u32 %v5681, 15
        %v5714 = vand.u32 %v5682, 15
        %v5715 = vand.u32 %v5683, 15
        %v5716 = vand.u32 %v5684, 15
        %v5717 = vand.u32 %v5685, 15
        %v5718 = vand.u32 %v5686, 15
        %v5719 = vcvt.s32.f32 %v5687
        %v5720 = vcvt.s32.f32 %v5688
        %v5721 = vcvt.s32.f32 %v5689
        %v5722 = vcvt.s32.f32 %v5690
        %v5723 = vcvt.s32.f32 %v5691
        %v5724 = vcvt.s32.f32 %v5692
        %v5725 = vcvt.s32.f32 %v5693
        %v5726 = vcvt.s32.f32 %v5694
        %v5727 = vcvt.s32.f32 %v5695
        %v5728 = vcvt.s32.f32 %v5696
        %v5729 = vcvt.s32.f32 %v5697
        %v5730 = vcvt.s32.f32 %v5698
        %v5731 = vcvt.s32.f32 %v5699
        %v5732 = vcvt.s32.f32 %v5700
        %v5733 = vcvt.s32.f32 %v5701
        %v5734 = vcvt.s32.f32 %v5702
        %v5735 = vcvt.s32.f32 %v5703
        %v5736 = vcvt.s32.f32 %v5704
        %v5737 = vcvt.s32.f32 %v5705
        %v5738 = vcvt.s32.f32 %v5706
        %v5739 = vcvt.s32.f32 %v5707
        %v5740 = vcvt.s32.f32 %v5708
        %v5741 = vcvt.s32.f32 %v5709
        %v5742 = vcvt.s32.f32 %v5710
        %v5743 = vcvt.s32.f32 %v5711
        %v5744 = vcvt.s32.f32 %v5712
        %v5745 = vcvt.s32.f32 %v5713
        %v5746 = vcvt.s32.f32 %v5714
        %v5747 = vcvt.s32.f32 %v5715
        %v5748 = vcvt.s32.f32 %v5716
        %v5749 = vcvt.s32.f32 %v5717
        %v5750 = vcvt.s32.f32 %v5718
        %v5751 = vpack.c.bf16 %v5721, %v5719
        %v5752 = vpack.c.bf16 %v5722, %v5720
        %v5753 = vpack.c.bf16 %v5725, %v5723
        %v5754 = vpack.c.bf16 %v5726, %v5724
        %v5755 = vpack.c.bf16 %v5729, %v5727
        %v5756 = vpack.c.bf16 %v5730, %v5728
        %v5757 = vpack.c.bf16 %v5733, %v5731
        %v5758 = vpack.c.bf16 %v5734, %v5732
        %v5759 = vpack.c.bf16 %v5737, %v5735
        %v5760 = vpack.c.bf16 %v5738, %v5736
        %v5761 = vpack.c.bf16 %v5741, %v5739
        %v5762 = vpack.c.bf16 %v5742, %v5740
        %v5763 = vpack.c.bf16 %v5745, %v5743
        %v5764 = vpack.c.bf16 %v5746, %v5744
        %v5765 = vpack.c.bf16 %v5749, %v5747
        %v5766 = vpack.c.bf16 %v5750, %v5748
        %5767 = vmatprep.subr.bf16.mxu0 %v5766
        %5768 = vmatpush1.bf16.msra.mxu0 %v5765
        %5769 = vmatprep.subr.bf16.mxu0 %v5764
        %5770 = vmatpush1.bf16.msra.mxu0 %v5763
        %5771 = vmatprep.subr.bf16.mxu0 %v5762
        %5772 = vmatpush1.bf16.msra.mxu0 %v5761
        %5773 = vmatprep.subr.bf16.mxu0 %v5760
        %5774 = vmatpush1.bf16.msra.mxu0 %v5759
        %5775 = vmatprep.subr.bf16.mxu0 %v5758
        %5776 = vmatpush1.bf16.msra.mxu0 %v5757
        %5777 = vmatprep.subr.bf16.mxu0 %v5756
        %5778 = vmatpush1.bf16.msra.mxu0 %v5755
        %5779 = vmatprep.subr.bf16.mxu0 %v5754
        %5780 = vmatpush1.bf16.msra.mxu0 %v5753
        %5781 = vmatprep.subr.bf16.mxu0 %v5752
        %5782 = vmatpush1.bf16.msra.mxu0 %v5751
        %5783 = vmatprep.subr.bf16.mxu0 0
        %5784 = vmatpush2.bf16.msra.mxu0 0
        %5785 = vmatprep.subr.bf16.mxu0 0
        %5786 = vmatpush2.bf16.msra.mxu0 0
        %5787 = vmatprep.subr.bf16.mxu0 0
        %5788 = vmatpush2.bf16.msra.mxu0 0
        %5789 = vmatprep.subr.bf16.mxu0 0
        %5790 = vmatpush2.bf16.msra.mxu0 0
        %5791 = vmatprep.subr.bf16.mxu0 0
        %5792 = vmatpush2.bf16.msra.mxu0 0
        %5793 = vmatprep.subr.bf16.mxu0 0
        %5794 = vmatpush2.bf16.msra.mxu0 0
        %5795 = vmatprep.subr.bf16.mxu0 0
        %5796 = vmatpush2.bf16.msra.mxu0 0
        %5797 = vmatprep.subr.bf16.mxu0 0
        %5798 = vmatpush2.bf16.msra.mxu0 0
        %5799 = vmatprep.mubr.bf16.mxu0 0
        %5800 = vmatmul.mubr.bf16.gmra.mxu0 %v5336
        %v5801 = vpop.f32.mrf.mxu0
        %v5802 = vadd.f32 0.0, %v5801
        %v5803 = vpop.f32.mrf.mxu0
        %v5804 = vadd.f32 0.0, %v5803
        %v5805 = vpop.f32.mrf.mxu0
        %v5806 = vadd.f32 0.0, %v5805
        %v5807 = vpop.f32.mrf.mxu0
        %v5808 = vadd.f32 0.0, %v5807
        %5809 = vdwg.mxu0
        %s5810 = scalar_lea.vmem %s514, 10 [#allocation13]
        %v5811 = vld [vmem:[%s5810] sm:$0x3]
        %v5813 = vlaneseq
        %v5814 = vshrl.u32 %v5813, 7
        %v5815 = vsub.s32 0, %v5814
        %v5816 = vrot.slane %v5811, %v5815
        %v5817 = vlaneseq
        %v5818 = vshrl.u32 %v5817, 7
        %v5819 = vsub.s32 1, %v5818
        %v5820 = vrot.slane %v5811, %v5819
        %v5823 = vmul.f32 %v5802, %v5816
        %v5824 = vmul.f32 %v5804, %v5820
        %v5825 = vmul.f32 %v5806, %v5816
        %v5826 = vmul.f32 %v5808, %v5820
        %s5827 = scalar_lea.vmem %s523, 10 [#allocation15]
        %v5828 = vld [vmem:[%s5827] sm:$0x3]
        %v5830 = vlaneseq
        %v5831 = vshrl.u32 %v5830, 7
        %v5832 = vsub.s32 0, %v5831
        %v5833 = vrot.slane %v5828, %v5832
        %v5834 = vlaneseq
        %v5835 = vshrl.u32 %v5834, 7
        %v5836 = vsub.s32 1, %v5835
        %v5837 = vrot.slane %v5828, %v5836
        %v5840 = vmul.f32 %v4987, %v5833
        %v5841 = vmul.f32 %v4987, %v5837
        %v5842 = vmul.f32 %v4989, %v5833
        %v5843 = vmul.f32 %v4989, %v5837
        %v5844 = vsub.f32 %v5823, %v5840
        %v5845 = vsub.f32 %v5824, %v5841
        %v5846 = vsub.f32 %v5825, %v5842
        %v5847 = vsub.f32 %v5826, %v5843
        %v5848 = vadd.f32 %v4976, %v5844
        %v5849 = vadd.f32 %v4977, %v5845
        %v5850 = vadd.f32 %v4978, %v5846
        %v5851 = vadd.f32 %v4979, %v5847
        %5852 = vst [vmem:[#allocation2] sm:$0xff] %v5419
        %5853 = vst [vmem:[#allocation2 + $0x8] sm:$0xff] %v5420
        %5854 = vst [vmem:[#allocation2 + $0x10] sm:$0xff] %v5421
        %5855 = vst [vmem:[#allocation2 + $0x18] sm:$0xff] %v5422
        %5856 = vst [vmem:[#allocation3] sm:$0xff] %v5848
        %5857 = vst [vmem:[#allocation3 + $0x8] sm:$0xff] %v5849
        %5858 = vst [vmem:[#allocation3 + $0x10] sm:$0xff] %v5850
        %5859 = vst [vmem:[#allocation3 + $0x18] sm:$0xff] %v5851
        %p5860 = scmp.eq.s32.totalorder %s40, 1
        // Predicated region
        $region81: #{tpu_custom_call.1} parent=47 // pred_check
          %p5861 = pneg %p5860
        $region82: #{tpu_custom_call.1} parent=47 // pred_check_branch
          %5863 = sbr.rel (%p5861) target = $region84
        $region83: #{tpu_custom_call.1} parent=47 // pred_region
          %v5864 = vld [vmem:[#allocation2] sm:$0xff]
          %v5865 = vld [vmem:[#allocation2 + $0x8] sm:$0xff]
          %v5866 = vld [vmem:[#allocation2 + $0x10] sm:$0xff]
          %v5867 = vld [vmem:[#allocation2 + $0x18] sm:$0xff]
          %v5868 = vxor.u32 %v5864, 2147483648
          %v5869 = vxor.u32 %v5865, 2147483648
          %v5870 = vxor.u32 %v5866, 2147483648
          %v5871 = vxor.u32 %v5867, 2147483648
          %v5872 = vmul.f32 %v5868, 1.442695
          %v5873 = vpow.pop %v5872
          %v5874 = vmul.f32 %v5869, 1.442695
          %v5875 = vpow.pop %v5874
          %v5876 = vmul.f32 %v5870, 1.442695
          %v5877 = vpow.pop %v5876
          %v5878 = vmul.f32 %v5871, 1.442695
          %v5879 = vpow.pop %v5878
          %v5880 = vadd.f32 %v5873, 1.0
          %v5881 = vadd.f32 %v5875, 1.0
          %v5882 = vadd.f32 %v5877, 1.0
          %v5883 = vadd.f32 %v5879, 1.0
          %v5884 = vrcp.pop %v5880
          %v5885 = vmul.f32 1.0, %v5884
          %v5886 = vrcp.pop %v5881
          %v5887 = vmul.f32 1.0, %v5886
          %v5888 = vrcp.pop %v5882
          %v5889 = vmul.f32 1.0, %v5888
          %v5890 = vrcp.pop %v5883
          %v5891 = vmul.f32 1.0, %v5890
          %v5892 = vmul.f32 %v5864, %v5885
          %v5893 = vmul.f32 %v5865, %v5887
          %v5894 = vmul.f32 %v5866, %v5889
          %v5895 = vmul.f32 %v5867, %v5891
          %v5896 = vld [vmem:[#allocation3] sm:$0xff]
          %v5897 = vld [vmem:[#allocation3 + $0x8] sm:$0xff]
          %v5898 = vld [vmem:[#allocation3 + $0x10] sm:$0xff]
          %v5899 = vld [vmem:[#allocation3 + $0x18] sm:$0xff]
          %v5900 = vmul.f32 %v5892, %v5896
          %v5901 = vmul.f32 %v5893, %v5897
          %v5902 = vmul.f32 %v5894, %v5898
          %v5903 = vmul.f32 %v5895, %v5899
          %v5904 = vpack.c.bf16 %v5902, %v5900
          %v5905 = vpack.c.bf16 %v5903, %v5901
          %v5908 = vunpack.c.l.b16 %v5904
          %v5909 = vunpack.c.l.b16 %v5905
          %v5910 = vunpack.c.h.b16 %v5904
          %v5911 = vunpack.c.h.b16 %v5905
          %v5912 = vpack.c.b16 %v5909, %v5908
          %v5913 = vpack.c.b16 %v5911, %v5910
          %5916 = vst [vmem:[%s583] sm:$0xff] %v5912
          %5917 = vst [vmem:[%s583 + $0x8] sm:$0xff] %v5913
        $region84: #{tpu_custom_call.1} parent=47 // pred_fallthru
          _
        %s5918 = sand.u32 %s258, 1
        %s5919 = scalar_lea.sflag [#allocation6], %s5918
        %s5920 = sand.u32 %s258, 1
        %s5921 = smul.addr %s5920, 16
        %s5922 = scalar_lea.vmem [#allocation16], %s5921
        // Predicated region
        $region85: #{tpu_custom_call.1} parent=47 // pred_check
          %p5923 = pneg %p268
        $region86: #{tpu_custom_call.1} parent=47 // pred_check_branch
          %5925 = sbr.rel (%p5923) target = $region88
        $region87: #{tpu_custom_call.1} parent=47 // pred_region
          %s5926 = smul.u32 2, %s38
          %s5927 = smul.u32 2, %s39
          %s5929 = ssub.s32 256, 256
          %5930 = vsyncadd %s5919, %s5929
          %s5931 = smul.addr %s5926, 4
          %s5932 = sadd.s32 %s5927, %s5931
          %s5933 = smul.addr %s5932, 64
          %s5934 = scalar_lea.hbm %s7, %s5933
          %s5935 = sshll.u32 %s5922, 4
          %s5936 = int_to_ptr.vmem [resolvable:$true] %s5935
          %5941 = dma.vmem_to_hbm [thread:$0]  %s5936, 256, %s5934, %s5919, 128, 256, 8
        $region88: #{tpu_custom_call.1} parent=47 // pred_fallthru
          _
      $region48: #{tpu_custom_call.1} parent=5 // pred_fallthru
        _
      %p5942 = scmp.le.s32.totalorder 2, %s28
      // Predicated region
      $region89: #{tpu_custom_call.1} parent=5 // pred_check
        %p5943 = pneg %p5942
      $region90: #{tpu_custom_call.1} parent=5 // pred_check_branch
        %5945 = sbr.rel (%p5943) target = $region92
      $region91: #{tpu_custom_call.1} parent=5 // pred_region
        %s5946 = ssub.s32 %s28, 2
        // Predicated region
        $region93: #{tpu_custom_call.1} parent=91 // pred_check
          %p5947 = pneg %p274
        $region94: #{tpu_custom_call.1} parent=91 // pred_check_branch
          %5949 = sbr.rel (%p5947) target = $region96
        $region95: #{tpu_custom_call.1} parent=91 // pred_region
          %s5950 = sand.u32 %s259, 1
          %s5951 = scalar_lea.sflag [#allocation6], %s5950
          %s5952 = sand.u32 %s259, 1
          %s5953 = smul.addr %s5952, 16
          %s5954 = scalar_lea.vmem [#allocation16], %s5953
          %5955 = dma.done %s5951, 256
        $region96: #{tpu_custom_call.1} parent=91 // pred_fallthru
          _
      $region92: #{tpu_custom_call.1} parent=5 // pred_fallthru
        _
    $region6: #{tpu_custom_call.1} parent=1 // loop_footer
      %s32 = sadd.s32 1, %s28
    $region7: #{tpu_custom_call.1} parent=1 // loop_footer_branch
      %27 = sbr.rel target = $region3
    $region8: #{tpu_custom_call.1} parent=1 // loop_exit
      _
    %5956 = vsyncpa [#allocation5], 1
    %s5957 = scalar_lea.sflag [#allocation5], 1
    %5958 = vsyncpa %s5957, 1
    %5959 = vsyncpa [#allocation8], 1
    %s5960 = scalar_lea.sflag [#allocation8], 1
    %5961 = vsyncpa %s5960, 1
    %5962 = vsyncpa [#allocation11], 1
    %s5963 = scalar_lea.sflag [#allocation11], 1
    %5964 = vsyncpa %s5963, 1
    %5965 = vsyncpa [#allocation14], 1
    %s5966 = scalar_lea.sflag [#allocation14], 1
    %5967 = vsyncpa %s5966, 1
    %5968 = vsyncpa [#allocation6], 1
    %s5969 = scalar_lea.sflag [#allocation6], 1
    %5970 = vsyncpa %s5969, 1

</llo_original>
